<compile_context>
chip_gen: v7x
topology: tpu7x:2x2x1
jax: 0.10.0
libtpu: 0.0.40
codegen_flags: <defaults>
</compile_context>

<pallas_src>
import math
from functools import partial

import jax
import jax.numpy as jnp
from jax.experimental import pallas as pl
from jax.experimental.pallas import tpu as pltpu

LN_EPS = 1e-5                      # nn.LayerNorm default
_INV_SQRT2 = 1.0 / math.sqrt(2.0)


# ---------------------------------------------------------------------------
# in-kernel math helpers (traced inside the Pallas kernel bodies)
# ---------------------------------------------------------------------------
def _erf(x):
    # Abramowitz & Stegun 7.1.26 rational approximation, |err| <= 1.5e-7.
    # Built only from exp/abs/select so it lowers cleanly in Mosaic.
    # TODO(synk): switch to jax.lax.erf in-kernel if/when a Mosaic erf lowering
    # is guaranteed; the polynomial below matches it to ~1.5e-7.
    p = 0.3275911
    a1, a2, a3, a4, a5 = 0.254829592, -0.284496736, 1.421413741, -1.453152027, 1.061405429
    ax = jnp.abs(x)
    t = 1.0 / (1.0 + p * ax)
    poly = ((((a5 * t + a4) * t + a3) * t + a2) * t + a1) * t
    y = 1.0 - poly * jnp.exp(-ax * ax)
    return jnp.where(x >= 0, y, -y)


def _gelu(x):
    # exact (erf-based) GELU == torch.nn.GELU() default, to ~1.5e-7
    return 0.5 * x * (1.0 + _erf(x * _INV_SQRT2))


def _ln_last(x, g, b):
    """LayerNorm over the last (lane) axis; two-pass statistics (PyTorch parity)."""
    m = jnp.mean(x, axis=-1, keepdims=True)
    c = x - m
    var = jnp.mean(c * c, axis=-1, keepdims=True)
    return c * jax.lax.rsqrt(var + LN_EPS) * g + b


def _ln_first(x, g, b):
    """LayerNorm over the first (sublane) axis; g/b are column vectors (out, 1)."""
    m = jnp.mean(x, axis=0, keepdims=True)
    c = x - m
    var = jnp.mean(c * c, axis=0, keepdims=True)
    return c * jax.lax.rsqrt(var + LN_EPS) * g + b


def _mm_rows(x, w):
    """x @ w on the MXU, activation cast to the (bf16) weight dtype, f32 accumulate."""
    return jnp.dot(x.astype(w.dtype), w, preferred_element_type=jnp.float32)


def _mm_cols(w, x):
    """w @ x (left multiplication: mixes the sublane/token axis), f32 accumulate."""
    return jnp.dot(w, x.astype(w.dtype), preferred_element_type=jnp.float32)


def _mlp3_last(x, p, use_ln):
    """3-layer MLP mixing the LAST axis. weights (in,out) bf16; bias/gamma/beta (1,out) f32."""
    if use_ln:
        w1, b1, g1, be1, w2, b2, g2, be2, w3, b3, g3, be3 = p
    else:
        w1, b1, w2, b2, w3, b3 = p
    h = _mm_rows(x, w1) + b1
    if use_ln:
        h = _ln_last(h, g1, be1)
    h = _gelu(h)
    h = _mm_rows(h, w2) + b2
    if use_ln:
        h = _ln_last(h, g2, be2)
    h = _gelu(h)
    h = _mm_rows(h, w3) + b3
    if use_ln:
        h = _ln_last(h, g3, be3)
    return h


def _mlp3_first(x, p, use_ln):
    """3-layer MLP mixing the FIRST axis (token mixing without transposing the
    activation).  Weights pre-transposed to (out,in) bf16; bias/gamma/beta are
    column vectors (out,1) f32.  Keeps `dim` on the lane axis throughout."""
    if use_ln:
        w1, b1, g1, be1, w2, b2, g2, be2, w3, b3, g3, be3 = p
    else:
        w1, b1, w2, b2, w3, b3 = p
    h = _mm_cols(w1, x) + b1
    if use_ln:
        h = _ln_first(h, g1, be1)
    h = _gelu(h)
    h = _mm_cols(w2, h) + b2
    if use_ln:
        h = _ln_first(h, g2, be2)
    h = _gelu(h)
    h = _mm_cols(w3, h) + b3
    if use_ln:
        h = _ln_first(h, g3, be3)
    return h


# ---------------------------------------------------------------------------
# depth-fused TranslatorBase stack kernel (blocks of TranslatorNoLN)
# ---------------------------------------------------------------------------
def _make_blocks_kernel(bt):
    """One TranslatorBase block (with LN + inner residuals) + outer residual +
    GELU per depth grid step, on a VMEM-resident (bt, T, D) activation."""
    n = 12  # params per branch: (w, b, gamma, beta) x 3 layers

    def kernel(*refs):
        x_ref = refs[0]
        param_refs = refs[1:1 + 2 * n]
        o_ref = refs[1 + 2 * n]
        acc_ref = refs[2 + 2 * n]
        sen = [r[...] for r in param_refs[:n]]
        tok = [r[...] for r in param_refs[n:]]

        d = pl.program_id(1)

        @pl.when(d == 0)
        def _():
            acc_ref[...] = x_ref[...].astype(jnp.float32)

        x3 = acc_ref[...]                                # (bt, T, D) f32
        T, D = x3.shape[1], x3.shape[2]
        xf = x3.reshape(bt * T, D)

        # sen branch (mixes the feature/lane axis) + residual, one flat matmul chain
        yf = _mlp3_last(xf, sen, use_ln=True) + xf

        # tok branch (mixes the token/sublane axis) per batch element via left
        # multiplication with pre-transposed weights — no activation transposes.
        zs = []
        for b in range(bt):
            yb = yf[b * T:(b + 1) * T, :]
            zs.append(_mlp3_first(yb, tok, use_ln=True) + yb)
        zf = jnp.concatenate(zs, axis=0) if bt > 1 else zs[0]

        out3 = _gelu(zf + xf).reshape(bt, T, D)          # fused `gelu(block(x) + x)`
        acc_ref[...] = out3

        @pl.when(d == pl.num_programs(1) - 1)
        def _():
            o_ref[...] = out3.astype(o_ref.dtype)

    return kernel


def fused_blocks(x, blocks_flat, *, bt, vmem_limit):
    """x: (B, T, D) -> (B, T, D); all `depth` blocks in one weight-streaming call."""
    B, T, D = x.shape
    depth = blocks_flat[0].shape[0]
    nb = B // bt

    x_map = lambda i, d: (i, 0, 0)        # block-invariant along depth (one DMA per tile)
    w_map = lambda i, d: (d, 0, 0)        # streamed per depth step (double-buffered)

    in_specs = [pl.BlockSpec((bt, T, D), x_map)]
    in_specs += [pl.BlockSpec((None,) + tuple(p.shape[1:]), w_map) for p in blocks_flat]

    # NOTE(v7x megacore): the "parallel" batch axis lets both TensorCores work on
    # different batch tiles, at the cost of each TC streaming its own weight copy;
    # with a small number of batch tiles this is the right trade-off.
    return pl.pallas_call(
        _make_blocks_kernel(bt),
        out_shape=jax.ShapeDtypeStruct((B, T, D), x.dtype),
        grid=(nb, depth),
        in_specs=in_specs,
        out_specs=pl.BlockSpec((bt, T, D), x_map),
        scratch_shapes=[pltpu.VMEM((bt, T, D), jnp.float32)],
        compiler_params=pltpu.CompilerParams(
            dimension_semantics=("parallel", "arbitrary"),
            vmem_limit_bytes=vmem_limit),
    )(x, *blocks_flat)


# ---------------------------------------------------------------------------
# fused TranslatorBaseNoLN tail kernel
# ---------------------------------------------------------------------------
def _make_tail_kernel(bt, inner_residual):
    n = 6  # params per branch: (w, b) x 3 layers

    def kernel(*refs):
        x_ref = refs[0]
        param_refs = refs[1:1 + 2 * n]
        o_ref = refs[1 + 2 * n]
        sen = [r[...] for r in param_refs[:n]]
        tok = [r[...] for r in param_refs[n:]]

        x3 = x_ref[...].astype(jnp.float32)              # (bt, T, D)
        T, D = x3.shape[1], x3.shape[2]
        xf = x3.reshape(bt * T, D)

        yf = _mlp3_last(xf, sen, use_ln=False)
        if inner_residual:
            yf = yf + xf

        zs = []
        for b in range(bt):
            yb = yf[b * T:(b + 1) * T, :]
            zb = _mlp3_first(yb, tok, use_ln=False)
            if inner_residual:
                zb = zb + yb
            zs.append(zb)
        zf = jnp.concatenate(zs, axis=0) if bt > 1 else zs[0]

        o_ref[...] = zf.reshape(bt, T, zf.shape[-1]).astype(o_ref.dtype)

    return kernel


def fused_tail(x, tail_flat, d_out_pad, inner_residual, *, bt, vmem_limit):
    B, T, D = x.shape
    nb = B // bt
    x_map = lambda i: (i, 0, 0)
    w_map = lambda i: (0, 0)

    in_specs = [pl.BlockSpec((bt, T, D), x_map)]
    in_specs += [pl.BlockSpec(tuple(p.shape), w_map) for p in tail_flat]

    return pl.pallas_call(
        _make_tail_kernel(bt, inner_residual),
        out_shape=jax.ShapeDtypeStruct((B, T, d_out_pad), x.dtype),
        grid=(nb,),
        in_specs=in_specs,
        out_specs=pl.BlockSpec((bt, T, d_out_pad), x_map),
        compiler_params=pltpu.CompilerParams(
            dimension_semantics=("parallel",),
            vmem_limit_bytes=vmem_limit),
    )(x, *tail_flat)


# ---------------------------------------------------------------------------
# module-level composition
# ---------------------------------------------------------------------------
def translator_noln_forward(x, blocks_flat, tail_flat, *, bt, d_out, d_out_pad,
                            tail_residual, vmem_limit):
    y = fused_blocks(x, blocks_flat, bt=bt, vmem_limit=vmem_limit)
    z = fused_tail(y, tail_flat, d_out_pad, tail_residual, bt=bt, vmem_limit=vmem_limit)
    return z[..., :d_out] if d_out_pad != d_out else z


# ---------------------------------------------------------------------------
# deterministic parameter init (PyTorch Linear-style uniform; LN gamma=1, beta=0)
# ---------------------------------------------------------------------------
def _init_linear(key, d_in, d_out):
    kw, kb = jax.random.split(key)
    bound = 1.0 / math.sqrt(d_in)
    w = jax.random.uniform(kw, (d_in, d_out), jnp.float32, -bound, bound)
    b = jax.random.uniform(kb, (1, d_out), jnp.float32, -bound, bound)
    return w, b


def _init_mlp3(key, d_in, d_hid, d_out, use_ln):
    k1, k2, k3 = jax.random.split(key, 3)
    p = {}
    p["w1"], p["b1"] = _init_linear(k1, d_in, d_hid)
    p["w2"], p["b2"] = _init_linear(k2, d_hid, d_hid)
    p["w3"], p["b3"] = _init_linear(k3, d_hid, d_out)
    if use_ln:
        p["g1"], p["be1"] = jnp.ones((1, d_hid)), jnp.zeros((1, d_hid))
        p["g2"], p["be2"] = jnp.ones((1, d_hid)), jnp.zeros((1, d_hid))
        p["g3"], p["be3"] = jnp.ones((1, d_out)), jnp.zeros((1, d_out))
    return p


def init_translator_noln(key, num_tok, dim, dim_out, mult=2, depth=5):
    keys = jax.random.split(key, 2 * depth + 2)
    blocks = []
    for d in range(depth):
        blocks.append({
            "sen": _init_mlp3(keys[2 * d], dim, int(dim * mult), dim, True),
            "tok": _init_mlp3(keys[2 * d + 1], num_tok, int(num_tok * mult), num_tok, True),
        })
    tail = {
        "sen": _init_mlp3(keys[-2], dim, int(dim * mult), dim_out, False),
        "tok": _init_mlp3(keys[-1], num_tok, int(num_tok * mult), num_tok, False),
    }
    return {"blocks": blocks, "tail": tail}


# ---------------------------------------------------------------------------
# one-time parameter preparation (hoisted out of the per-forward path)
# ---------------------------------------------------------------------------
def prepare_params(raw, *, dim, dim_out, matmul_dtype=jnp.bfloat16, lane=128):
    """Stack block params along depth, pre-transpose tok weights to (out,in),
    reshape tok bias/LN params to columns, cast matmul weights to bf16 (bias/LN
    params stay f32), and zero-pad the tail's output feature dim to a lane
    multiple (only valid on the no-residual path; padded cols are sliced off)."""
    wcast = lambda w: w.astype(matmul_dtype)
    col = lambda v: v.reshape(-1, 1)

    def flat_sen(p):
        return [wcast(p["w1"]), p["b1"], p["g1"], p["be1"],
                wcast(p["w2"]), p["b2"], p["g2"], p["be2"],
                wcast(p["w3"]), p["b3"], p["g3"], p["be3"]]

    def flat_tok(p):
        return [wcast(p["w1"].T), col(p["b1"]), col(p["g1"]), col(p["be1"]),
                wcast(p["w2"].T), col(p["b2"]), col(p["g2"]), col(p["be2"]),
                wcast(p["w3"].T), col(p["b3"]), col(p["g3"]), col(p["be3"])]

    per_block = [flat_sen(bp["sen"]) + flat_tok(bp["tok"]) for bp in raw["blocks"]]
    blocks_flat = tuple(jnp.stack([pb[i] for pb in per_block], axis=0)
                        for i in range(len(per_block[0])))

    tail_residual = (dim == dim_out)
    t = raw["tail"]
    w3, b3 = t["sen"]["w3"], t["sen"]["b3"]
    if not tail_residual:
        d_out_pad = ((dim_out + lane - 1) // lane) * lane
        if d_out_pad != dim_out:
            w3 = jnp.pad(w3, ((0, 0), (0, d_out_pad - dim_out)))
            b3 = jnp.pad(b3, ((0, 0), (0, d_out_pad - dim_out)))
    else:
        d_out_pad = dim_out

    tail_sen = [wcast(t["sen"]["w1"]), t["sen"]["b1"],
                wcast(t["sen"]["w2"]), t["sen"]["b2"],
                wcast(w3), b3]
    tail_tok = [wcast(t["tok"]["w1"].T), col(t["tok"]["b1"]),
                wcast(t["tok"]["w2"].T), col(t["tok"]["b2"]),
                wcast(t["tok"]["w3"].T), col(t["tok"]["b3"])]

    return {"blocks": blocks_flat, "tail": tuple(tail_sen + tail_tok),
            "d_out_pad": d_out_pad, "tail_residual": tail_residual}


def _pick_batch_tile(B, T, cap=8, target_rows=256):
    """Largest divisor of B (<= cap) so bt*T approaches the MXU M-dim target."""
    bt = max(1, min(B, cap, max(1, target_rows // max(T, 1))))
    while B % bt != 0:
        bt -= 1
    return bt


def _pick_vmem_limit(default=64 * 1024 * 1024):
    """~3/4 of physical VMEM: ~48 MiB on v7x (64 MiB), ~96 MiB on v5e/v6e (128 MiB)."""
    try:
        info = pltpu.get_tpu_info()
        cap = getattr(info, "vmem_capacity_bytes", None) or getattr(info, "vmem_size_bytes", None)
        if not cap:
            return default
        return int(min(cap * 3 // 4, 112 * 1024 * 1024))
    except Exception:
        return default


# ---------------------------------------------------------------------------
# pure-JAX reference (mirrors the PyTorch module; optional bf16 dot operands)
# ---------------------------------------------------------------------------
def _ref_forward(x, raw, dim_eq_tail, cast_dtype=None):
    def mm(a, w):
        if cast_dtype is not None:
            a, w = a.astype(cast_dtype), w.astype(cast_dtype)
        return jnp.dot(a, w, preferred_element_type=jnp.float32)

    def ln(h, g, b):
        mu = jnp.mean(h, axis=-1, keepdims=True)
        var = jnp.mean(jnp.square(h - mu), axis=-1, keepdims=True)
        return (h - mu) * jax.lax.rsqrt(var + LN_EPS) * g + b

    def gelu(v):
        return 0.5 * v * (1.0 + jax.lax.erf(v * _INV_SQRT2))

    def mlp(h, p, use_ln):
        h = mm(h, p["w1"]) + p["b1"]
        if use_ln:
            h = ln(h, p["g1"], p["be1"])
        h = gelu(h)
        h = mm(h, p["w2"]) + p["b2"]
        if use_ln:
            h = ln(h, p["g2"], p["be2"])
        h = gelu(h)
        h = mm(h, p["w3"]) + p["b3"]
        if use_ln:
            h = ln(h, p["g3"], p["be3"])
        return h

    for bp in raw["blocks"]:
        y = mlp(x, bp["sen"], True) + x
        yt = jnp.swapaxes(y, 1, 2)
        z = mlp(yt, bp["tok"], True) + yt
        x = gelu(jnp.swapaxes(z, 1, 2) + x)

    y = mlp(x, raw["tail"]["sen"], False)
    if dim_eq_tail:
        y = y + x
    yt = jnp.swapaxes(y, 1, 2)
    z = mlp(yt, raw["tail"]["tok"], False)
    if dim_eq_tail:
        z = z + yt
    return jnp.swapaxes(z, 1, 2)


# ---------------------------------------------------------------------------
if __name__ == "__main__":
    # small shapes: batch=2, num_tok=8, dim=32, dim_out=64, mult=2, depth=5
    B, NUM_TOK, DIM, DIM_OUT, DEPTH, MULT = 2, 8, 32, 64, 5, 2

    key = jax.random.PRNGKey(0)
    kx, kp = jax.random.split(key)
    x = jax.random.normal(kx, (B, NUM_TOK, DIM), dtype=jnp.float32)
    raw = init_translator_noln(kp, NUM_TOK, DIM, DIM_OUT, mult=MULT, depth=DEPTH)

    prep = prepare_params(raw, dim=DIM, dim_out=DIM_OUT, matmul_dtype=jnp.bfloat16)
    bt = _pick_batch_tile(B, NUM_TOK)
    vmem_limit = _pick_vmem_limit()

    fwd = jax.jit(partial(
        translator_noln_forward,
        bt=bt, d_out=DIM_OUT, d_out_pad=prep["d_out_pad"],
        tail_residual=prep["tail_residual"], vmem_limit=vmem_limit))

    out = jax.block_until_ready(fwd(x, prep["blocks"], prep["tail"]))
    assert out.shape == (B, NUM_TOK, DIM_OUT), out.shape

    # Lowering-parity check: reference with the same bf16 dot-operand casts.
    ref = _ref_forward(x, raw, prep["tail_residual"], cast_dtype=jnp.bfloat16)
    max_err = float(jnp.max(jnp.abs(out - ref)))
    assert jnp.allclose(out, ref, rtol=2e-2, atol=2e-2), max_err

    print("KERNEL_OK")
</pallas_src>

<mosaic_0001>
module attributes {stable_mosaic.version = 11 : i64} {
  func.func @kernel(%arg0: i32, %arg1: i32, %arg2: memref<2x8x32xf32, #tpu.memory_space<vmem>>, %arg3: memref<1x32x64xbf16, #tpu.memory_space<vmem>>, %arg4: memref<1x1x64xf32, #tpu.memory_space<vmem>>, %arg5: memref<1x1x64xf32, #tpu.memory_space<vmem>>, %arg6: memref<1x1x64xf32, #tpu.memory_space<vmem>>, %arg7: memref<1x64x64xbf16, #tpu.memory_space<vmem>>, %arg8: memref<1x1x64xf32, #tpu.memory_space<vmem>>, %arg9: memref<1x1x64xf32, #tpu.memory_space<vmem>>, %arg10: memref<1x1x64xf32, #tpu.memory_space<vmem>>, %arg11: memref<1x64x32xbf16, #tpu.memory_space<vmem>>, %arg12: memref<1x1x32xf32, #tpu.memory_space<vmem>>, %arg13: memref<1x1x32xf32, #tpu.memory_space<vmem>>, %arg14: memref<1x1x32xf32, #tpu.memory_space<vmem>>, %arg15: memref<1x16x8xbf16, #tpu.memory_space<vmem>>, %arg16: memref<1x16x1xf32, #tpu.memory_space<vmem>>, %arg17: memref<1x16x1xf32, #tpu.memory_space<vmem>>, %arg18: memref<1x16x1xf32, #tpu.memory_space<vmem>>, %arg19: memref<1x16x16xbf16, #tpu.memory_space<vmem>>, %arg20: memref<1x16x1xf32, #tpu.memory_space<vmem>>, %arg21: memref<1x16x1xf32, #tpu.memory_space<vmem>>, %arg22: memref<1x16x1xf32, #tpu.memory_space<vmem>>, %arg23: memref<1x8x16xbf16, #tpu.memory_space<vmem>>, %arg24: memref<1x8x1xf32, #tpu.memory_space<vmem>>, %arg25: memref<1x8x1xf32, #tpu.memory_space<vmem>>, %arg26: memref<1x8x1xf32, #tpu.memory_space<vmem>>, %arg27: memref<2x8x32xf32, #tpu.memory_space<vmem>>, %arg28: memref<2x8x32xf32, #tpu.memory_space<vmem>>) attributes {dimension_semantics = [#tpu.dimension_semantics<parallel>, #tpu.dimension_semantics<arbitrary>], iteration_bounds = array<i64: 1, 5>, scalar_prefetch = 0 : i64, scratch_operands = 1 : i64, tpu.core_type = #tpu.core_type<tc>, window_params = [{transform_indices = @transform_0, window_bounds = array<i64: 2, 8, 32>}, {transform_indices = @transform_1, window_bounds = array<i64: 1, 32, 64>}, {transform_indices = @transform_2, window_bounds = array<i64: 1, 1, 64>}, {transform_indices = @transform_3, window_bounds = array<i64: 1, 1, 64>}, {transform_indices = @transform_4, window_bounds = array<i64: 1, 1, 64>}, {transform_indices = @transform_5, window_bounds = array<i64: 1, 64, 64>}, {transform_indices = @transform_6, window_bounds = array<i64: 1, 1, 64>}, {transform_indices = @transform_7, window_bounds = array<i64: 1, 1, 64>}, {transform_indices = @transform_8, window_bounds = array<i64: 1, 1, 64>}, {transform_indices = @transform_9, window_bounds = array<i64: 1, 64, 32>}, {transform_indices = @transform_10, window_bounds = array<i64: 1, 1, 32>}, {transform_indices = @transform_11, window_bounds = array<i64: 1, 1, 32>}, {transform_indices = @transform_12, window_bounds = array<i64: 1, 1, 32>}, {transform_indices = @transform_13, window_bounds = array<i64: 1, 16, 8>}, {transform_indices = @transform_14, window_bounds = array<i64: 1, 16, 1>}, {transform_indices = @transform_15, window_bounds = array<i64: 1, 16, 1>}, {transform_indices = @transform_16, window_bounds = array<i64: 1, 16, 1>}, {transform_indices = @transform_17, window_bounds = array<i64: 1, 16, 16>}, {transform_indices = @transform_18, window_bounds = array<i64: 1, 16, 1>}, {transform_indices = @transform_19, window_bounds = array<i64: 1, 16, 1>}, {transform_indices = @transform_20, window_bounds = array<i64: 1, 16, 1>}, {transform_indices = @transform_21, window_bounds = array<i64: 1, 8, 16>}, {transform_indices = @transform_22, window_bounds = array<i64: 1, 8, 1>}, {transform_indices = @transform_23, window_bounds = array<i64: 1, 8, 1>}, {transform_indices = @transform_24, window_bounds = array<i64: 1, 8, 1>}, {transform_indices = @transform_25, window_bounds = array<i64: 2, 8, 32>}]} {
    %c0 = arith.constant 0 : index
    %c0_0 = arith.constant 0 : index
    %c0_1 = arith.constant 0 : index
    %0 = vector.load %arg3[%c0, %c0_0, %c0_1] : memref<1x32x64xbf16, #tpu.memory_space<vmem>>, vector<1x32x64xbf16>
    %1 = vector.shape_cast %0 : vector<1x32x64xbf16> to vector<32x64xbf16>
    %c0_2 = arith.constant 0 : index
    %c0_3 = arith.constant 0 : index
    %c0_4 = arith.constant 0 : index
    %2 = vector.load %arg4[%c0_2, %c0_3, %c0_4] : memref<1x1x64xf32, #tpu.memory_space<vmem>>, vector<1x1x64xf32>
    %3 = vector.shape_cast %2 : vector<1x1x64xf32> to vector<1x64xf32>
    %c0_5 = arith.constant 0 : index
    %c0_6 = arith.constant 0 : index
    %c0_7 = arith.constant 0 : index
    %4 = vector.load %arg5[%c0_5, %c0_6, %c0_7] : memref<1x1x64xf32, #tpu.memory_space<vmem>>, vector<1x1x64xf32>
    %5 = vector.shape_cast %4 : vector<1x1x64xf32> to vector<1x64xf32>
    %c0_8 = arith.constant 0 : index
    %c0_9 = arith.constant 0 : index
    %c0_10 = arith.constant 0 : index
    %6 = vector.load %arg6[%c0_8, %c0_9, %c0_10] : memref<1x1x64xf32, #tpu.memory_space<vmem>>, vector<1x1x64xf32>
    %7 = vector.shape_cast %6 : vector<1x1x64xf32> to vector<1x64xf32>
    %c0_11 = arith.constant 0 : index
    %c0_12 = arith.constant 0 : index
    %c0_13 = arith.constant 0 : index
    %8 = vector.load %arg7[%c0_11, %c0_12, %c0_13] : memref<1x64x64xbf16, #tpu.memory_space<vmem>>, vector<1x64x64xbf16>
    %9 = vector.shape_cast %8 : vector<1x64x64xbf16> to vector<64x64xbf16>
    %c0_14 = arith.constant 0 : index
    %c0_15 = arith.constant 0 : index
    %c0_16 = arith.constant 0 : index
    %10 = vector.load %arg8[%c0_14, %c0_15, %c0_16] : memref<1x1x64xf32, #tpu.memory_space<vmem>>, vector<1x1x64xf32>
    %11 = vector.shape_cast %10 : vector<1x1x64xf32> to vector<1x64xf32>
    %c0_17 = arith.constant 0 : index
    %c0_18 = arith.constant 0 : index
    %c0_19 = arith.constant 0 : index
    %12 = vector.load %arg9[%c0_17, %c0_18, %c0_19] : memref<1x1x64xf32, #tpu.memory_space<vmem>>, vector<1x1x64xf32>
    %13 = vector.shape_cast %12 : vector<1x1x64xf32> to vector<1x64xf32>
    %c0_20 = arith.constant 0 : index
    %c0_21 = arith.constant 0 : index
    %c0_22 = arith.constant 0 : index
    %14 = vector.load %arg10[%c0_20, %c0_21, %c0_22] : memref<1x1x64xf32, #tpu.memory_space<vmem>>, vector<1x1x64xf32>
    %15 = vector.shape_cast %14 : vector<1x1x64xf32> to vector<1x64xf32>
    %c0_23 = arith.constant 0 : index
    %c0_24 = arith.constant 0 : index
    %c0_25 = arith.constant 0 : index
    %16 = vector.load %arg11[%c0_23, %c0_24, %c0_25] : memref<1x64x32xbf16, #tpu.memory_space<vmem>>, vector<1x64x32xbf16>
    %17 = vector.shape_cast %16 : vector<1x64x32xbf16> to vector<64x32xbf16>
    %c0_26 = arith.constant 0 : index
    %c0_27 = arith.constant 0 : index
    %c0_28 = arith.constant 0 : index
    %18 = vector.load %arg12[%c0_26, %c0_27, %c0_28] : memref<1x1x32xf32, #tpu.memory_space<vmem>>, vector<1x1x32xf32>
    %19 = vector.shape_cast %18 : vector<1x1x32xf32> to vector<1x32xf32>
    %c0_29 = arith.constant 0 : index
    %c0_30 = arith.constant 0 : index
    %c0_31 = arith.constant 0 : index
    %20 = vector.load %arg13[%c0_29, %c0_30, %c0_31] : memref<1x1x32xf32, #tpu.memory_space<vmem>>, vector<1x1x32xf32>
    %21 = vector.shape_cast %20 : vector<1x1x32xf32> to vector<1x32xf32>
    %c0_32 = arith.constant 0 : index
    %c0_33 = arith.constant 0 : index
    %c0_34 = arith.constant 0 : index
    %22 = vector.load %arg14[%c0_32, %c0_33, %c0_34] : memref<1x1x32xf32, #tpu.memory_space<vmem>>, vector<1x1x32xf32>
    %23 = vector.shape_cast %22 : vector<1x1x32xf32> to vector<1x32xf32>
    %c0_35 = arith.constant 0 : index
    %c0_36 = arith.constant 0 : index
    %c0_37 = arith.constant 0 : index
    %24 = vector.load %arg15[%c0_35, %c0_36, %c0_37] : memref<1x16x8xbf16, #tpu.memory_space<vmem>>, vector<1x16x8xbf16>
    %25 = vector.shape_cast %24 : vector<1x16x8xbf16> to vector<16x8xbf16>
    %c0_38 = arith.constant 0 : index
    %c0_39 = arith.constant 0 : index
    %c0_40 = arith.constant 0 : index
    %26 = vector.load %arg16[%c0_38, %c0_39, %c0_40] : memref<1x16x1xf32, #tpu.memory_space<vmem>>, vector<1x16x1xf32>
    %27 = vector.shape_cast %26 : vector<1x16x1xf32> to vector<16x1xf32>
    %c0_41 = arith.constant 0 : index
    %c0_42 = arith.constant 0 : index
    %c0_43 = arith.constant 0 : index
    %28 = vector.load %arg17[%c0_41, %c0_42, %c0_43] : memref<1x16x1xf32, #tpu.memory_space<vmem>>, vector<1x16x1xf32>
    %29 = vector.shape_cast %28 : vector<1x16x1xf32> to vector<16x1xf32>
    %c0_44 = arith.constant 0 : index
    %c0_45 = arith.constant 0 : index
    %c0_46 = arith.constant 0 : index
    %30 = vector.load %arg18[%c0_44, %c0_45, %c0_46] : memref<1x16x1xf32, #tpu.memory_space<vmem>>, vector<1x16x1xf32>
    %31 = vector.shape_cast %30 : vector<1x16x1xf32> to vector<16x1xf32>
    %c0_47 = arith.constant 0 : index
    %c0_48 = arith.constant 0 : index
    %c0_49 = arith.constant 0 : index
    %32 = vector.load %arg19[%c0_47, %c0_48, %c0_49] : memref<1x16x16xbf16, #tpu.memory_space<vmem>>, vector<1x16x16xbf16>
    %33 = vector.shape_cast %32 : vector<1x16x16xbf16> to vector<16x16xbf16>
    %c0_50 = arith.constant 0 : index
    %c0_51 = arith.constant 0 : index
    %c0_52 = arith.constant 0 : index
    %34 = vector.load %arg20[%c0_50, %c0_51, %c0_52] : memref<1x16x1xf32, #tpu.memory_space<vmem>>, vector<1x16x1xf32>
    %35 = vector.shape_cast %34 : vector<1x16x1xf32> to vector<16x1xf32>
    %c0_53 = arith.constant 0 : index
    %c0_54 = arith.constant 0 : index
    %c0_55 = arith.constant 0 : index
    %36 = vector.load %arg21[%c0_53, %c0_54, %c0_55] : memref<1x16x1xf32, #tpu.memory_space<vmem>>, vector<1x16x1xf32>
    %37 = vector.shape_cast %36 : vector<1x16x1xf32> to vector<16x1xf32>
    %c0_56 = arith.constant 0 : index
    %c0_57 = arith.constant 0 : index
    %c0_58 = arith.constant 0 : index
    %38 = vector.load %arg22[%c0_56, %c0_57, %c0_58] : memref<1x16x1xf32, #tpu.memory_space<vmem>>, vector<1x16x1xf32>
    %39 = vector.shape_cast %38 : vector<1x16x1xf32> to vector<16x1xf32>
    %c0_59 = arith.constant 0 : index
    %c0_60 = arith.constant 0 : index
    %c0_61 = arith.constant 0 : index
    %40 = vector.load %arg23[%c0_59, %c0_60, %c0_61] : memref<1x8x16xbf16, #tpu.memory_space<vmem>>, vector<1x8x16xbf16>
    %41 = vector.shape_cast %40 : vector<1x8x16xbf16> to vector<8x16xbf16>
    %c0_62 = arith.constant 0 : index
    %c0_63 = arith.constant 0 : index
    %c0_64 = arith.constant 0 : index
    %42 = vector.load %arg24[%c0_62, %c0_63, %c0_64] : memref<1x8x1xf32, #tpu.memory_space<vmem>>, vector<1x8x1xf32>
    %43 = vector.shape_cast %42 : vector<1x8x1xf32> to vector<8x1xf32>
    %c0_65 = arith.constant 0 : index
    %c0_66 = arith.constant 0 : index
    %c0_67 = arith.constant 0 : index
    %44 = vector.load %arg25[%c0_65, %c0_66, %c0_67] : memref<1x8x1xf32, #tpu.memory_space<vmem>>, vector<1x8x1xf32>
    %45 = vector.shape_cast %44 : vector<1x8x1xf32> to vector<8x1xf32>
    %c0_68 = arith.constant 0 : index
    %c0_69 = arith.constant 0 : index
    %c0_70 = arith.constant 0 : index
    %46 = vector.load %arg26[%c0_68, %c0_69, %c0_70] : memref<1x8x1xf32, #tpu.memory_space<vmem>>, vector<1x8x1xf32>
    %47 = vector.shape_cast %46 : vector<1x8x1xf32> to vector<8x1xf32>
    %c0_i32 = arith.constant 0 : i32
    %48 = arith.cmpi eq, %arg1, %c0_i32 : i32
    %49 = arith.extui %48 : i1 to i32
    %c0_i32_71 = arith.constant 0 : i32
    %50 = arith.cmpi ne, %49, %c0_i32_71 : i32
    scf.if %50 {
      %c0_237 = arith.constant 0 : index
      %c0_238 = arith.constant 0 : index
      %c0_239 = arith.constant 0 : index
      %561 = vector.load %arg2[%c0_237, %c0_238, %c0_239] : memref<2x8x32xf32, #tpu.memory_space<vmem>>, vector<2x8x32xf32>
      %c0_240 = arith.constant 0 : index
      %c0_241 = arith.constant 0 : index
      %c0_242 = arith.constant 0 : index
      %562 = vector.load %arg28[%c0_240, %c0_241, %c0_242] : memref<2x8x32xf32, #tpu.memory_space<vmem>>, vector<2x8x32xf32>
      tpu.vector_store %arg28[%c0_240, %c0_241, %c0_242], %561 {strides = array<i32>} : memref<2x8x32xf32, #tpu.memory_space<vmem>>, vector<2x8x32xf32>,
    } else {
    }
    %c0_72 = arith.constant 0 : index
    %c0_73 = arith.constant 0 : index
    %c0_74 = arith.constant 0 : index
    %51 = vector.load %arg28[%c0_72, %c0_73, %c0_74] : memref<2x8x32xf32, #tpu.memory_space<vmem>>, vector<2x8x32xf32>
    %52 = vector.shape_cast %51 : vector<2x8x32xf32> to vector<16x32xf32>
    %53 = arith.truncf %52 : vector<16x32xf32> to vector<16x32xbf16>
    %cst = arith.constant dense<0.000000e+00> : vector<16x64xf32>
    %54 = tpu.matmul %53, %1, %cst {dimension_numbers = #tpu.dot_dimension_numbers<[1], [0], [0], [1], [0, 0, 1, 1], [], []>} : vector<16x32xbf16>, vector<32x64xbf16>, vector<16x64xf32> -> vector<16x64xf32>
    %55 = vector.broadcast %3 : vector<1x64xf32> to vector<16x64xf32>
    %56 = arith.addf %54, %55 : vector<16x64xf32>
    %cst_75 = arith.constant dense<0.000000e+00> : vector<16xf32>
    %57 = vector.multi_reduction <add>, %56, %cst_75 [1] : vector<16x64xf32> to vector<16xf32>
    %58 = vector.shape_cast %57 : vector<16xf32> to vector<16x1xf32>
    %cst_76 = arith.constant 6.400000e+01 : f32
    %59 = vector.broadcast %cst_76 : f32 to vector<16x1xf32>
    %60 = arith.divf %58, %59 : vector<16x1xf32>
    %61 = vector.broadcast %60 : vector<16x1xf32> to vector<16x64xf32>
    %62 = arith.subf %56, %61 : vector<16x64xf32>
    %63 = arith.mulf %62, %62 : vector<16x64xf32>
    %cst_77 = arith.constant dense<0.000000e+00> : vector<16xf32>
    %64 = vector.multi_reduction <add>, %63, %cst_77 [1] : vector<16x64xf32> to vector<16xf32>
    %65 = vector.shape_cast %64 : vector<16xf32> to vector<16x1xf32>
    %cst_78 = arith.constant 6.400000e+01 : f32
    %66 = vector.broadcast %cst_78 : f32 to vector<16x1xf32>
    %67 = arith.divf %65, %66 : vector<16x1xf32>
    %cst_79 = arith.constant 9.99999974E-6 : f32
    %68 = vector.broadcast %cst_79 : f32 to vector<16x1xf32>
    %69 = arith.addf %67, %68 : vector<16x1xf32>
    %70 = math.rsqrt %69 : vector<16x1xf32>
    %71 = vector.broadcast %70 : vector<16x1xf32> to vector<16x64xf32>
    %72 = arith.mulf %62, %71 : vector<16x64xf32>
    %73 = vector.broadcast %5 : vector<1x64xf32> to vector<16x64xf32>
    %74 = arith.mulf %72, %73 : vector<16x64xf32>
    %75 = vector.broadcast %7 : vector<1x64xf32> to vector<16x64xf32>
    %76 = arith.addf %74, %75 : vector<16x64xf32>
    %cst_80 = arith.constant 5.000000e-01 : f32
    %77 = vector.broadcast %cst_80 : f32 to vector<16x64xf32>
    %78 = arith.mulf %77, %76 : vector<16x64xf32>
    %cst_81 = arith.constant 0.707106769 : f32
    %79 = vector.broadcast %cst_81 : f32 to vector<16x64xf32>
    %80 = arith.mulf %76, %79 : vector<16x64xf32>
    %81 = math.absf %80 : vector<16x64xf32>
    %cst_82 = arith.constant 0.327591091 : f32
    %82 = vector.broadcast %cst_82 : f32 to vector<16x64xf32>
    %83 = arith.mulf %82, %81 : vector<16x64xf32>
    %cst_83 = arith.constant 1.000000e+00 : f32
    %84 = vector.broadcast %cst_83 : f32 to vector<16x64xf32>
    %85 = arith.addf %84, %83 : vector<16x64xf32>
    %cst_84 = arith.constant 1.000000e+00 : f32
    %86 = vector.broadcast %cst_84 : f32 to vector<16x64xf32>
    %87 = arith.divf %86, %85 : vector<16x64xf32>
    %cst_85 = arith.constant 1.06140542 : f32
    %88 = vector.broadcast %cst_85 : f32 to vector<16x64xf32>
    %89 = arith.mulf %88, %87 : vector<16x64xf32>
    %cst_86 = arith.constant -1.45315206 : f32
    %90 = vector.broadcast %cst_86 : f32 to vector<16x64xf32>
    %91 = arith.addf %89, %90 : vector<16x64xf32>
    %92 = arith.mulf %91, %87 : vector<16x64xf32>
    %cst_87 = arith.constant 1.42141378 : f32
    %93 = vector.broadcast %cst_87 : f32 to vector<16x64xf32>
    %94 = arith.addf %92, %93 : vector<16x64xf32>
    %95 = arith.mulf %94, %87 : vector<16x64xf32>
    %cst_88 = arith.constant -0.284496725 : f32
    %96 = vector.broadcast %cst_88 : f32 to vector<16x64xf32>
    %97 = arith.addf %95, %96 : vector<16x64xf32>
    %98 = arith.mulf %97, %87 : vector<16x64xf32>
    %cst_89 = arith.constant 0.254829586 : f32
    %99 = vector.broadcast %cst_89 : f32 to vector<16x64xf32>
    %100 = arith.addf %98, %99 : vector<16x64xf32>
    %101 = arith.mulf %100, %87 : vector<16x64xf32>
    %cst_90 = arith.constant 0.000000e+00 : f32
    %102 = vector.broadcast %cst_90 : f32 to vector<16x64xf32>
    %103 = arith.subf %102, %81 : vector<16x64xf32>
    %104 = arith.mulf %103, %81 : vector<16x64xf32>
    %105 = math.exp %104 : vector<16x64xf32>
    %106 = arith.mulf %101, %105 : vector<16x64xf32>
    %cst_91 = arith.constant 1.000000e+00 : f32
    %107 = vector.broadcast %cst_91 : f32 to vector<16x64xf32>
    %108 = arith.subf %107, %106 : vector<16x64xf32>
    %cst_92 = arith.constant 0.000000e+00 : f32
    %109 = vector.broadcast %cst_92 : f32 to vector<16x64xf32>
    %110 = arith.cmpf oge, %80, %109 : vector<16x64xf32>
    %cst_93 = arith.constant 0.000000e+00 : f32
    %111 = vector.broadcast %cst_93 : f32 to vector<16x64xf32>
    %112 = arith.subf %111, %108 : vector<16x64xf32>
    %113 = arith.select %110, %108, %112 : vector<16x64xi1>, vector<16x64xf32>
    %cst_94 = arith.constant 1.000000e+00 : f32
    %114 = vector.broadcast %cst_94 : f32 to vector<16x64xf32>
    %115 = arith.addf %114, %113 : vector<16x64xf32>
    %116 = arith.mulf %78, %115 : vector<16x64xf32>
    %117 = arith.truncf %116 : vector<16x64xf32> to vector<16x64xbf16>
    %cst_95 = arith.constant dense<0.000000e+00> : vector<16x64xf32>
    %118 = tpu.matmul %117, %9, %cst_95 {dimension_numbers = #tpu.dot_dimension_numbers<[1], [0], [0], [1], [0, 0, 1, 1], [], []>} : vector<16x64xbf16>, vector<64x64xbf16>, vector<16x64xf32> -> vector<16x64xf32>
    %119 = vector.broadcast %11 : vector<1x64xf32> to vector<16x64xf32>
    %120 = arith.addf %118, %119 : vector<16x64xf32>
    %cst_96 = arith.constant dense<0.000000e+00> : vector<16xf32>
    %121 = vector.multi_reduction <add>, %120, %cst_96 [1] : vector<16x64xf32> to vector<16xf32>
    %122 = vector.shape_cast %121 : vector<16xf32> to vector<16x1xf32>
    %cst_97 = arith.constant 6.400000e+01 : f32
    %123 = vector.broadcast %cst_97 : f32 to vector<16x1xf32>
    %124 = arith.divf %122, %123 : vector<16x1xf32>
    %125 = vector.broadcast %124 : vector<16x1xf32> to vector<16x64xf32>
    %126 = arith.subf %120, %125 : vector<16x64xf32>
    %127 = arith.mulf %126, %126 : vector<16x64xf32>
    %cst_98 = arith.constant dense<0.000000e+00> : vector<16xf32>
    %128 = vector.multi_reduction <add>, %127, %cst_98 [1] : vector<16x64xf32> to vector<16xf32>
    %129 = vector.shape_cast %128 : vector<16xf32> to vector<16x1xf32>
    %cst_99 = arith.constant 6.400000e+01 : f32
    %130 = vector.broadcast %cst_99 : f32 to vector<16x1xf32>
    %131 = arith.divf %129, %130 : vector<16x1xf32>
    %cst_100 = arith.constant 9.99999974E-6 : f32
    %132 = vector.broadcast %cst_100 : f32 to vector<16x1xf32>
    %133 = arith.addf %131, %132 : vector<16x1xf32>
    %134 = math.rsqrt %133 : vector<16x1xf32>
    %135 = vector.broadcast %134 : vector<16x1xf32> to vector<16x64xf32>
    %136 = arith.mulf %126, %135 : vector<16x64xf32>
    %137 = vector.broadcast %13 : vector<1x64xf32> to vector<16x64xf32>
    %138 = arith.mulf %136, %137 : vector<16x64xf32>
    %139 = vector.broadcast %15 : vector<1x64xf32> to vector<16x64xf32>
    %140 = arith.addf %138, %139 : vector<16x64xf32>
    %cst_101 = arith.constant 5.000000e-01 : f32
    %141 = vector.broadcast %cst_101 : f32 to vector<16x64xf32>
    %142 = arith.mulf %141, %140 : vector<16x64xf32>
    %cst_102 = arith.constant 0.707106769 : f32
    %143 = vector.broadcast %cst_102 : f32 to vector<16x64xf32>
    %144 = arith.mulf %140, %143 : vector<16x64xf32>
    %145 = math.absf %144 : vector<16x64xf32>
    %cst_103 = arith.constant 0.327591091 : f32
    %146 = vector.broadcast %cst_103 : f32 to vector<16x64xf32>
    %147 = arith.mulf %146, %145 : vector<16x64xf32>
    %cst_104 = arith.constant 1.000000e+00 : f32
    %148 = vector.broadcast %cst_104 : f32 to vector<16x64xf32>
    %149 = arith.addf %148, %147 : vector<16x64xf32>
    %cst_105 = arith.constant 1.000000e+00 : f32
    %150 = vector.broadcast %cst_105 : f32 to vector<16x64xf32>
    %151 = arith.divf %150, %149 : vector<16x64xf32>
    %cst_106 = arith.constant 1.06140542 : f32
    %152 = vector.broadcast %cst_106 : f32 to vector<16x64xf32>
    %153 = arith.mulf %152, %151 : vector<16x64xf32>
    %cst_107 = arith.constant -1.45315206 : f32
    %154 = vector.broadcast %cst_107 : f32 to vector<16x64xf32>
    %155 = arith.addf %153, %154 : vector<16x64xf32>
    %156 = arith.mulf %155, %151 : vector<16x64xf32>
    %cst_108 = arith.constant 1.42141378 : f32
    %157 = vector.broadcast %cst_108 : f32 to vector<16x64xf32>
    %158 = arith.addf %156, %157 : vector<16x64xf32>
    %159 = arith.mulf %158, %151 : vector<16x64xf32>
    %cst_109 = arith.constant -0.284496725 : f32
    %160 = vector.broadcast %cst_109 : f32 to vector<16x64xf32>
    %161 = arith.addf %159, %160 : vector<16x64xf32>
    %162 = arith.mulf %161, %151 : vector<16x64xf32>
    %cst_110 = arith.constant 0.254829586 : f32
    %163 = vector.broadcast %cst_110 : f32 to vector<16x64xf32>
    %164 = arith.addf %162, %163 : vector<16x64xf32>
    %165 = arith.mulf %164, %151 : vector<16x64xf32>
    %cst_111 = arith.constant 0.000000e+00 : f32
    %166 = vector.broadcast %cst_111 : f32 to vector<16x64xf32>
    %167 = arith.subf %166, %145 : vector<16x64xf32>
    %168 = arith.mulf %167, %145 : vector<16x64xf32>
    %169 = math.exp %168 : vector<16x64xf32>
    %170 = arith.mulf %165, %169 : vector<16x64xf32>
    %cst_112 = arith.constant 1.000000e+00 : f32
    %171 = vector.broadcast %cst_112 : f32 to vector<16x64xf32>
    %172 = arith.subf %171, %170 : vector<16x64xf32>
    %cst_113 = arith.constant 0.000000e+00 : f32
    %173 = vector.broadcast %cst_113 : f32 to vector<16x64xf32>
    %174 = arith.cmpf oge, %144, %173 : vector<16x64xf32>
    %cst_114 = arith.constant 0.000000e+00 : f32
    %175 = vector.broadcast %cst_114 : f32 to vector<16x64xf32>
    %176 = arith.subf %175, %172 : vector<16x64xf32>
    %177 = arith.select %174, %172, %176 : vector<16x64xi1>, vector<16x64xf32>
    %cst_115 = arith.constant 1.000000e+00 : f32
    %178 = vector.broadcast %cst_115 : f32 to vector<16x64xf32>
    %179 = arith.addf %178, %177 : vector<16x64xf32>
    %180 = arith.mulf %142, %179 : vector<16x64xf32>
    %181 = arith.truncf %180 : vector<16x64xf32> to vector<16x64xbf16>
    %cst_116 = arith.constant dense<0.000000e+00> : vector<16x32xf32>
    %182 = tpu.matmul %181, %17, %cst_116 {dimension_numbers = #tpu.dot_dimension_numbers<[1], [0], [0], [1], [0, 0, 1, 1], [], []>} : vector<16x64xbf16>, vector<64x32xbf16>, vector<16x32xf32> -> vector<16x32xf32>
    %183 = vector.broadcast %19 : vector<1x32xf32> to vector<16x32xf32>
    %184 = arith.addf %182, %183 : vector<16x32xf32>
    %cst_117 = arith.constant dense<0.000000e+00> : vector<16xf32>
    %185 = vector.multi_reduction <add>, %184, %cst_117 [1] : vector<16x32xf32> to vector<16xf32>
    %186 = vector.shape_cast %185 : vector<16xf32> to vector<16x1xf32>
    %cst_118 = arith.constant 3.200000e+01 : f32
    %187 = vector.broadcast %cst_118 : f32 to vector<16x1xf32>
    %188 = arith.divf %186, %187 : vector<16x1xf32>
    %189 = vector.broadcast %188 : vector<16x1xf32> to vector<16x32xf32>
    %190 = arith.subf %184, %189 : vector<16x32xf32>
    %191 = arith.mulf %190, %190 : vector<16x32xf32>
    %cst_119 = arith.constant dense<0.000000e+00> : vector<16xf32>
    %192 = vector.multi_reduction <add>, %191, %cst_119 [1] : vector<16x32xf32> to vector<16xf32>
    %193 = vector.shape_cast %192 : vector<16xf32> to vector<16x1xf32>
    %cst_120 = arith.constant 3.200000e+01 : f32
    %194 = vector.broadcast %cst_120 : f32 to vector<16x1xf32>
    %195 = arith.divf %193, %194 : vector<16x1xf32>
    %cst_121 = arith.constant 9.99999974E-6 : f32
    %196 = vector.broadcast %cst_121 : f32 to vector<16x1xf32>
    %197 = arith.addf %195, %196 : vector<16x1xf32>
    %198 = math.rsqrt %197 : vector<16x1xf32>
    %199 = vector.broadcast %198 : vector<16x1xf32> to vector<16x32xf32>
    %200 = arith.mulf %190, %199 : vector<16x32xf32>
    %201 = vector.broadcast %21 : vector<1x32xf32> to vector<16x32xf32>
    %202 = arith.mulf %200, %201 : vector<16x32xf32>
    %203 = vector.broadcast %23 : vector<1x32xf32> to vector<16x32xf32>
    %204 = arith.addf %202, %203 : vector<16x32xf32>
    %205 = arith.addf %204, %52 : vector<16x32xf32>
    %206 = vector.extract_strided_slice %205 {offsets = [0, 0], sizes = [8, 32], strides = [1, 1]} : vector<16x32xf32> to vector<8x32xf32>
    %207 = arith.truncf %206 : vector<8x32xf32> to vector<8x32xbf16>
    %cst_122 = arith.constant dense<0.000000e+00> : vector<16x32xf32>
    %208 = tpu.matmul %25, %207, %cst_122 {dimension_numbers = #tpu.dot_dimension_numbers<[1], [0], [0], [1], [0, 0, 1, 1], [], []>} : vector<16x8xbf16>, vector<8x32xbf16>, vector<16x32xf32> -> vector<16x32xf32>
    %209 = vector.broadcast %27 : vector<16x1xf32> to vector<16x32xf32>
    %210 = arith.addf %208, %209 : vector<16x32xf32>
    %cst_123 = arith.constant dense<0.000000e+00> : vector<32xf32>
    %211 = vector.multi_reduction <add>, %210, %cst_123 [0] : vector<16x32xf32> to vector<32xf32>
    %212 = vector.shape_cast %211 : vector<32xf32> to vector<1x32xf32>
    %cst_124 = arith.constant 1.600000e+01 : f32
    %213 = vector.broadcast %cst_124 : f32 to vector<1x32xf32>
    %214 = arith.divf %212, %213 : vector<1x32xf32>
    %215 = vector.broadcast %214 : vector<1x32xf32> to vector<16x32xf32>
    %216 = arith.subf %210, %215 : vector<16x32xf32>
    %217 = arith.mulf %216, %216 : vector<16x32xf32>
    %cst_125 = arith.constant dense<0.000000e+00> : vector<32xf32>
    %218 = vector.multi_reduction <add>, %217, %cst_125 [0] : vector<16x32xf32> to vector<32xf32>
    %219 = vector.shape_cast %218 : vector<32xf32> to vector<1x32xf32>
    %cst_126 = arith.constant 1.600000e+01 : f32
    %220 = vector.broadcast %cst_126 : f32 to vector<1x32xf32>
    %221 = arith.divf %219, %220 : vector<1x32xf32>
    %cst_127 = arith.constant 9.99999974E-6 : f32
    %222 = vector.broadcast %cst_127 : f32 to vector<1x32xf32>
    %223 = arith.addf %221, %222 : vector<1x32xf32>
    %224 = math.rsqrt %223 : vector<1x32xf32>
    %225 = vector.broadcast %224 : vector<1x32xf32> to vector<16x32xf32>
    %226 = arith.mulf %216, %225 : vector<16x32xf32>
    %227 = vector.broadcast %29 : vector<16x1xf32> to vector<16x32xf32>
    %228 = arith.mulf %226, %227 : vector<16x32xf32>
    %229 = vector.broadcast %31 : vector<16x1xf32> to vector<16x32xf32>
    %230 = arith.addf %228, %229 : vector<16x32xf32>
    %cst_128 = arith.constant 5.000000e-01 : f32
    %231 = vector.broadcast %cst_128 : f32 to vector<16x32xf32>
    %232 = arith.mulf %231, %230 : vector<16x32xf32>
    %cst_129 = arith.constant 0.707106769 : f32
    %233 = vector.broadcast %cst_129 : f32 to vector<16x32xf32>
    %234 = arith.mulf %230, %233 : vector<16x32xf32>
    %235 = math.absf %234 : vector<16x32xf32>
    %cst_130 = arith.constant 0.327591091 : f32
    %236 = vector.broadcast %cst_130 : f32 to vector<16x32xf32>
    %237 = arith.mulf %236, %235 : vector<16x32xf32>
    %cst_131 = arith.constant 1.000000e+00 : f32
    %238 = vector.broadcast %cst_131 : f32 to vector<16x32xf32>
    %239 = arith.addf %238, %237 : vector<16x32xf32>
    %cst_132 = arith.constant 1.000000e+00 : f32
    %240 = vector.broadcast %cst_132 : f32 to vector<16x32xf32>
    %241 = arith.divf %240, %239 : vector<16x32xf32>
    %cst_133 = arith.constant 1.06140542 : f32
    %242 = vector.broadcast %cst_133 : f32 to vector<16x32xf32>
    %243 = arith.mulf %242, %241 : vector<16x32xf32>
    %cst_134 = arith.constant -1.45315206 : f32
    %244 = vector.broadcast %cst_134 : f32 to vector<16x32xf32>
    %245 = arith.addf %243, %244 : vector<16x32xf32>
    %246 = arith.mulf %245, %241 : vector<16x32xf32>
    %cst_135 = arith.constant 1.42141378 : f32
    %247 = vector.broadcast %cst_135 : f32 to vector<16x32xf32>
    %248 = arith.addf %246, %247 : vector<16x32xf32>
    %249 = arith.mulf %248, %241 : vector<16x32xf32>
    %cst_136 = arith.constant -0.284496725 : f32
    %250 = vector.broadcast %cst_136 : f32 to vector<16x32xf32>
    %251 = arith.addf %249, %250 : vector<16x32xf32>
    %252 = arith.mulf %251, %241 : vector<16x32xf32>
    %cst_137 = arith.constant 0.254829586 : f32
    %253 = vector.broadcast %cst_137 : f32 to vector<16x32xf32>
    %254 = arith.addf %252, %253 : vector<16x32xf32>
    %255 = arith.mulf %254, %241 : vector<16x32xf32>
    %cst_138 = arith.constant 0.000000e+00 : f32
    %256 = vector.broadcast %cst_138 : f32 to vector<16x32xf32>
    %257 = arith.subf %256, %235 : vector<16x32xf32>
    %258 = arith.mulf %257, %235 : vector<16x32xf32>
    %259 = math.exp %258 : vector<16x32xf32>
    %260 = arith.mulf %255, %259 : vector<16x32xf32>
    %cst_139 = arith.constant 1.000000e+00 : f32
    %261 = vector.broadcast %cst_139 : f32 to vector<16x32xf32>
    %262 = arith.subf %261, %260 : vector<16x32xf32>
    %cst_140 = arith.constant 0.000000e+00 : f32
    %263 = vector.broadcast %cst_140 : f32 to vector<16x32xf32>
    %264 = arith.cmpf oge, %234, %263 : vector<16x32xf32>
    %cst_141 = arith.constant 0.000000e+00 : f32
    %265 = vector.broadcast %cst_141 : f32 to vector<16x32xf32>
    %266 = arith.subf %265, %262 : vector<16x32xf32>
    %267 = arith.select %264, %262, %266 : vector<16x32xi1>, vector<16x32xf32>
    %cst_142 = arith.constant 1.000000e+00 : f32
    %268 = vector.broadcast %cst_142 : f32 to vector<16x32xf32>
    %269 = arith.addf %268, %267 : vector<16x32xf32>
    %270 = arith.mulf %232, %269 : vector<16x32xf32>
    %271 = arith.truncf %270 : vector<16x32xf32> to vector<16x32xbf16>
    %cst_143 = arith.constant dense<0.000000e+00> : vector<16x32xf32>
    %272 = tpu.matmul %33, %271, %cst_143 {dimension_numbers = #tpu.dot_dimension_numbers<[1], [0], [0], [1], [0, 0, 1, 1], [], []>} : vector<16x16xbf16>, vector<16x32xbf16>, vector<16x32xf32> -> vector<16x32xf32>
    %273 = vector.broadcast %35 : vector<16x1xf32> to vector<16x32xf32>
    %274 = arith.addf %272, %273 : vector<16x32xf32>
    %cst_144 = arith.constant dense<0.000000e+00> : vector<32xf32>
    %275 = vector.multi_reduction <add>, %274, %cst_144 [0] : vector<16x32xf32> to vector<32xf32>
    %276 = vector.shape_cast %275 : vector<32xf32> to vector<1x32xf32>
    %cst_145 = arith.constant 1.600000e+01 : f32
    %277 = vector.broadcast %cst_145 : f32 to vector<1x32xf32>
    %278 = arith.divf %276, %277 : vector<1x32xf32>
    %279 = vector.broadcast %278 : vector<1x32xf32> to vector<16x32xf32>
    %280 = arith.subf %274, %279 : vector<16x32xf32>
    %281 = arith.mulf %280, %280 : vector<16x32xf32>
    %cst_146 = arith.constant dense<0.000000e+00> : vector<32xf32>
    %282 = vector.multi_reduction <add>, %281, %cst_146 [0] : vector<16x32xf32> to vector<32xf32>
    %283 = vector.shape_cast %282 : vector<32xf32> to vector<1x32xf32>
    %cst_147 = arith.constant 1.600000e+01 : f32
    %284 = vector.broadcast %cst_147 : f32 to vector<1x32xf32>
    %285 = arith.divf %283, %284 : vector<1x32xf32>
    %cst_148 = arith.constant 9.99999974E-6 : f32
    %286 = vector.broadcast %cst_148 : f32 to vector<1x32xf32>
    %287 = arith.addf %285, %286 : vector<1x32xf32>
    %288 = math.rsqrt %287 : vector<1x32xf32>
    %289 = vector.broadcast %288 : vector<1x32xf32> to vector<16x32xf32>
    %290 = arith.mulf %280, %289 : vector<16x32xf32>
    %291 = vector.broadcast %37 : vector<16x1xf32> to vector<16x32xf32>
    %292 = arith.mulf %290, %291 : vector<16x32xf32>
    %293 = vector.broadcast %39 : vector<16x1xf32> to vector<16x32xf32>
    %294 = arith.addf %292, %293 : vector<16x32xf32>
    %cst_149 = arith.constant 5.000000e-01 : f32
    %295 = vector.broadcast %cst_149 : f32 to vector<16x32xf32>
    %296 = arith.mulf %295, %294 : vector<16x32xf32>
    %cst_150 = arith.constant 0.707106769 : f32
    %297 = vector.broadcast %cst_150 : f32 to vector<16x32xf32>
    %298 = arith.mulf %294, %297 : vector<16x32xf32>
    %299 = math.absf %298 : vector<16x32xf32>
    %cst_151 = arith.constant 0.327591091 : f32
    %300 = vector.broadcast %cst_151 : f32 to vector<16x32xf32>
    %301 = arith.mulf %300, %299 : vector<16x32xf32>
    %cst_152 = arith.constant 1.000000e+00 : f32
    %302 = vector.broadcast %cst_152 : f32 to vector<16x32xf32>
    %303 = arith.addf %302, %301 : vector<16x32xf32>
    %cst_153 = arith.constant 1.000000e+00 : f32
    %304 = vector.broadcast %cst_153 : f32 to vector<16x32xf32>
    %305 = arith.divf %304, %303 : vector<16x32xf32>
    %cst_154 = arith.constant 1.06140542 : f32
    %306 = vector.broadcast %cst_154 : f32 to vector<16x32xf32>
    %307 = arith.mulf %306, %305 : vector<16x32xf32>
    %cst_155 = arith.constant -1.45315206 : f32
    %308 = vector.broadcast %cst_155 : f32 to vector<16x32xf32>
    %309 = arith.addf %307, %308 : vector<16x32xf32>
    %310 = arith.mulf %309, %305 : vector<16x32xf32>
    %cst_156 = arith.constant 1.42141378 : f32
    %311 = vector.broadcast %cst_156 : f32 to vector<16x32xf32>
    %312 = arith.addf %310, %311 : vector<16x32xf32>
    %313 = arith.mulf %312, %305 : vector<16x32xf32>
    %cst_157 = arith.constant -0.284496725 : f32
    %314 = vector.broadcast %cst_157 : f32 to vector<16x32xf32>
    %315 = arith.addf %313, %314 : vector<16x32xf32>
    %316 = arith.mulf %315, %305 : vector<16x32xf32>
    %cst_158 = arith.constant 0.254829586 : f32
    %317 = vector.broadcast %cst_158 : f32 to vector<16x32xf32>
    %318 = arith.addf %316, %317 : vector<16x32xf32>
    %319 = arith.mulf %318, %305 : vector<16x32xf32>
    %cst_159 = arith.constant 0.000000e+00 : f32
    %320 = vector.broadcast %cst_159 : f32 to vector<16x32xf32>
    %321 = arith.subf %320, %299 : vector<16x32xf32>
    %322 = arith.mulf %321, %299 : vector<16x32xf32>
    %323 = math.exp %322 : vector<16x32xf32>
    %324 = arith.mulf %319, %323 : vector<16x32xf32>
    %cst_160 = arith.constant 1.000000e+00 : f32
    %325 = vector.broadcast %cst_160 : f32 to vector<16x32xf32>
    %326 = arith.subf %325, %324 : vector<16x32xf32>
    %cst_161 = arith.constant 0.000000e+00 : f32
    %327 = vector.broadcast %cst_161 : f32 to vector<16x32xf32>
    %328 = arith.cmpf oge, %298, %327 : vector<16x32xf32>
    %cst_162 = arith.constant 0.000000e+00 : f32
    %329 = vector.broadcast %cst_162 : f32 to vector<16x32xf32>
    %330 = arith.subf %329, %326 : vector<16x32xf32>
    %331 = arith.select %328, %326, %330 : vector<16x32xi1>, vector<16x32xf32>
    %cst_163 = arith.constant 1.000000e+00 : f32
    %332 = vector.broadcast %cst_163 : f32 to vector<16x32xf32>
    %333 = arith.addf %332, %331 : vector<16x32xf32>
    %334 = arith.mulf %296, %333 : vector<16x32xf32>
    %335 = arith.truncf %334 : vector<16x32xf32> to vector<16x32xbf16>
    %cst_164 = arith.constant dense<0.000000e+00> : vector<8x32xf32>
    %336 = tpu.matmul %41, %335, %cst_164 {dimension_numbers = #tpu.dot_dimension_numbers<[1], [0], [0], [1], [0, 0, 1, 1], [], []>} : vector<8x16xbf16>, vector<16x32xbf16>, vector<8x32xf32> -> vector<8x32xf32>
    %337 = vector.broadcast %43 : vector<8x1xf32> to vector<8x32xf32>
    %338 = arith.addf %336, %337 : vector<8x32xf32>
    %cst_165 = arith.constant dense<0.000000e+00> : vector<32xf32>
    %339 = vector.multi_reduction <add>, %338, %cst_165 [0] : vector<8x32xf32> to vector<32xf32>
    %340 = vector.shape_cast %339 : vector<32xf32> to vector<1x32xf32>
    %cst_166 = arith.constant 8.000000e+00 : f32
    %341 = vector.broadcast %cst_166 : f32 to vector<1x32xf32>
    %342 = arith.divf %340, %341 : vector<1x32xf32>
    %343 = vector.broadcast %342 : vector<1x32xf32> to vector<8x32xf32>
    %344 = arith.subf %338, %343 : vector<8x32xf32>
    %345 = arith.mulf %344, %344 : vector<8x32xf32>
    %cst_167 = arith.constant dense<0.000000e+00> : vector<32xf32>
    %346 = vector.multi_reduction <add>, %345, %cst_167 [0] : vector<8x32xf32> to vector<32xf32>
    %347 = vector.shape_cast %346 : vector<32xf32> to vector<1x32xf32>
    %cst_168 = arith.constant 8.000000e+00 : f32
    %348 = vector.broadcast %cst_168 : f32 to vector<1x32xf32>
    %349 = arith.divf %347, %348 : vector<1x32xf32>
    %cst_169 = arith.constant 9.99999974E-6 : f32
    %350 = vector.broadcast %cst_169 : f32 to vector<1x32xf32>
    %351 = arith.addf %349, %350 : vector<1x32xf32>
    %352 = math.rsqrt %351 : vector<1x32xf32>
    %353 = vector.broadcast %352 : vector<1x32xf32> to vector<8x32xf32>
    %354 = arith.mulf %344, %353 : vector<8x32xf32>
    %355 = vector.broadcast %45 : vector<8x1xf32> to vector<8x32xf32>
    %356 = arith.mulf %354, %355 : vector<8x32xf32>
    %357 = vector.broadcast %47 : vector<8x1xf32> to vector<8x32xf32>
    %358 = arith.addf %356, %357 : vector<8x32xf32>
    %359 = arith.addf %358, %206 : vector<8x32xf32>
    %360 = vector.extract_strided_slice %205 {offsets = [8, 0], sizes = [8, 32], strides = [1, 1]} : vector<16x32xf32> to vector<8x32xf32>
    %361 = arith.truncf %360 : vector<8x32xf32> to vector<8x32xbf16>
    %cst_170 = arith.constant dense<0.000000e+00> : vector<16x32xf32>
    %362 = tpu.matmul %25, %361, %cst_170 {dimension_numbers = #tpu.dot_dimension_numbers<[1], [0], [0], [1], [0, 0, 1, 1], [], []>} : vector<16x8xbf16>, vector<8x32xbf16>, vector<16x32xf32> -> vector<16x32xf32>
    %363 = vector.broadcast %27 : vector<16x1xf32> to vector<16x32xf32>
    %364 = arith.addf %362, %363 : vector<16x32xf32>
    %cst_171 = arith.constant dense<0.000000e+00> : vector<32xf32>
    %365 = vector.multi_reduction <add>, %364, %cst_171 [0] : vector<16x32xf32> to vector<32xf32>
    %366 = vector.shape_cast %365 : vector<32xf32> to vector<1x32xf32>
    %cst_172 = arith.constant 1.600000e+01 : f32
    %367 = vector.broadcast %cst_172 : f32 to vector<1x32xf32>
    %368 = arith.divf %366, %367 : vector<1x32xf32>
    %369 = vector.broadcast %368 : vector<1x32xf32> to vector<16x32xf32>
    %370 = arith.subf %364, %369 : vector<16x32xf32>
    %371 = arith.mulf %370, %370 : vector<16x32xf32>
    %cst_173 = arith.constant dense<0.000000e+00> : vector<32xf32>
    %372 = vector.multi_reduction <add>, %371, %cst_173 [0] : vector<16x32xf32> to vector<32xf32>
    %373 = vector.shape_cast %372 : vector<32xf32> to vector<1x32xf32>
    %cst_174 = arith.constant 1.600000e+01 : f32
    %374 = vector.broadcast %cst_174 : f32 to vector<1x32xf32>
    %375 = arith.divf %373, %374 : vector<1x32xf32>
    %cst_175 = arith.constant 9.99999974E-6 : f32
    %376 = vector.broadcast %cst_175 : f32 to vector<1x32xf32>
    %377 = arith.addf %375, %376 : vector<1x32xf32>
    %378 = math.rsqrt %377 : vector<1x32xf32>
    %379 = vector.broadcast %378 : vector<1x32xf32> to vector<16x32xf32>
    %380 = arith.mulf %370, %379 : vector<16x32xf32>
    %381 = vector.broadcast %29 : vector<16x1xf32> to vector<16x32xf32>
    %382 = arith.mulf %380, %381 : vector<16x32xf32>
    %383 = vector.broadcast %31 : vector<16x1xf32> to vector<16x32xf32>
    %384 = arith.addf %382, %383 : vector<16x32xf32>
    %cst_176 = arith.constant 5.000000e-01 : f32
    %385 = vector.broadcast %cst_176 : f32 to vector<16x32xf32>
    %386 = arith.mulf %385, %384 : vector<16x32xf32>
    %cst_177 = arith.constant 0.707106769 : f32
    %387 = vector.broadcast %cst_177 : f32 to vector<16x32xf32>
    %388 = arith.mulf %384, %387 : vector<16x32xf32>
    %389 = math.absf %388 : vector<16x32xf32>
    %cst_178 = arith.constant 0.327591091 : f32
    %390 = vector.broadcast %cst_178 : f32 to vector<16x32xf32>
    %391 = arith.mulf %390, %389 : vector<16x32xf32>
    %cst_179 = arith.constant 1.000000e+00 : f32
    %392 = vector.broadcast %cst_179 : f32 to vector<16x32xf32>
    %393 = arith.addf %392, %391 : vector<16x32xf32>
    %cst_180 = arith.constant 1.000000e+00 : f32
    %394 = vector.broadcast %cst_180 : f32 to vector<16x32xf32>
    %395 = arith.divf %394, %393 : vector<16x32xf32>
    %cst_181 = arith.constant 1.06140542 : f32
    %396 = vector.broadcast %cst_181 : f32 to vector<16x32xf32>
    %397 = arith.mulf %396, %395 : vector<16x32xf32>
    %cst_182 = arith.constant -1.45315206 : f32
    %398 = vector.broadcast %cst_182 : f32 to vector<16x32xf32>
    %399 = arith.addf %397, %398 : vector<16x32xf32>
    %400 = arith.mulf %399, %395 : vector<16x32xf32>
    %cst_183 = arith.constant 1.42141378 : f32
    %401 = vector.broadcast %cst_183 : f32 to vector<16x32xf32>
    %402 = arith.addf %400, %401 : vector<16x32xf32>
    %403 = arith.mulf %402, %395 : vector<16x32xf32>
    %cst_184 = arith.constant -0.284496725 : f32
    %404 = vector.broadcast %cst_184 : f32 to vector<16x32xf32>
    %405 = arith.addf %403, %404 : vector<16x32xf32>
    %406 = arith.mulf %405, %395 : vector<16x32xf32>
    %cst_185 = arith.constant 0.254829586 : f32
    %407 = vector.broadcast %cst_185 : f32 to vector<16x32xf32>
    %408 = arith.addf %406, %407 : vector<16x32xf32>
    %409 = arith.mulf %408, %395 : vector<16x32xf32>
    %cst_186 = arith.constant 0.000000e+00 : f32
    %410 = vector.broadcast %cst_186 : f32 to vector<16x32xf32>
    %411 = arith.subf %410, %389 : vector<16x32xf32>
    %412 = arith.mulf %411, %389 : vector<16x32xf32>
    %413 = math.exp %412 : vector<16x32xf32>
    %414 = arith.mulf %409, %413 : vector<16x32xf32>
    %cst_187 = arith.constant 1.000000e+00 : f32
    %415 = vector.broadcast %cst_187 : f32 to vector<16x32xf32>
    %416 = arith.subf %415, %414 : vector<16x32xf32>
    %cst_188 = arith.constant 0.000000e+00 : f32
    %417 = vector.broadcast %cst_188 : f32 to vector<16x32xf32>
    %418 = arith.cmpf oge, %388, %417 : vector<16x32xf32>
    %cst_189 = arith.constant 0.000000e+00 : f32
    %419 = vector.broadcast %cst_189 : f32 to vector<16x32xf32>
    %420 = arith.subf %419, %416 : vector<16x32xf32>
    %421 = arith.select %418, %416, %420 : vector<16x32xi1>, vector<16x32xf32>
    %cst_190 = arith.constant 1.000000e+00 : f32
    %422 = vector.broadcast %cst_190 : f32 to vector<16x32xf32>
    %423 = arith.addf %422, %421 : vector<16x32xf32>
    %424 = arith.mulf %386, %423 : vector<16x32xf32>
    %425 = arith.truncf %424 : vector<16x32xf32> to vector<16x32xbf16>
    %cst_191 = arith.constant dense<0.000000e+00> : vector<16x32xf32>
    %426 = tpu.matmul %33, %425, %cst_191 {dimension_numbers = #tpu.dot_dimension_numbers<[1], [0], [0], [1], [0, 0, 1, 1], [], []>} : vector<16x16xbf16>, vector<16x32xbf16>, vector<16x32xf32> -> vector<16x32xf32>
    %427 = vector.broadcast %35 : vector<16x1xf32> to vector<16x32xf32>
    %428 = arith.addf %426, %427 : vector<16x32xf32>
    %cst_192 = arith.constant dense<0.000000e+00> : vector<32xf32>
    %429 = vector.multi_reduction <add>, %428, %cst_192 [0] : vector<16x32xf32> to vector<32xf32>
    %430 = vector.shape_cast %429 : vector<32xf32> to vector<1x32xf32>
    %cst_193 = arith.constant 1.600000e+01 : f32
    %431 = vector.broadcast %cst_193 : f32 to vector<1x32xf32>
    %432 = arith.divf %430, %431 : vector<1x32xf32>
    %433 = vector.broadcast %432 : vector<1x32xf32> to vector<16x32xf32>
    %434 = arith.subf %428, %433 : vector<16x32xf32>
    %435 = arith.mulf %434, %434 : vector<16x32xf32>
    %cst_194 = arith.constant dense<0.000000e+00> : vector<32xf32>
    %436 = vector.multi_reduction <add>, %435, %cst_194 [0] : vector<16x32xf32> to vector<32xf32>
    %437 = vector.shape_cast %436 : vector<32xf32> to vector<1x32xf32>
    %cst_195 = arith.constant 1.600000e+01 : f32
    %438 = vector.broadcast %cst_195 : f32 to vector<1x32xf32>
    %439 = arith.divf %437, %438 : vector<1x32xf32>
    %cst_196 = arith.constant 9.99999974E-6 : f32
    %440 = vector.broadcast %cst_196 : f32 to vector<1x32xf32>
    %441 = arith.addf %439, %440 : vector<1x32xf32>
    %442 = math.rsqrt %441 : vector<1x32xf32>
    %443 = vector.broadcast %442 : vector<1x32xf32> to vector<16x32xf32>
    %444 = arith.mulf %434, %443 : vector<16x32xf32>
    %445 = vector.broadcast %37 : vector<16x1xf32> to vector<16x32xf32>
    %446 = arith.mulf %444, %445 : vector<16x32xf32>
    %447 = vector.broadcast %39 : vector<16x1xf32> to vector<16x32xf32>
    %448 = arith.addf %446, %447 : vector<16x32xf32>
    %cst_197 = arith.constant 5.000000e-01 : f32
    %449 = vector.broadcast %cst_197 : f32 to vector<16x32xf32>
    %450 = arith.mulf %449, %448 : vector<16x32xf32>
    %cst_198 = arith.constant 0.707106769 : f32
    %451 = vector.broadcast %cst_198 : f32 to vector<16x32xf32>
    %452 = arith.mulf %448, %451 : vector<16x32xf32>
    %453 = math.absf %452 : vector<16x32xf32>
    %cst_199 = arith.constant 0.327591091 : f32
    %454 = vector.broadcast %cst_199 : f32 to vector<16x32xf32>
    %455 = arith.mulf %454, %453 : vector<16x32xf32>
    %cst_200 = arith.constant 1.000000e+00 : f32
    %456 = vector.broadcast %cst_200 : f32 to vector<16x32xf32>
    %457 = arith.addf %456, %455 : vector<16x32xf32>
    %cst_201 = arith.constant 1.000000e+00 : f32
    %458 = vector.broadcast %cst_201 : f32 to vector<16x32xf32>
    %459 = arith.divf %458, %457 : vector<16x32xf32>
    %cst_202 = arith.constant 1.06140542 : f32
    %460 = vector.broadcast %cst_202 : f32 to vector<16x32xf32>
    %461 = arith.mulf %460, %459 : vector<16x32xf32>
    %cst_203 = arith.constant -1.45315206 : f32
    %462 = vector.broadcast %cst_203 : f32 to vector<16x32xf32>
    %463 = arith.addf %461, %462 : vector<16x32xf32>
    %464 = arith.mulf %463, %459 : vector<16x32xf32>
    %cst_204 = arith.constant 1.42141378 : f32
    %465 = vector.broadcast %cst_204 : f32 to vector<16x32xf32>
    %466 = arith.addf %464, %465 : vector<16x32xf32>
    %467 = arith.mulf %466, %459 : vector<16x32xf32>
    %cst_205 = arith.constant -0.284496725 : f32
    %468 = vector.broadcast %cst_205 : f32 to vector<16x32xf32>
    %469 = arith.addf %467, %468 : vector<16x32xf32>
    %470 = arith.mulf %469, %459 : vector<16x32xf32>
    %cst_206 = arith.constant 0.254829586 : f32
    %471 = vector.broadcast %cst_206 : f32 to vector<16x32xf32>
    %472 = arith.addf %470, %471 : vector<16x32xf32>
    %473 = arith.mulf %472, %459 : vector<16x32xf32>
    %cst_207 = arith.constant 0.000000e+00 : f32
    %474 = vector.broadcast %cst_207 : f32 to vector<16x32xf32>
    %475 = arith.subf %474, %453 : vector<16x32xf32>
    %476 = arith.mulf %475, %453 : vector<16x32xf32>
    %477 = math.exp %476 : vector<16x32xf32>
    %478 = arith.mulf %473, %477 : vector<16x32xf32>
    %cst_208 = arith.constant 1.000000e+00 : f32
    %479 = vector.broadcast %cst_208 : f32 to vector<16x32xf32>
    %480 = arith.subf %479, %478 : vector<16x32xf32>
    %cst_209 = arith.constant 0.000000e+00 : f32
    %481 = vector.broadcast %cst_209 : f32 to vector<16x32xf32>
    %482 = arith.cmpf oge, %452, %481 : vector<16x32xf32>
    %cst_210 = arith.constant 0.000000e+00 : f32
    %483 = vector.broadcast %cst_210 : f32 to vector<16x32xf32>
    %484 = arith.subf %483, %480 : vector<16x32xf32>
    %485 = arith.select %482, %480, %484 : vector<16x32xi1>, vector<16x32xf32>
    %cst_211 = arith.constant 1.000000e+00 : f32
    %486 = vector.broadcast %cst_211 : f32 to vector<16x32xf32>
    %487 = arith.addf %486, %485 : vector<16x32xf32>
    %488 = arith.mulf %450, %487 : vector<16x32xf32>
    %489 = arith.truncf %488 : vector<16x32xf32> to vector<16x32xbf16>
    %cst_212 = arith.constant dense<0.000000e+00> : vector<8x32xf32>
    %490 = tpu.matmul %41, %489, %cst_212 {dimension_numbers = #tpu.dot_dimension_numbers<[1], [0], [0], [1], [0, 0, 1, 1], [], []>} : vector<8x16xbf16>, vector<16x32xbf16>, vector<8x32xf32> -> vector<8x32xf32>
    %491 = vector.broadcast %43 : vector<8x1xf32> to vector<8x32xf32>
    %492 = arith.addf %490, %491 : vector<8x32xf32>
    %cst_213 = arith.constant dense<0.000000e+00> : vector<32xf32>
    %493 = vector.multi_reduction <add>, %492, %cst_213 [0] : vector<8x32xf32> to vector<32xf32>
    %494 = vector.shape_cast %493 : vector<32xf32> to vector<1x32xf32>
    %cst_214 = arith.constant 8.000000e+00 : f32
    %495 = vector.broadcast %cst_214 : f32 to vector<1x32xf32>
    %496 = arith.divf %494, %495 : vector<1x32xf32>
    %497 = vector.broadcast %496 : vector<1x32xf32> to vector<8x32xf32>
    %498 = arith.subf %492, %497 : vector<8x32xf32>
    %499 = arith.mulf %498, %498 : vector<8x32xf32>
    %cst_215 = arith.constant dense<0.000000e+00> : vector<32xf32>
    %500 = vector.multi_reduction <add>, %499, %cst_215 [0] : vector<8x32xf32> to vector<32xf32>
    %501 = vector.shape_cast %500 : vector<32xf32> to vector<1x32xf32>
    %cst_216 = arith.constant 8.000000e+00 : f32
    %502 = vector.broadcast %cst_216 : f32 to vector<1x32xf32>
    %503 = arith.divf %501, %502 : vector<1x32xf32>
    %cst_217 = arith.constant 9.99999974E-6 : f32
    %504 = vector.broadcast %cst_217 : f32 to vector<1x32xf32>
    %505 = arith.addf %503, %504 : vector<1x32xf32>
    %506 = math.rsqrt %505 : vector<1x32xf32>
    %507 = vector.broadcast %506 : vector<1x32xf32> to vector<8x32xf32>
    %508 = arith.mulf %498, %507 : vector<8x32xf32>
    %509 = vector.broadcast %45 : vector<8x1xf32> to vector<8x32xf32>
    %510 = arith.mulf %508, %509 : vector<8x32xf32>
    %511 = vector.broadcast %47 : vector<8x1xf32> to vector<8x32xf32>
    %512 = arith.addf %510, %511 : vector<8x32xf32>
    %513 = arith.addf %512, %360 : vector<8x32xf32>
    %514 = tpu.concatenate %359, %513 in 0 : vector<8x32xf32>, vector<8x32xf32> -> vector<16x32xf32>
    %515 = arith.addf %514, %52 : vector<16x32xf32>
    %cst_218 = arith.constant 5.000000e-01 : f32
    %516 = vector.broadcast %cst_218 : f32 to vector<16x32xf32>
    %517 = arith.mulf %516, %515 : vector<16x32xf32>
    %cst_219 = arith.constant 0.707106769 : f32
    %518 = vector.broadcast %cst_219 : f32 to vector<16x32xf32>
    %519 = arith.mulf %515, %518 : vector<16x32xf32>
    %520 = math.absf %519 : vector<16x32xf32>
    %cst_220 = arith.constant 0.327591091 : f32
    %521 = vector.broadcast %cst_220 : f32 to vector<16x32xf32>
    %522 = arith.mulf %521, %520 : vector<16x32xf32>
    %cst_221 = arith.constant 1.000000e+00 : f32
    %523 = vector.broadcast %cst_221 : f32 to vector<16x32xf32>
    %524 = arith.addf %523, %522 : vector<16x32xf32>
    %cst_222 = arith.constant 1.000000e+00 : f32
    %525 = vector.broadcast %cst_222 : f32 to vector<16x32xf32>
    %526 = arith.divf %525, %524 : vector<16x32xf32>
    %cst_223 = arith.constant 1.06140542 : f32
    %527 = vector.broadcast %cst_223 : f32 to vector<16x32xf32>
    %528 = arith.mulf %527, %526 : vector<16x32xf32>
    %cst_224 = arith.constant -1.45315206 : f32
    %529 = vector.broadcast %cst_224 : f32 to vector<16x32xf32>
    %530 = arith.addf %528, %529 : vector<16x32xf32>
    %531 = arith.mulf %530, %526 : vector<16x32xf32>
    %cst_225 = arith.constant 1.42141378 : f32
    %532 = vector.broadcast %cst_225 : f32 to vector<16x32xf32>
    %533 = arith.addf %531, %532 : vector<16x32xf32>
    %534 = arith.mulf %533, %526 : vector<16x32xf32>
    %cst_226 = arith.constant -0.284496725 : f32
    %535 = vector.broadcast %cst_226 : f32 to vector<16x32xf32>
    %536 = arith.addf %534, %535 : vector<16x32xf32>
    %537 = arith.mulf %536, %526 : vector<16x32xf32>
    %cst_227 = arith.constant 0.254829586 : f32
    %538 = vector.broadcast %cst_227 : f32 to vector<16x32xf32>
    %539 = arith.addf %537, %538 : vector<16x32xf32>
    %540 = arith.mulf %539, %526 : vector<16x32xf32>
    %cst_228 = arith.constant 0.000000e+00 : f32
    %541 = vector.broadcast %cst_228 : f32 to vector<16x32xf32>
    %542 = arith.subf %541, %520 : vector<16x32xf32>
    %543 = arith.mulf %542, %520 : vector<16x32xf32>
    %544 = math.exp %543 : vector<16x32xf32>
    %545 = arith.mulf %540, %544 : vector<16x32xf32>
    %cst_229 = arith.constant 1.000000e+00 : f32
    %546 = vector.broadcast %cst_229 : f32 to vector<16x32xf32>
    %547 = arith.subf %546, %545 : vector<16x32xf32>
    %cst_230 = arith.constant 0.000000e+00 : f32
    %548 = vector.broadcast %cst_230 : f32 to vector<16x32xf32>
    %549 = arith.cmpf oge, %519, %548 : vector<16x32xf32>
    %cst_231 = arith.constant 0.000000e+00 : f32
    %550 = vector.broadcast %cst_231 : f32 to vector<16x32xf32>
    %551 = arith.subf %550, %547 : vector<16x32xf32>
    %552 = arith.select %549, %547, %551 : vector<16x32xi1>, vector<16x32xf32>
    %cst_232 = arith.constant 1.000000e+00 : f32
    %553 = vector.broadcast %cst_232 : f32 to vector<16x32xf32>
    %554 = arith.addf %553, %552 : vector<16x32xf32>
    %555 = arith.mulf %517, %554 : vector<16x32xf32>
    %556 = vector.shape_cast %555 : vector<16x32xf32> to vector<2x8x32xf32>
    %c0_233 = arith.constant 0 : index
    %c0_234 = arith.constant 0 : index
    %c0_235 = arith.constant 0 : index
    %557 = vector.load %arg28[%c0_233, %c0_234, %c0_235] : memref<2x8x32xf32, #tpu.memory_space<vmem>>, vector<2x8x32xf32>
    tpu.vector_store %arg28[%c0_233, %c0_234, %c0_235], %556 {strides = array<i32>} : memref<2x8x32xf32, #tpu.memory_space<vmem>>, vector<2x8x32xf32>,
    %c4_i32 = arith.constant 4 : i32
    %558 = arith.cmpi eq, %arg1, %c4_i32 : i32
    %559 = arith.extui %558 : i1 to i32
    %c0_i32_236 = arith.constant 0 : i32
    %560 = arith.cmpi ne, %559, %c0_i32_236 : i32
    scf.if %560 {
      %c0_237 = arith.constant 0 : index
      %c0_238 = arith.constant 0 : index
      %c0_239 = arith.constant 0 : index
      %561 = vector.load %arg27[%c0_237, %c0_238, %c0_239] : memref<2x8x32xf32, #tpu.memory_space<vmem>>, vector<2x8x32xf32>
      tpu.vector_store %arg27[%c0_237, %c0_238, %c0_239], %556 {strides = array<i32>} : memref<2x8x32xf32, #tpu.memory_space<vmem>>, vector<2x8x32xf32>,
    } else {
    }
    return
  }
  func.func @transform_0(%arg0: i32, %arg1: i32) -> (i32, i32, i32) {
    %c0_i32 = arith.constant 0 : i32
    %c0_i32_0 = arith.constant 0 : i32
    %c0_i32_1 = arith.constant 0 : i32
    return %arg0, %c0_i32, %c0_i32_0 : i32, i32, i32
  }
  func.func @transform_1(%arg0: i32, %arg1: i32) -> (i32, i32, i32) {
    %c0_i32 = arith.constant 0 : i32
    %c0_i32_0 = arith.constant 0 : i32
    %c0_i32_1 = arith.constant 0 : i32
    return %arg1, %c0_i32, %c0_i32_0 : i32, i32, i32
  }
  func.func @transform_2(%arg0: i32, %arg1: i32) -> (i32, i32, i32) {
    %c0_i32 = arith.constant 0 : i32
    %c0_i32_0 = arith.constant 0 : i32
    %c0_i32_1 = arith.constant 0 : i32
    return %arg1, %c0_i32, %c0_i32_0 : i32, i32, i32
  }
  func.func @transform_3(%arg0: i32, %arg1: i32) -> (i32, i32, i32) {
    %c0_i32 = arith.constant 0 : i32
    %c0_i32_0 = arith.constant 0 : i32
    %c0_i32_1 = arith.constant 0 : i32
    return %arg1, %c0_i32, %c0_i32_0 : i32, i32, i32
  }
  func.func @transform_4(%arg0: i32, %arg1: i32) -> (i32, i32, i32) {
    %c0_i32 = arith.constant 0 : i32
    %c0_i32_0 = arith.constant 0 : i32
    %c0_i32_1 = arith.constant 0 : i32
    return %arg1, %c0_i32, %c0_i32_0 : i32, i32, i32
  }
  func.func @transform_5(%arg0: i32, %arg1: i32) -> (i32, i32, i32) {
    %c0_i32 = arith.constant 0 : i32
    %c0_i32_0 = arith.constant 0 : i32
    %c0_i32_1 = arith.constant 0 : i32
    return %arg1, %c0_i32, %c0_i32_0 : i32, i32, i32
  }
  func.func @transform_6(%arg0: i32, %arg1: i32) -> (i32, i32, i32) {
    %c0_i32 = arith.constant 0 : i32
    %c0_i32_0 = arith.constant 0 : i32
    %c0_i32_1 = arith.constant 0 : i32
    return %arg1, %c0_i32, %c0_i32_0 : i32, i32, i32
  }
  func.func @transform_7(%arg0: i32, %arg1: i32) -> (i32, i32, i32) {
    %c0_i32 = arith.constant 0 : i32
    %c0_i32_0 = arith.constant 0 : i32
    %c0_i32_1 = arith.constant 0 : i32
    return %arg1, %c0_i32, %c0_i32_0 : i32, i32, i32
  }
  func.func @transform_8(%arg0: i32, %arg1: i32) -> (i32, i32, i32) {
    %c0_i32 = arith.constant 0 : i32
    %c0_i32_0 = arith.constant 0 : i32
    %c0_i32_1 = arith.constant 0 : i32
    return %arg1, %c0_i32, %c0_i32_0 : i32, i32, i32
  }
  func.func @transform_9(%arg0: i32, %arg1: i32) -> (i32, i32, i32) {
    %c0_i32 = arith.constant 0 : i32
    %c0_i32_0 = arith.constant 0 : i32
    %c0_i32_1 = arith.constant 0 : i32
    return %arg1, %c0_i32, %c0_i32_0 : i32, i32, i32
  }
  func.func @transform_10(%arg0: i32, %arg1: i32) -> (i32, i32, i32) {
    %c0_i32 = arith.constant 0 : i32
    %c0_i32_0 = arith.constant 0 : i32
    %c0_i32_1 = arith.constant 0 : i32
    return %arg1, %c0_i32, %c0_i32_0 : i32, i32, i32
  }
  func.func @transform_11(%arg0: i32, %arg1: i32) -> (i32, i32, i32) {
    %c0_i32 = arith.constant 0 : i32
    %c0_i32_0 = arith.constant 0 : i32
    %c0_i32_1 = arith.constant 0 : i32
    return %arg1, %c0_i32, %c0_i32_0 : i32, i32, i32
  }
  func.func @transform_12(%arg0: i32, %arg1: i32) -> (i32, i32, i32) {
    %c0_i32 = arith.constant 0 : i32
    %c0_i32_0 = arith.constant 0 : i32
    %c0_i32_1 = arith.constant 0 : i32
    return %arg1, %c0_i32, %c0_i32_0 : i32, i32, i32
  }
  func.func @transform_13(%arg0: i32, %arg1: i32) -> (i32, i32, i32) {
    %c0_i32 = arith.constant 0 : i32
    %c0_i32_0 = arith.constant 0 : i32
    %c0_i32_1 = arith.constant 0 : i32
    return %arg1, %c0_i32, %c0_i32_0 : i32, i32, i32
  }
  func.func @transform_14(%arg0: i32, %arg1: i32) -> (i32, i32, i32) {
    %c0_i32 = arith.constant 0 : i32
    %c0_i32_0 = arith.constant 0 : i32
    %c0_i32_1 = arith.constant 0 : i32
    return %arg1, %c0_i32, %c0_i32_0 : i32, i32, i32
  }
  func.func @transform_15(%arg0: i32, %arg1: i32) -> (i32, i32, i32) {
    %c0_i32 = arith.constant 0 : i32
    %c0_i32_0 = arith.constant 0 : i32
    %c0_i32_1 = arith.constant 0 : i32
    return %arg1, %c0_i32, %c0_i32_0 : i32, i32, i32
  }
  func.func @transform_16(%arg0: i32, %arg1: i32) -> (i32, i32, i32) {
    %c0_i32 = arith.constant 0 : i32
    %c0_i32_0 = arith.constant 0 : i32
    %c0_i32_1 = arith.constant 0 : i32
    return %arg1, %c0_i32, %c0_i32_0 : i32, i32, i32
  }
  func.func @transform_17(%arg0: i32, %arg1: i32) -> (i32, i32, i32) {
    %c0_i32 = arith.constant 0 : i32
    %c0_i32_0 = arith.constant 0 : i32
    %c0_i32_1 = arith.constant 0 : i32
    return %arg1, %c0_i32, %c0_i32_0 : i32, i32, i32
  }
  func.func @transform_18(%arg0: i32, %arg1: i32) -> (i32, i32, i32) {
    %c0_i32 = arith.constant 0 : i32
    %c0_i32_0 = arith.constant 0 : i32
    %c0_i32_1 = arith.constant 0 : i32
    return %arg1, %c0_i32, %c0_i32_0 : i32, i32, i32
  }
  func.func @transform_19(%arg0: i32, %arg1: i32) -> (i32, i32, i32) {
    %c0_i32 = arith.constant 0 : i32
    %c0_i32_0 = arith.constant 0 : i32
    %c0_i32_1 = arith.constant 0 : i32
    return %arg1, %c0_i32, %c0_i32_0 : i32, i32, i32
  }
  func.func @transform_20(%arg0: i32, %arg1: i32) -> (i32, i32, i32) {
    %c0_i32 = arith.constant 0 : i32
    %c0_i32_0 = arith.constant 0 : i32
    %c0_i32_1 = arith.constant 0 : i32
    return %arg1, %c0_i32, %c0_i32_0 : i32, i32, i32
  }
  func.func @transform_21(%arg0: i32, %arg1: i32) -> (i32, i32, i32) {
    %c0_i32 = arith.constant 0 : i32
    %c0_i32_0 = arith.constant 0 : i32
    %c0_i32_1 = arith.constant 0 : i32
    return %arg1, %c0_i32, %c0_i32_0 : i32, i32, i32
  }
  func.func @transform_22(%arg0: i32, %arg1: i32) -> (i32, i32, i32) {
    %c0_i32 = arith.constant 0 : i32
    %c0_i32_0 = arith.constant 0 : i32
    %c0_i32_1 = arith.constant 0 : i32
    return %arg1, %c0_i32, %c0_i32_0 : i32, i32, i32
  }
  func.func @transform_23(%arg0: i32, %arg1: i32) -> (i32, i32, i32) {
    %c0_i32 = arith.constant 0 : i32
    %c0_i32_0 = arith.constant 0 : i32
    %c0_i32_1 = arith.constant 0 : i32
    return %arg1, %c0_i32, %c0_i32_0 : i32, i32, i32
  }
  func.func @transform_24(%arg0: i32, %arg1: i32) -> (i32, i32, i32) {
    %c0_i32 = arith.constant 0 : i32
    %c0_i32_0 = arith.constant 0 : i32
    %c0_i32_1 = arith.constant 0 : i32
    return %arg1, %c0_i32, %c0_i32_0 : i32, i32, i32
  }
  func.func @transform_25(%arg0: i32, %arg1: i32) -> (i32, i32, i32) {
    %c0_i32 = arith.constant 0 : i32
    %c0_i32_0 = arith.constant 0 : i32
    %c0_i32_1 = arith.constant 0 : i32
    return %arg0, %c0_i32, %c0_i32_0 : i32, i32, i32
  }
}

module attributes {stable_mosaic.version = 11 : i64} {
  func.func @kernel(%arg0: i32, %arg1: memref<2x8x32xf32, #tpu.memory_space<vmem>>, %arg2: memref<32x64xbf16, #tpu.memory_space<vmem>>, %arg3: memref<1x64xf32, #tpu.memory_space<vmem>>, %arg4: memref<64x64xbf16, #tpu.memory_space<vmem>>, %arg5: memref<1x64xf32, #tpu.memory_space<vmem>>, %arg6: memref<64x128xbf16, #tpu.memory_space<vmem>>, %arg7: memref<1x128xf32, #tpu.memory_space<vmem>>, %arg8: memref<16x8xbf16, #tpu.memory_space<vmem>>, %arg9: memref<16x1xf32, #tpu.memory_space<vmem>>, %arg10: memref<16x16xbf16, #tpu.memory_space<vmem>>, %arg11: memref<16x1xf32, #tpu.memory_space<vmem>>, %arg12: memref<8x16xbf16, #tpu.memory_space<vmem>>, %arg13: memref<8x1xf32, #tpu.memory_space<vmem>>, %arg14: memref<2x8x128xf32, #tpu.memory_space<vmem>>) attributes {dimension_semantics = [#tpu.dimension_semantics<parallel>], iteration_bounds = array<i64: 1>, scalar_prefetch = 0 : i64, scratch_operands = 0 : i64, tpu.core_type = #tpu.core_type<tc>, window_params = [{transform_indices = @transform_0, window_bounds = array<i64: 2, 8, 32>}, {pipeline_mode = #tpu.pipeline_mode<synchronous>, transform_indices = @transform_1, window_bounds = array<i64: 32, 64>}, {pipeline_mode = #tpu.pipeline_mode<synchronous>, transform_indices = @transform_2, window_bounds = array<i64: 1, 64>}, {pipeline_mode = #tpu.pipeline_mode<synchronous>, transform_indices = @transform_3, window_bounds = array<i64: 64, 64>}, {pipeline_mode = #tpu.pipeline_mode<synchronous>, transform_indices = @transform_4, window_bounds = array<i64: 1, 64>}, {pipeline_mode = #tpu.pipeline_mode<synchronous>, transform_indices = @transform_5, window_bounds = array<i64: 64, 128>}, {pipeline_mode = #tpu.pipeline_mode<synchronous>, transform_indices = @transform_6, window_bounds = array<i64: 1, 128>}, {pipeline_mode = #tpu.pipeline_mode<synchronous>, transform_indices = @transform_7, window_bounds = array<i64: 16, 8>}, {pipeline_mode = #tpu.pipeline_mode<synchronous>, transform_indices = @transform_8, window_bounds = array<i64: 16, 1>}, {pipeline_mode = #tpu.pipeline_mode<synchronous>, transform_indices = @transform_9, window_bounds = array<i64: 16, 16>}, {pipeline_mode = #tpu.pipeline_mode<synchronous>, transform_indices = @transform_10, window_bounds = array<i64: 16, 1>}, {pipeline_mode = #tpu.pipeline_mode<synchronous>, transform_indices = @transform_11, window_bounds = array<i64: 8, 16>}, {pipeline_mode = #tpu.pipeline_mode<synchronous>, transform_indices = @transform_12, window_bounds = array<i64: 8, 1>}, {transform_indices = @transform_13, window_bounds = array<i64: 2, 8, 128>}]} {
    %c0 = arith.constant 0 : index
    %c0_0 = arith.constant 0 : index
    %0 = vector.load %arg2[%c0, %c0_0] : memref<32x64xbf16, #tpu.memory_space<vmem>>, vector<32x64xbf16>
    %c0_1 = arith.constant 0 : index
    %c0_2 = arith.constant 0 : index
    %1 = vector.load %arg3[%c0_1, %c0_2] : memref<1x64xf32, #tpu.memory_space<vmem>>, vector<1x64xf32>
    %c0_3 = arith.constant 0 : index
    %c0_4 = arith.constant 0 : index
    %2 = vector.load %arg4[%c0_3, %c0_4] : memref<64x64xbf16, #tpu.memory_space<vmem>>, vector<64x64xbf16>
    %c0_5 = arith.constant 0 : index
    %c0_6 = arith.constant 0 : index
    %3 = vector.load %arg5[%c0_5, %c0_6] : memref<1x64xf32, #tpu.memory_space<vmem>>, vector<1x64xf32>
    %c0_7 = arith.constant 0 : index
    %c0_8 = arith.constant 0 : index
    %4 = vector.load %arg6[%c0_7, %c0_8] : memref<64x128xbf16, #tpu.memory_space<vmem>>, vector<64x128xbf16>
    %c0_9 = arith.constant 0 : index
    %c0_10 = arith.constant 0 : index
    %5 = vector.load %arg7[%c0_9, %c0_10] : memref<1x128xf32, #tpu.memory_space<vmem>>, vector<1x128xf32>
    %c0_11 = arith.constant 0 : index
    %c0_12 = arith.constant 0 : index
    %6 = vector.load %arg8[%c0_11, %c0_12] : memref<16x8xbf16, #tpu.memory_space<vmem>>, vector<16x8xbf16>
    %c0_13 = arith.constant 0 : index
    %c0_14 = arith.constant 0 : index
    %7 = vector.load %arg9[%c0_13, %c0_14] : memref<16x1xf32, #tpu.memory_space<vmem>>, vector<16x1xf32>
    %c0_15 = arith.constant 0 : index
    %c0_16 = arith.constant 0 : index
    %8 = vector.load %arg10[%c0_15, %c0_16] : memref<16x16xbf16, #tpu.memory_space<vmem>>, vector<16x16xbf16>
    %c0_17 = arith.constant 0 : index
    %c0_18 = arith.constant 0 : index
    %9 = vector.load %arg11[%c0_17, %c0_18] : memref<16x1xf32, #tpu.memory_space<vmem>>, vector<16x1xf32>
    %c0_19 = arith.constant 0 : index
    %c0_20 = arith.constant 0 : index
    %10 = vector.load %arg12[%c0_19, %c0_20] : memref<8x16xbf16, #tpu.memory_space<vmem>>, vector<8x16xbf16>
    %c0_21 = arith.constant 0 : index
    %c0_22 = arith.constant 0 : index
    %11 = vector.load %arg13[%c0_21, %c0_22] : memref<8x1xf32, #tpu.memory_space<vmem>>, vector<8x1xf32>
    %c0_23 = arith.constant 0 : index
    %c0_24 = arith.constant 0 : index
    %c0_25 = arith.constant 0 : index
    %12 = vector.load %arg1[%c0_23, %c0_24, %c0_25] : memref<2x8x32xf32, #tpu.memory_space<vmem>>, vector<2x8x32xf32>
    %13 = vector.shape_cast %12 : vector<2x8x32xf32> to vector<16x32xf32>
    %14 = arith.truncf %13 : vector<16x32xf32> to vector<16x32xbf16>
    %cst = arith.constant dense<0.000000e+00> : vector<16x64xf32>
    %15 = tpu.matmul %14, %0, %cst {dimension_numbers = #tpu.dot_dimension_numbers<[1], [0], [0], [1], [0, 0, 1, 1], [], []>} : vector<16x32xbf16>, vector<32x64xbf16>, vector<16x64xf32> -> vector<16x64xf32>
    %16 = vector.broadcast %1 : vector<1x64xf32> to vector<16x64xf32>
    %17 = arith.addf %15, %16 : vector<16x64xf32>
    %cst_26 = arith.constant 5.000000e-01 : f32
    %18 = vector.broadcast %cst_26 : f32 to vector<16x64xf32>
    %19 = arith.mulf %18, %17 : vector<16x64xf32>
    %cst_27 = arith.constant 0.707106769 : f32
    %20 = vector.broadcast %cst_27 : f32 to vector<16x64xf32>
    %21 = arith.mulf %17, %20 : vector<16x64xf32>
    %22 = math.absf %21 : vector<16x64xf32>
    %cst_28 = arith.constant 0.327591091 : f32
    %23 = vector.broadcast %cst_28 : f32 to vector<16x64xf32>
    %24 = arith.mulf %23, %22 : vector<16x64xf32>
    %cst_29 = arith.constant 1.000000e+00 : f32
    %25 = vector.broadcast %cst_29 : f32 to vector<16x64xf32>
    %26 = arith.addf %25, %24 : vector<16x64xf32>
    %cst_30 = arith.constant 1.000000e+00 : f32
    %27 = vector.broadcast %cst_30 : f32 to vector<16x64xf32>
    %28 = arith.divf %27, %26 : vector<16x64xf32>
    %cst_31 = arith.constant 1.06140542 : f32
    %29 = vector.broadcast %cst_31 : f32 to vector<16x64xf32>
    %30 = arith.mulf %29, %28 : vector<16x64xf32>
    %cst_32 = arith.constant -1.45315206 : f32
    %31 = vector.broadcast %cst_32 : f32 to vector<16x64xf32>
    %32 = arith.addf %30, %31 : vector<16x64xf32>
    %33 = arith.mulf %32, %28 : vector<16x64xf32>
    %cst_33 = arith.constant 1.42141378 : f32
    %34 = vector.broadcast %cst_33 : f32 to vector<16x64xf32>
    %35 = arith.addf %33, %34 : vector<16x64xf32>
    %36 = arith.mulf %35, %28 : vector<16x64xf32>
    %cst_34 = arith.constant -0.284496725 : f32
    %37 = vector.broadcast %cst_34 : f32 to vector<16x64xf32>
    %38 = arith.addf %36, %37 : vector<16x64xf32>
    %39 = arith.mulf %38, %28 : vector<16x64xf32>
    %cst_35 = arith.constant 0.254829586 : f32
    %40 = vector.broadcast %cst_35 : f32 to vector<16x64xf32>
    %41 = arith.addf %39, %40 : vector<16x64xf32>
    %42 = arith.mulf %41, %28 : vector<16x64xf32>
    %cst_36 = arith.constant 0.000000e+00 : f32
    %43 = vector.broadcast %cst_36 : f32 to vector<16x64xf32>
    %44 = arith.subf %43, %22 : vector<16x64xf32>
    %45 = arith.mulf %44, %22 : vector<16x64xf32>
    %46 = math.exp %45 : vector<16x64xf32>
    %47 = arith.mulf %42, %46 : vector<16x64xf32>
    %cst_37 = arith.constant 1.000000e+00 : f32
    %48 = vector.broadcast %cst_37 : f32 to vector<16x64xf32>
    %49 = arith.subf %48, %47 : vector<16x64xf32>
    %cst_38 = arith.constant 0.000000e+00 : f32
    %50 = vector.broadcast %cst_38 : f32 to vector<16x64xf32>
    %51 = arith.cmpf oge, %21, %50 : vector<16x64xf32>
    %cst_39 = arith.constant 0.000000e+00 : f32
    %52 = vector.broadcast %cst_39 : f32 to vector<16x64xf32>
    %53 = arith.subf %52, %49 : vector<16x64xf32>
    %54 = arith.select %51, %49, %53 : vector<16x64xi1>, vector<16x64xf32>
    %cst_40 = arith.constant 1.000000e+00 : f32
    %55 = vector.broadcast %cst_40 : f32 to vector<16x64xf32>
    %56 = arith.addf %55, %54 : vector<16x64xf32>
    %57 = arith.mulf %19, %56 : vector<16x64xf32>
    %58 = arith.truncf %57 : vector<16x64xf32> to vector<16x64xbf16>
    %cst_41 = arith.constant dense<0.000000e+00> : vector<16x64xf32>
    %59 = tpu.matmul %58, %2, %cst_41 {dimension_numbers = #tpu.dot_dimension_numbers<[1], [0], [0], [1], [0, 0, 1, 1], [], []>} : vector<16x64xbf16>, vector<64x64xbf16>, vector<16x64xf32> -> vector<16x64xf32>
    %60 = vector.broadcast %3 : vector<1x64xf32> to vector<16x64xf32>
    %61 = arith.addf %59, %60 : vector<16x64xf32>
    %cst_42 = arith.constant 5.000000e-01 : f32
    %62 = vector.broadcast %cst_42 : f32 to vector<16x64xf32>
    %63 = arith.mulf %62, %61 : vector<16x64xf32>
    %cst_43 = arith.constant 0.707106769 : f32
    %64 = vector.broadcast %cst_43 : f32 to vector<16x64xf32>
    %65 = arith.mulf %61, %64 : vector<16x64xf32>
    %66 = math.absf %65 : vector<16x64xf32>
    %cst_44 = arith.constant 0.327591091 : f32
    %67 = vector.broadcast %cst_44 : f32 to vector<16x64xf32>
    %68 = arith.mulf %67, %66 : vector<16x64xf32>
    %cst_45 = arith.constant 1.000000e+00 : f32
    %69 = vector.broadcast %cst_45 : f32 to vector<16x64xf32>
    %70 = arith.addf %69, %68 : vector<16x64xf32>
    %cst_46 = arith.constant 1.000000e+00 : f32
    %71 = vector.broadcast %cst_46 : f32 to vector<16x64xf32>
    %72 = arith.divf %71, %70 : vector<16x64xf32>
    %cst_47 = arith.constant 1.06140542 : f32
    %73 = vector.broadcast %cst_47 : f32 to vector<16x64xf32>
    %74 = arith.mulf %73, %72 : vector<16x64xf32>
    %cst_48 = arith.constant -1.45315206 : f32
    %75 = vector.broadcast %cst_48 : f32 to vector<16x64xf32>
    %76 = arith.addf %74, %75 : vector<16x64xf32>
    %77 = arith.mulf %76, %72 : vector<16x64xf32>
    %cst_49 = arith.constant 1.42141378 : f32
    %78 = vector.broadcast %cst_49 : f32 to vector<16x64xf32>
    %79 = arith.addf %77, %78 : vector<16x64xf32>
    %80 = arith.mulf %79, %72 : vector<16x64xf32>
    %cst_50 = arith.constant -0.284496725 : f32
    %81 = vector.broadcast %cst_50 : f32 to vector<16x64xf32>
    %82 = arith.addf %80, %81 : vector<16x64xf32>
    %83 = arith.mulf %82, %72 : vector<16x64xf32>
    %cst_51 = arith.constant 0.254829586 : f32
    %84 = vector.broadcast %cst_51 : f32 to vector<16x64xf32>
    %85 = arith.addf %83, %84 : vector<16x64xf32>
    %86 = arith.mulf %85, %72 : vector<16x64xf32>
    %cst_52 = arith.constant 0.000000e+00 : f32
    %87 = vector.broadcast %cst_52 : f32 to vector<16x64xf32>
    %88 = arith.subf %87, %66 : vector<16x64xf32>
    %89 = arith.mulf %88, %66 : vector<16x64xf32>
    %90 = math.exp %89 : vector<16x64xf32>
    %91 = arith.mulf %86, %90 : vector<16x64xf32>
    %cst_53 = arith.constant 1.000000e+00 : f32
    %92 = vector.broadcast %cst_53 : f32 to vector<16x64xf32>
    %93 = arith.subf %92, %91 : vector<16x64xf32>
    %cst_54 = arith.constant 0.000000e+00 : f32
    %94 = vector.broadcast %cst_54 : f32 to vector<16x64xf32>
    %95 = arith.cmpf oge, %65, %94 : vector<16x64xf32>
    %cst_55 = arith.constant 0.000000e+00 : f32
    %96 = vector.broadcast %cst_55 : f32 to vector<16x64xf32>
    %97 = arith.subf %96, %93 : vector<16x64xf32>
    %98 = arith.select %95, %93, %97 : vector<16x64xi1>, vector<16x64xf32>
    %cst_56 = arith.constant 1.000000e+00 : f32
    %99 = vector.broadcast %cst_56 : f32 to vector<16x64xf32>
    %100 = arith.addf %99, %98 : vector<16x64xf32>
    %101 = arith.mulf %63, %100 : vector<16x64xf32>
    %102 = arith.truncf %101 : vector<16x64xf32> to vector<16x64xbf16>
    %cst_57 = arith.constant dense<0.000000e+00> : vector<16x128xf32>
    %103 = tpu.matmul %102, %4, %cst_57 {dimension_numbers = #tpu.dot_dimension_numbers<[1], [0], [0], [1], [0, 0, 1, 1], [], []>} : vector<16x64xbf16>, vector<64x128xbf16>, vector<16x128xf32> -> vector<16x128xf32>
    %104 = vector.broadcast %5 : vector<1x128xf32> to vector<16x128xf32>
    %105 = arith.addf %103, %104 : vector<16x128xf32>
    %106 = vector.extract_strided_slice %105 {offsets = [0, 0], sizes = [8, 128], strides = [1, 1]} : vector<16x128xf32> to vector<8x128xf32>
    %107 = arith.truncf %106 : vector<8x128xf32> to vector<8x128xbf16>
    %cst_58 = arith.constant dense<0.000000e+00> : vector<16x128xf32>
    %108 = tpu.matmul %6, %107, %cst_58 {dimension_numbers = #tpu.dot_dimension_numbers<[1], [0], [0], [1], [0, 0, 1, 1], [], []>} : vector<16x8xbf16>, vector<8x128xbf16>, vector<16x128xf32> -> vector<16x128xf32>
    %109 = vector.broadcast %7 : vector<16x1xf32> to vector<16x128xf32>
    %110 = arith.addf %108, %109 : vector<16x128xf32>
    %cst_59 = arith.constant 5.000000e-01 : f32
    %111 = vector.broadcast %cst_59 : f32 to vector<16x128xf32>
    %112 = arith.mulf %111, %110 : vector<16x128xf32>
    %cst_60 = arith.constant 0.707106769 : f32
    %113 = vector.broadcast %cst_60 : f32 to vector<16x128xf32>
    %114 = arith.mulf %110, %113 : vector<16x128xf32>
    %115 = math.absf %114 : vector<16x128xf32>
    %cst_61 = arith.constant 0.327591091 : f32
    %116 = vector.broadcast %cst_61 : f32 to vector<16x128xf32>
    %117 = arith.mulf %116, %115 : vector<16x128xf32>
    %cst_62 = arith.constant 1.000000e+00 : f32
    %118 = vector.broadcast %cst_62 : f32 to vector<16x128xf32>
    %119 = arith.addf %118, %117 : vector<16x128xf32>
    %cst_63 = arith.constant 1.000000e+00 : f32
    %120 = vector.broadcast %cst_63 : f32 to vector<16x128xf32>
    %121 = arith.divf %120, %119 : vector<16x128xf32>
    %cst_64 = arith.constant 1.06140542 : f32
    %122 = vector.broadcast %cst_64 : f32 to vector<16x128xf32>
    %123 = arith.mulf %122, %121 : vector<16x128xf32>
    %cst_65 = arith.constant -1.45315206 : f32
    %124 = vector.broadcast %cst_65 : f32 to vector<16x128xf32>
    %125 = arith.addf %123, %124 : vector<16x128xf32>
    %126 = arith.mulf %125, %121 : vector<16x128xf32>
    %cst_66 = arith.constant 1.42141378 : f32
    %127 = vector.broadcast %cst_66 : f32 to vector<16x128xf32>
    %128 = arith.addf %126, %127 : vector<16x128xf32>
    %129 = arith.mulf %128, %121 : vector<16x128xf32>
    %cst_67 = arith.constant -0.284496725 : f32
    %130 = vector.broadcast %cst_67 : f32 to vector<16x128xf32>
    %131 = arith.addf %129, %130 : vector<16x128xf32>
    %132 = arith.mulf %131, %121 : vector<16x128xf32>
    %cst_68 = arith.constant 0.254829586 : f32
    %133 = vector.broadcast %cst_68 : f32 to vector<16x128xf32>
    %134 = arith.addf %132, %133 : vector<16x128xf32>
    %135 = arith.mulf %134, %121 : vector<16x128xf32>
    %cst_69 = arith.constant 0.000000e+00 : f32
    %136 = vector.broadcast %cst_69 : f32 to vector<16x128xf32>
    %137 = arith.subf %136, %115 : vector<16x128xf32>
    %138 = arith.mulf %137, %115 : vector<16x128xf32>
    %139 = math.exp %138 : vector<16x128xf32>
    %140 = arith.mulf %135, %139 : vector<16x128xf32>
    %cst_70 = arith.constant 1.000000e+00 : f32
    %141 = vector.broadcast %cst_70 : f32 to vector<16x128xf32>
    %142 = arith.subf %141, %140 : vector<16x128xf32>
    %cst_71 = arith.constant 0.000000e+00 : f32
    %143 = vector.broadcast %cst_71 : f32 to vector<16x128xf32>
    %144 = arith.cmpf oge, %114, %143 : vector<16x128xf32>
    %cst_72 = arith.constant 0.000000e+00 : f32
    %145 = vector.broadcast %cst_72 : f32 to vector<16x128xf32>
    %146 = arith.subf %145, %142 : vector<16x128xf32>
    %147 = arith.select %144, %142, %146 : vector<16x128xi1>, vector<16x128xf32>
    %cst_73 = arith.constant 1.000000e+00 : f32
    %148 = vector.broadcast %cst_73 : f32 to vector<16x128xf32>
    %149 = arith.addf %148, %147 : vector<16x128xf32>
    %150 = arith.mulf %112, %149 : vector<16x128xf32>
    %151 = arith.truncf %150 : vector<16x128xf32> to vector<16x128xbf16>
    %cst_74 = arith.constant dense<0.000000e+00> : vector<16x128xf32>
    %152 = tpu.matmul %8, %151, %cst_74 {dimension_numbers = #tpu.dot_dimension_numbers<[1], [0], [0], [1], [0, 0, 1, 1], [], []>} : vector<16x16xbf16>, vector<16x128xbf16>, vector<16x128xf32> -> vector<16x128xf32>
    %153 = vector.broadcast %9 : vector<16x1xf32> to vector<16x128xf32>
    %154 = arith.addf %152, %153 : vector<16x128xf32>
    %cst_75 = arith.constant 5.000000e-01 : f32
    %155 = vector.broadcast %cst_75 : f32 to vector<16x128xf32>
    %156 = arith.mulf %155, %154 : vector<16x128xf32>
    %cst_76 = arith.constant 0.707106769 : f32
    %157 = vector.broadcast %cst_76 : f32 to vector<16x128xf32>
    %158 = arith.mulf %154, %157 : vector<16x128xf32>
    %159 = math.absf %158 : vector<16x128xf32>
    %cst_77 = arith.constant 0.327591091 : f32
    %160 = vector.broadcast %cst_77 : f32 to vector<16x128xf32>
    %161 = arith.mulf %160, %159 : vector<16x128xf32>
    %cst_78 = arith.constant 1.000000e+00 : f32
    %162 = vector.broadcast %cst_78 : f32 to vector<16x128xf32>
    %163 = arith.addf %162, %161 : vector<16x128xf32>
    %cst_79 = arith.constant 1.000000e+00 : f32
    %164 = vector.broadcast %cst_79 : f32 to vector<16x128xf32>
    %165 = arith.divf %164, %163 : vector<16x128xf32>
    %cst_80 = arith.constant 1.06140542 : f32
    %166 = vector.broadcast %cst_80 : f32 to vector<16x128xf32>
    %167 = arith.mulf %166, %165 : vector<16x128xf32>
    %cst_81 = arith.constant -1.45315206 : f32
    %168 = vector.broadcast %cst_81 : f32 to vector<16x128xf32>
    %169 = arith.addf %167, %168 : vector<16x128xf32>
    %170 = arith.mulf %169, %165 : vector<16x128xf32>
    %cst_82 = arith.constant 1.42141378 : f32
    %171 = vector.broadcast %cst_82 : f32 to vector<16x128xf32>
    %172 = arith.addf %170, %171 : vector<16x128xf32>
    %173 = arith.mulf %172, %165 : vector<16x128xf32>
    %cst_83 = arith.constant -0.284496725 : f32
    %174 = vector.broadcast %cst_83 : f32 to vector<16x128xf32>
    %175 = arith.addf %173, %174 : vector<16x128xf32>
    %176 = arith.mulf %175, %165 : vector<16x128xf32>
    %cst_84 = arith.constant 0.254829586 : f32
    %177 = vector.broadcast %cst_84 : f32 to vector<16x128xf32>
    %178 = arith.addf %176, %177 : vector<16x128xf32>
    %179 = arith.mulf %178, %165 : vector<16x128xf32>
    %cst_85 = arith.constant 0.000000e+00 : f32
    %180 = vector.broadcast %cst_85 : f32 to vector<16x128xf32>
    %181 = arith.subf %180, %159 : vector<16x128xf32>
    %182 = arith.mulf %181, %159 : vector<16x128xf32>
    %183 = math.exp %182 : vector<16x128xf32>
    %184 = arith.mulf %179, %183 : vector<16x128xf32>
    %cst_86 = arith.constant 1.000000e+00 : f32
    %185 = vector.broadcast %cst_86 : f32 to vector<16x128xf32>
    %186 = arith.subf %185, %184 : vector<16x128xf32>
    %cst_87 = arith.constant 0.000000e+00 : f32
    %187 = vector.broadcast %cst_87 : f32 to vector<16x128xf32>
    %188 = arith.cmpf oge, %158, %187 : vector<16x128xf32>
    %cst_88 = arith.constant 0.000000e+00 : f32
    %189 = vector.broadcast %cst_88 : f32 to vector<16x128xf32>
    %190 = arith.subf %189, %186 : vector<16x128xf32>
    %191 = arith.select %188, %186, %190 : vector<16x128xi1>, vector<16x128xf32>
    %cst_89 = arith.constant 1.000000e+00 : f32
    %192 = vector.broadcast %cst_89 : f32 to vector<16x128xf32>
    %193 = arith.addf %192, %191 : vector<16x128xf32>
    %194 = arith.mulf %156, %193 : vector<16x128xf32>
    %195 = arith.truncf %194 : vector<16x128xf32> to vector<16x128xbf16>
    %cst_90 = arith.constant dense<0.000000e+00> : vector<8x128xf32>
    %196 = tpu.matmul %10, %195, %cst_90 {dimension_numbers = #tpu.dot_dimension_numbers<[1], [0], [0], [1], [0, 0, 1, 1], [], []>} : vector<8x16xbf16>, vector<16x128xbf16>, vector<8x128xf32> -> vector<8x128xf32>
    %197 = vector.broadcast %11 : vector<8x1xf32> to vector<8x128xf32>
    %198 = arith.addf %196, %197 : vector<8x128xf32>
    %199 = vector.extract_strided_slice %105 {offsets = [8, 0], sizes = [8, 128], strides = [1, 1]} : vector<16x128xf32> to vector<8x128xf32>
    %200 = arith.truncf %199 : vector<8x128xf32> to vector<8x128xbf16>
    %cst_91 = arith.constant dense<0.000000e+00> : vector<16x128xf32>
    %201 = tpu.matmul %6, %200, %cst_91 {dimension_numbers = #tpu.dot_dimension_numbers<[1], [0], [0], [1], [0, 0, 1, 1], [], []>} : vector<16x8xbf16>, vector<8x128xbf16>, vector<16x128xf32> -> vector<16x128xf32>
    %202 = vector.broadcast %7 : vector<16x1xf32> to vector<16x128xf32>
    %203 = arith.addf %201, %202 : vector<16x128xf32>
    %cst_92 = arith.constant 5.000000e-01 : f32
    %204 = vector.broadcast %cst_92 : f32 to vector<16x128xf32>
    %205 = arith.mulf %204, %203 : vector<16x128xf32>
    %cst_93 = arith.constant 0.707106769 : f32
    %206 = vector.broadcast %cst_93 : f32 to vector<16x128xf32>
    %207 = arith.mulf %203, %206 : vector<16x128xf32>
    %208 = math.absf %207 : vector<16x128xf32>
    %cst_94 = arith.constant 0.327591091 : f32
    %209 = vector.broadcast %cst_94 : f32 to vector<16x128xf32>
    %210 = arith.mulf %209, %208 : vector<16x128xf32>
    %cst_95 = arith.constant 1.000000e+00 : f32
    %211 = vector.broadcast %cst_95 : f32 to vector<16x128xf32>
    %212 = arith.addf %211, %210 : vector<16x128xf32>
    %cst_96 = arith.constant 1.000000e+00 : f32
    %213 = vector.broadcast %cst_96 : f32 to vector<16x128xf32>
    %214 = arith.divf %213, %212 : vector<16x128xf32>
    %cst_97 = arith.constant 1.06140542 : f32
    %215 = vector.broadcast %cst_97 : f32 to vector<16x128xf32>
    %216 = arith.mulf %215, %214 : vector<16x128xf32>
    %cst_98 = arith.constant -1.45315206 : f32
    %217 = vector.broadcast %cst_98 : f32 to vector<16x128xf32>
    %218 = arith.addf %216, %217 : vector<16x128xf32>
    %219 = arith.mulf %218, %214 : vector<16x128xf32>
    %cst_99 = arith.constant 1.42141378 : f32
    %220 = vector.broadcast %cst_99 : f32 to vector<16x128xf32>
    %221 = arith.addf %219, %220 : vector<16x128xf32>
    %222 = arith.mulf %221, %214 : vector<16x128xf32>
    %cst_100 = arith.constant -0.284496725 : f32
    %223 = vector.broadcast %cst_100 : f32 to vector<16x128xf32>
    %224 = arith.addf %222, %223 : vector<16x128xf32>
    %225 = arith.mulf %224, %214 : vector<16x128xf32>
    %cst_101 = arith.constant 0.254829586 : f32
    %226 = vector.broadcast %cst_101 : f32 to vector<16x128xf32>
    %227 = arith.addf %225, %226 : vector<16x128xf32>
    %228 = arith.mulf %227, %214 : vector<16x128xf32>
    %cst_102 = arith.constant 0.000000e+00 : f32
    %229 = vector.broadcast %cst_102 : f32 to vector<16x128xf32>
    %230 = arith.subf %229, %208 : vector<16x128xf32>
    %231 = arith.mulf %230, %208 : vector<16x128xf32>
    %232 = math.exp %231 : vector<16x128xf32>
    %233 = arith.mulf %228, %232 : vector<16x128xf32>
    %cst_103 = arith.constant 1.000000e+00 : f32
    %234 = vector.broadcast %cst_103 : f32 to vector<16x128xf32>
    %235 = arith.subf %234, %233 : vector<16x128xf32>
    %cst_104 = arith.constant 0.000000e+00 : f32
    %236 = vector.broadcast %cst_104 : f32 to vector<16x128xf32>
    %237 = arith.cmpf oge, %207, %236 : vector<16x128xf32>
    %cst_105 = arith.constant 0.000000e+00 : f32
    %238 = vector.broadcast %cst_105 : f32 to vector<16x128xf32>
    %239 = arith.subf %238, %235 : vector<16x128xf32>
    %240 = arith.select %237, %235, %239 : vector<16x128xi1>, vector<16x128xf32>
    %cst_106 = arith.constant 1.000000e+00 : f32
    %241 = vector.broadcast %cst_106 : f32 to vector<16x128xf32>
    %242 = arith.addf %241, %240 : vector<16x128xf32>
    %243 = arith.mulf %205, %242 : vector<16x128xf32>
    %244 = arith.truncf %243 : vector<16x128xf32> to vector<16x128xbf16>
    %cst_107 = arith.constant dense<0.000000e+00> : vector<16x128xf32>
    %245 = tpu.matmul %8, %244, %cst_107 {dimension_numbers = #tpu.dot_dimension_numbers<[1], [0], [0], [1], [0, 0, 1, 1], [], []>} : vector<16x16xbf16>, vector<16x128xbf16>, vector<16x128xf32> -> vector<16x128xf32>
    %246 = vector.broadcast %9 : vector<16x1xf32> to vector<16x128xf32>
    %247 = arith.addf %245, %246 : vector<16x128xf32>
    %cst_108 = arith.constant 5.000000e-01 : f32
    %248 = vector.broadcast %cst_108 : f32 to vector<16x128xf32>
    %249 = arith.mulf %248, %247 : vector<16x128xf32>
    %cst_109 = arith.constant 0.707106769 : f32
    %250 = vector.broadcast %cst_109 : f32 to vector<16x128xf32>
    %251 = arith.mulf %247, %250 : vector<16x128xf32>
    %252 = math.absf %251 : vector<16x128xf32>
    %cst_110 = arith.constant 0.327591091 : f32
    %253 = vector.broadcast %cst_110 : f32 to vector<16x128xf32>
    %254 = arith.mulf %253, %252 : vector<16x128xf32>
    %cst_111 = arith.constant 1.000000e+00 : f32
    %255 = vector.broadcast %cst_111 : f32 to vector<16x128xf32>
    %256 = arith.addf %255, %254 : vector<16x128xf32>
    %cst_112 = arith.constant 1.000000e+00 : f32
    %257 = vector.broadcast %cst_112 : f32 to vector<16x128xf32>
    %258 = arith.divf %257, %256 : vector<16x128xf32>
    %cst_113 = arith.constant 1.06140542 : f32
    %259 = vector.broadcast %cst_113 : f32 to vector<16x128xf32>
    %260 = arith.mulf %259, %258 : vector<16x128xf32>
    %cst_114 = arith.constant -1.45315206 : f32
    %261 = vector.broadcast %cst_114 : f32 to vector<16x128xf32>
    %262 = arith.addf %260, %261 : vector<16x128xf32>
    %263 = arith.mulf %262, %258 : vector<16x128xf32>
    %cst_115 = arith.constant 1.42141378 : f32
    %264 = vector.broadcast %cst_115 : f32 to vector<16x128xf32>
    %265 = arith.addf %263, %264 : vector<16x128xf32>
    %266 = arith.mulf %265, %258 : vector<16x128xf32>
    %cst_116 = arith.constant -0.284496725 : f32
    %267 = vector.broadcast %cst_116 : f32 to vector<16x128xf32>
    %268 = arith.addf %266, %267 : vector<16x128xf32>
    %269 = arith.mulf %268, %258 : vector<16x128xf32>
    %cst_117 = arith.constant 0.254829586 : f32
    %270 = vector.broadcast %cst_117 : f32 to vector<16x128xf32>
    %271 = arith.addf %269, %270 : vector<16x128xf32>
    %272 = arith.mulf %271, %258 : vector<16x128xf32>
    %cst_118 = arith.constant 0.000000e+00 : f32
    %273 = vector.broadcast %cst_118 : f32 to vector<16x128xf32>
    %274 = arith.subf %273, %252 : vector<16x128xf32>
    %275 = arith.mulf %274, %252 : vector<16x128xf32>
    %276 = math.exp %275 : vector<16x128xf32>
    %277 = arith.mulf %272, %276 : vector<16x128xf32>
    %cst_119 = arith.constant 1.000000e+00 : f32
    %278 = vector.broadcast %cst_119 : f32 to vector<16x128xf32>
    %279 = arith.subf %278, %277 : vector<16x128xf32>
    %cst_120 = arith.constant 0.000000e+00 : f32
    %280 = vector.broadcast %cst_120 : f32 to vector<16x128xf32>
    %281 = arith.cmpf oge, %251, %280 : vector<16x128xf32>
    %cst_121 = arith.constant 0.000000e+00 : f32
    %282 = vector.broadcast %cst_121 : f32 to vector<16x128xf32>
    %283 = arith.subf %282, %279 : vector<16x128xf32>
    %284 = arith.select %281, %279, %283 : vector<16x128xi1>, vector<16x128xf32>
    %cst_122 = arith.constant 1.000000e+00 : f32
    %285 = vector.broadcast %cst_122 : f32 to vector<16x128xf32>
    %286 = arith.addf %285, %284 : vector<16x128xf32>
    %287 = arith.mulf %249, %286 : vector<16x128xf32>
    %288 = arith.truncf %287 : vector<16x128xf32> to vector<16x128xbf16>
    %cst_123 = arith.constant dense<0.000000e+00> : vector<8x128xf32>
    %289 = tpu.matmul %10, %288, %cst_123 {dimension_numbers = #tpu.dot_dimension_numbers<[1], [0], [0], [1], [0, 0, 1, 1], [], []>} : vector<8x16xbf16>, vector<16x128xbf16>, vector<8x128xf32> -> vector<8x128xf32>
    %290 = vector.broadcast %11 : vector<8x1xf32> to vector<8x128xf32>
    %291 = arith.addf %289, %290 : vector<8x128xf32>
    %292 = tpu.concatenate %198, %291 in 0 : vector<8x128xf32>, vector<8x128xf32> -> vector<16x128xf32>
    %293 = vector.shape_cast %292 : vector<16x128xf32> to vector<2x8x128xf32>
    %c0_124 = arith.constant 0 : index
    %c0_125 = arith.constant 0 : index
    %c0_126 = arith.constant 0 : index
    %294 = vector.load %arg14[%c0_124, %c0_125, %c0_126] : memref<2x8x128xf32, #tpu.memory_space<vmem>>, vector<2x8x128xf32>
    tpu.vector_store %arg14[%c0_124, %c0_125, %c0_126], %293 {strides = array<i32>} : memref<2x8x128xf32, #tpu.memory_space<vmem>>, vector<2x8x128xf32>,
    return
  }
  func.func @transform_0(%arg0: i32) -> (i32, i32, i32) {
    %c0_i32 = arith.constant 0 : i32
    %c0_i32_0 = arith.constant 0 : i32
    %c0_i32_1 = arith.constant 0 : i32
    return %arg0, %c0_i32, %c0_i32_0 : i32, i32, i32
  }
  func.func @transform_1(%arg0: i32) -> (i32, i32) {
    %c0_i32 = arith.constant 0 : i32
    %c0_i32_0 = arith.constant 0 : i32
    %c0_i32_1 = arith.constant 0 : i32
    return %c0_i32, %c0_i32_0 : i32, i32
  }
  func.func @transform_2(%arg0: i32) -> (i32, i32) {
    %c0_i32 = arith.constant 0 : i32
    %c0_i32_0 = arith.constant 0 : i32
    %c0_i32_1 = arith.constant 0 : i32
    return %c0_i32, %c0_i32_0 : i32, i32
  }
  func.func @transform_3(%arg0: i32) -> (i32, i32) {
    %c0_i32 = arith.constant 0 : i32
    %c0_i32_0 = arith.constant 0 : i32
    %c0_i32_1 = arith.constant 0 : i32
    return %c0_i32, %c0_i32_0 : i32, i32
  }
  func.func @transform_4(%arg0: i32) -> (i32, i32) {
    %c0_i32 = arith.constant 0 : i32
    %c0_i32_0 = arith.constant 0 : i32
    %c0_i32_1 = arith.constant 0 : i32
    return %c0_i32, %c0_i32_0 : i32, i32
  }
  func.func @transform_5(%arg0: i32) -> (i32, i32) {
    %c0_i32 = arith.constant 0 : i32
    %c0_i32_0 = arith.constant 0 : i32
    %c0_i32_1 = arith.constant 0 : i32
    return %c0_i32, %c0_i32_0 : i32, i32
  }
  func.func @transform_6(%arg0: i32) -> (i32, i32) {
    %c0_i32 = arith.constant 0 : i32
    %c0_i32_0 = arith.constant 0 : i32
    %c0_i32_1 = arith.constant 0 : i32
    return %c0_i32, %c0_i32_0 : i32, i32
  }
  func.func @transform_7(%arg0: i32) -> (i32, i32) {
    %c0_i32 = arith.constant 0 : i32
    %c0_i32_0 = arith.constant 0 : i32
    %c0_i32_1 = arith.constant 0 : i32
    return %c0_i32, %c0_i32_0 : i32, i32
  }
  func.func @transform_8(%arg0: i32) -> (i32, i32) {
    %c0_i32 = arith.constant 0 : i32
    %c0_i32_0 = arith.constant 0 : i32
    %c0_i32_1 = arith.constant 0 : i32
    return %c0_i32, %c0_i32_0 : i32, i32
  }
  func.func @transform_9(%arg0: i32) -> (i32, i32) {
    %c0_i32 = arith.constant 0 : i32
    %c0_i32_0 = arith.constant 0 : i32
    %c0_i32_1 = arith.constant 0 : i32
    return %c0_i32, %c0_i32_0 : i32, i32
  }
  func.func @transform_10(%arg0: i32) -> (i32, i32) {
    %c0_i32 = arith.constant 0 : i32
    %c0_i32_0 = arith.constant 0 : i32
    %c0_i32_1 = arith.constant 0 : i32
    return %c0_i32, %c0_i32_0 : i32, i32
  }
  func.func @transform_11(%arg0: i32) -> (i32, i32) {
    %c0_i32 = arith.constant 0 : i32
    %c0_i32_0 = arith.constant 0 : i32
    %c0_i32_1 = arith.constant 0 : i32
    return %c0_i32, %c0_i32_0 : i32, i32
  }
  func.func @transform_12(%arg0: i32) -> (i32, i32) {
    %c0_i32 = arith.constant 0 : i32
    %c0_i32_0 = arith.constant 0 : i32
    %c0_i32_1 = arith.constant 0 : i32
    return %c0_i32, %c0_i32_0 : i32, i32
  }
  func.func @transform_13(%arg0: i32) -> (i32, i32, i32) {
    %c0_i32 = arith.constant 0 : i32
    %c0_i32_0 = arith.constant 0 : i32
    %c0_i32_1 = arith.constant 0 : i32
    return %arg0, %c0_i32, %c0_i32_0 : i32, i32, i32
  }
}

</mosaic_0001>

<llo_original>
// kernel: translator_noln_forward.3
$region0: #{translator_noln_forward.3}
  #allocation0 [shape = 'u32[]', space=smem, size = 0x4, offset = 0x4, fixed_abs, tag = 'smem constant byte address 0x4 - core index']
  #allocation1 [shape = 'u32[144,128]{1,0:T(1,128)}', space=vmem, size = 0x12000, scoped, tag = 'internal scratch']
  %s0 = inlined_call_operand.hbm [shape: f32[2,8,32], index: 0, kind: input, shape index: {}]
  %s1 = inlined_call_operand.hbm [shape: bf16[32,64], index: 1, kind: input, shape index: {}]
  %s2 = inlined_call_operand.hbm [shape: f32[1,64], index: 2, kind: input, shape index: {}]
  %s3 = inlined_call_operand.hbm [shape: bf16[64,64], index: 3, kind: input, shape index: {}]
  %s4 = inlined_call_operand.hbm [shape: f32[1,64], index: 4, kind: input, shape index: {}]
  %s5 = inlined_call_operand.hbm [shape: bf16[64,128], index: 5, kind: input, shape index: {}]
  %s6 = inlined_call_operand.hbm [shape: f32[1,128], index: 6, kind: input, shape index: {}]
  %s7 = inlined_call_operand.hbm [shape: bf16[16,8], index: 7, kind: input, shape index: {}]
  %s8 = inlined_call_operand.hbm [shape: f32[16,1], index: 8, kind: input, shape index: {}]
  %s9 = inlined_call_operand.hbm [shape: bf16[16,16], index: 9, kind: input, shape index: {}]
  %s10 = inlined_call_operand.hbm [shape: f32[16,1], index: 10, kind: input, shape index: {}]
  %s11 = inlined_call_operand.hbm [shape: bf16[8,16], index: 11, kind: input, shape index: {}]
  %s12 = inlined_call_operand.hbm [shape: f32[8,1], index: 12, kind: input, shape index: {}]
  %s13 = inlined_call_operand.hbm [shape: f32[2,8,128], index: 13, kind: output, shape index: {}]
  %s14 = sld [smem:[#allocation0]]
  $region114: #{translator_noln_forward.3} parent=0
    _
  %s16 = ssub.s32 1, %s14
  %s17 = scalar_select 0, %s16, %s14
  $region1: #{translator_noln_forward.3} parent=0
    #allocation2 [shape = 'u8[8192]{0}', space=vmem, size = 0x2000, scoped, tag = 'input window, operand 0, single buffered']
    #allocation3 [shape = 's32[1]{0}', space=sflag, size = 0x4, scoped, tag = 'scoped memory for translator_noln_forward.3']
    #allocation4 [shape = 's32[1]{0}', space=sflag, size = 0x4, scoped, tag = 'scoped memory for translator_noln_forward.3']
    #allocation5 [shape = 'u8[8192]{0}', space=vmem, size = 0x2000, scoped, tag = 'input window, operand 1, single buffered']
    #allocation6 [shape = 's32[1]{0}', space=sflag, size = 0x4, scoped, tag = 'scoped memory for translator_noln_forward.3']
    #allocation7 [shape = 'u8[512]{0}', space=vmem, size = 0x400, scoped, tag = 'input window, operand 2, single buffered']
    #allocation8 [shape = 'u8[16384]{0}', space=vmem, size = 0x4000, scoped, tag = 'input window, operand 3, single buffered']
    #allocation9 [shape = 's32[1]{0}', space=sflag, size = 0x4, scoped, tag = 'scoped memory for translator_noln_forward.3']
    #allocation10 [shape = 'u8[512]{0}', space=vmem, size = 0x400, scoped, tag = 'input window, operand 4, single buffered']
    #allocation11 [shape = 'u8[16384]{0}', space=vmem, size = 0x4000, scoped, tag = 'input window, operand 5, single buffered']
    #allocation12 [shape = 's32[1]{0}', space=sflag, size = 0x4, scoped, tag = 'scoped memory for translator_noln_forward.3']
    #allocation13 [shape = 'u8[512]{0}', space=vmem, size = 0x400, scoped, tag = 'input window, operand 6, single buffered']
    #allocation14 [shape = 'u8[4096]{0}', space=vmem, size = 0x1000, scoped, tag = 'input window, operand 7, single buffered']
    #allocation15 [shape = 's32[1]{0}', space=sflag, size = 0x4, scoped, tag = 'scoped memory for translator_noln_forward.3']
    #allocation16 [shape = 'u8[8192]{0}', space=vmem, size = 0x2000, scoped, tag = 'input window, operand 8, single buffered']
    #allocation17 [shape = 'u8[4096]{0}', space=vmem, size = 0x1000, scoped, tag = 'input window, operand 9, single buffered']
    #allocation18 [shape = 's32[1]{0}', space=sflag, size = 0x4, scoped, tag = 'scoped memory for translator_noln_forward.3']
    #allocation19 [shape = 'u8[8192]{0}', space=vmem, size = 0x2000, scoped, tag = 'input window, operand 10, single buffered']
    #allocation20 [shape = 'u8[2048]{0}', space=vmem, size = 0x800, scoped, tag = 'input window, operand 11, single buffered']
    #allocation21 [shape = 's32[1]{0}', space=sflag, size = 0x4, scoped, tag = 'scoped memory for translator_noln_forward.3']
    #allocation22 [shape = 'u8[4096]{0}', space=vmem, size = 0x1000, scoped, tag = 'input window, operand 12, single buffered']
    #allocation23 [shape = 'u8[8192]{0}', space=vmem, size = 0x2000, scoped, tag = 'output window, operand 0, single buffered']
    %18 = vsyncpa [#allocation3], 0
    %19 = vsyncpa [#allocation6], 0
    %20 = vsyncpa [#allocation9], 0
    %21 = vsyncpa [#allocation12], 0
    %22 = vsyncpa [#allocation15], 0
    %23 = vsyncpa [#allocation18], 0
    %24 = vsyncpa [#allocation21], 0
    %25 = vsyncpa [#allocation4], 0
    // Predicated region
    $region2: #{translator_noln_forward.3} parent=1 // pred_check
      _
    $region3: #{translator_noln_forward.3} parent=1 // pred_check_branch
      %27 = sbr.rel (0) target = $region5
    $region4: #{translator_noln_forward.3} parent=1 // pred_region
      %s29 = ssub.s32 256, 256
      %30 = vsyncadd [#allocation3], %s29
      %s31 = sshll.u32 [#allocation2], 4
      %s32 = int_to_ptr.vmem [resolvable:$true] %s31
      %37 = dma.hbm_to_vmem [thread:$0]  %s0, 256, %s32, [#allocation3], 128, 128, 8
    $region5: #{translator_noln_forward.3} parent=1 // pred_fallthru
      _
    // Predicated region
    $region6: #{translator_noln_forward.3} parent=1 // pred_check
      _
    $region7: #{translator_noln_forward.3} parent=1 // pred_check_branch
      %39 = sbr.rel (0) target = $region9
    $region8: #{translator_noln_forward.3} parent=1 // pred_region
      %s41 = ssub.s32 256, 256
      %42 = vsyncadd [#allocation6], %s41
      %s43 = sshll.u32 [#allocation5], 4
      %s44 = int_to_ptr.vmem [resolvable:$true] %s43
      %49 = dma.hbm_to_vmem [thread:$0]  %s1, 256, %s44, [#allocation6], 64, 64, 4
    $region9: #{translator_noln_forward.3} parent=1 // pred_fallthru
      _
    // Predicated region
    $region10: #{translator_noln_forward.3} parent=1 // pred_check
      _
    $region11: #{translator_noln_forward.3} parent=1 // pred_check_branch
      %51 = sbr.rel (0) target = $region13
    $region12: #{translator_noln_forward.3} parent=1 // pred_region
      %s53 = ssub.s32 16, 16
      %54 = vsyncadd [#allocation6], %s53
      %s56 = sshll.u32 [#allocation7], 4
      %s57 = int_to_ptr.vmem [resolvable:$true] %s56
      %59 = dma.hbm_to_vmem [thread:$0]  %s2, 16, %s57, [#allocation6]
    $region13: #{translator_noln_forward.3} parent=1 // pred_fallthru
      _
    // Predicated region
    $region14: #{translator_noln_forward.3} parent=1 // pred_check
      _
    $region15: #{translator_noln_forward.3} parent=1 // pred_check_branch
      %61 = sbr.rel (0) target = $region17
    $region16: #{translator_noln_forward.3} parent=1 // pred_region
      %s63 = ssub.s32 512, 512
      %64 = vsyncadd [#allocation9], %s63
      %s65 = sshll.u32 [#allocation8], 4
      %s66 = int_to_ptr.vmem [resolvable:$true] %s65
      %71 = dma.hbm_to_vmem [thread:$0]  %s3, 512, %s66, [#allocation9], 64, 64, 4
    $region17: #{translator_noln_forward.3} parent=1 // pred_fallthru
      _
    // Predicated region
    $region18: #{translator_noln_forward.3} parent=1 // pred_check
      _
    $region19: #{translator_noln_forward.3} parent=1 // pred_check_branch
      %73 = sbr.rel (0) target = $region21
    $region20: #{translator_noln_forward.3} parent=1 // pred_region
      %s75 = ssub.s32 16, 16
      %76 = vsyncadd [#allocation9], %s75
      %s78 = sshll.u32 [#allocation10], 4
      %s79 = int_to_ptr.vmem [resolvable:$true] %s78
      %81 = dma.hbm_to_vmem [thread:$0]  %s4, 16, %s79, [#allocation9]
    $region21: #{translator_noln_forward.3} parent=1 // pred_fallthru
      _
    // Predicated region
    $region22: #{translator_noln_forward.3} parent=1 // pred_check
      _
    $region23: #{translator_noln_forward.3} parent=1 // pred_check_branch
      %83 = sbr.rel (0) target = $region25
    $region24: #{translator_noln_forward.3} parent=1 // pred_region
      %s85 = ssub.s32 512, 512
      %86 = vsyncadd [#allocation12], %s85
      %s87 = sshll.u32 [#allocation11], 4
      %s88 = int_to_ptr.vmem [resolvable:$true] %s87
      %93 = dma.hbm_to_vmem [thread:$0]  %s5, 512, %s88, [#allocation12], 64, 64, 4
    $region25: #{translator_noln_forward.3} parent=1 // pred_fallthru
      _
    // Predicated region
    $region26: #{translator_noln_forward.3} parent=1 // pred_check
      _
    $region27: #{translator_noln_forward.3} parent=1 // pred_check_branch
      %95 = sbr.rel (0) target = $region29
    $region28: #{translator_noln_forward.3} parent=1 // pred_region
      %s97 = ssub.s32 16, 16
      %98 = vsyncadd [#allocation12], %s97
      %s100 = sshll.u32 [#allocation13], 4
      %s101 = int_to_ptr.vmem [resolvable:$true] %s100
      %103 = dma.hbm_to_vmem [thread:$0]  %s6, 16, %s101, [#allocation12]
    $region29: #{translator_noln_forward.3} parent=1 // pred_fallthru
      _
    // Predicated region
    $region30: #{translator_noln_forward.3} parent=1 // pred_check
      _
    $region31: #{translator_noln_forward.3} parent=1 // pred_check_branch
      %105 = sbr.rel (0) target = $region33
    $region32: #{translator_noln_forward.3} parent=1 // pred_region
      %s107 = ssub.s32 128, 128
      %108 = vsyncadd [#allocation15], %s107
      %s109 = sshll.u32 [#allocation14], 4
      %s110 = int_to_ptr.vmem [resolvable:$true] %s109
      %115 = dma.hbm_to_vmem [thread:$0]  %s7, 128, %s110, [#allocation15], 64, 64, 4
    $region33: #{translator_noln_forward.3} parent=1 // pred_fallthru
      _
    // Predicated region
    $region34: #{translator_noln_forward.3} parent=1 // pred_check
      _
    $region35: #{translator_noln_forward.3} parent=1 // pred_check_branch
      %117 = sbr.rel (0) target = $region37
    $region36: #{translator_noln_forward.3} parent=1 // pred_region
      %s119 = ssub.s32 256, 256
      %120 = vsyncadd [#allocation15], %s119
      %s121 = sshll.u32 [#allocation16], 4
      %s122 = int_to_ptr.vmem [resolvable:$true] %s121
      %127 = dma.hbm_to_vmem [thread:$0]  %s8, 256, %s122, [#allocation15], 128, 128, 8
    $region37: #{translator_noln_forward.3} parent=1 // pred_fallthru
      _
    // Predicated region
    $region38: #{translator_noln_forward.3} parent=1 // pred_check
      _
    $region39: #{translator_noln_forward.3} parent=1 // pred_check_branch
      %129 = sbr.rel (0) target = $region41
    $region40: #{translator_noln_forward.3} parent=1 // pred_region
      %s131 = ssub.s32 128, 128
      %132 = vsyncadd [#allocation18], %s131
      %s133 = sshll.u32 [#allocation17], 4
      %s134 = int_to_ptr.vmem [resolvable:$true] %s133
      %139 = dma.hbm_to_vmem [thread:$0]  %s9, 128, %s134, [#allocation18], 64, 64, 4
    $region41: #{translator_noln_forward.3} parent=1 // pred_fallthru
      _
    // Predicated region
    $region42: #{translator_noln_forward.3} parent=1 // pred_check
      _
    $region43: #{translator_noln_forward.3} parent=1 // pred_check_branch
      %141 = sbr.rel (0) target = $region45
    $region44: #{translator_noln_forward.3} parent=1 // pred_region
      %s143 = ssub.s32 256, 256
      %144 = vsyncadd [#allocation18], %s143
      %s145 = sshll.u32 [#allocation19], 4
      %s146 = int_to_ptr.vmem [resolvable:$true] %s145
      %151 = dma.hbm_to_vmem [thread:$0]  %s10, 256, %s146, [#allocation18], 128, 128, 8
    $region45: #{translator_noln_forward.3} parent=1 // pred_fallthru
      _
    // Predicated region
    $region46: #{translator_noln_forward.3} parent=1 // pred_check
      _
    $region47: #{translator_noln_forward.3} parent=1 // pred_check_branch
      %153 = sbr.rel (0) target = $region49
    $region48: #{translator_noln_forward.3} parent=1 // pred_region
      %s155 = ssub.s32 64, 64
      %156 = vsyncadd [#allocation21], %s155
      %s158 = sshll.u32 [#allocation20], 4
      %s159 = int_to_ptr.vmem [resolvable:$true] %s158
      %161 = dma.hbm_to_vmem [thread:$0]  %s11, 64, %s159, [#allocation21]
    $region49: #{translator_noln_forward.3} parent=1 // pred_fallthru
      _
    // Predicated region
    $region50: #{translator_noln_forward.3} parent=1 // pred_check
      _
    $region51: #{translator_noln_forward.3} parent=1 // pred_check_branch
      %163 = sbr.rel (0) target = $region53
    $region52: #{translator_noln_forward.3} parent=1 // pred_region
      %s165 = ssub.s32 128, 128
      %166 = vsyncadd [#allocation21], %s165
      %s168 = sshll.u32 [#allocation22], 4
      %s169 = int_to_ptr.vmem [resolvable:$true] %s168
      %171 = dma.hbm_to_vmem [thread:$0]  %s12, 128, %s169, [#allocation21]
    $region53: #{translator_noln_forward.3} parent=1 // pred_fallthru
      _
    // Predicated region
    $region54: #{translator_noln_forward.3} parent=1 // pred_check
      _
    $region55: #{translator_noln_forward.3} parent=1 // pred_check_branch
      %173 = sbr.rel (0) target = $region57
    $region56: #{translator_noln_forward.3} parent=1 // pred_region
      %174 = dma.done [#allocation3], 256
    $region57: #{translator_noln_forward.3} parent=1 // pred_fallthru
      _
    // Predicated region
    $region58: #{translator_noln_forward.3} parent=1 // pred_check
      _
    $region59: #{translator_noln_forward.3} parent=1 // pred_check_branch
      %176 = sbr.rel (0) target = $region61
    $region60: #{translator_noln_forward.3} parent=1 // pred_region
      %177 = dma.done [#allocation6], 256
    $region61: #{translator_noln_forward.3} parent=1 // pred_fallthru
      _
    // Predicated region
    $region62: #{translator_noln_forward.3} parent=1 // pred_check
      _
    $region63: #{translator_noln_forward.3} parent=1 // pred_check_branch
      %179 = sbr.rel (0) target = $region65
    $region64: #{translator_noln_forward.3} parent=1 // pred_region
      %180 = dma.done [#allocation6], 16
    $region65: #{translator_noln_forward.3} parent=1 // pred_fallthru
      _
    // Predicated region
    $region66: #{translator_noln_forward.3} parent=1 // pred_check
      _
    $region67: #{translator_noln_forward.3} parent=1 // pred_check_branch
      %182 = sbr.rel (0) target = $region69
    $region68: #{translator_noln_forward.3} parent=1 // pred_region
      %183 = dma.done [#allocation9], 512
    $region69: #{translator_noln_forward.3} parent=1 // pred_fallthru
      _
    // Predicated region
    $region70: #{translator_noln_forward.3} parent=1 // pred_check
      _
    $region71: #{translator_noln_forward.3} parent=1 // pred_check_branch
      %185 = sbr.rel (0) target = $region73
    $region72: #{translator_noln_forward.3} parent=1 // pred_region
      %186 = dma.done [#allocation9], 16
    $region73: #{translator_noln_forward.3} parent=1 // pred_fallthru
      _
    // Predicated region
    $region74: #{translator_noln_forward.3} parent=1 // pred_check
      _
    $region75: #{translator_noln_forward.3} parent=1 // pred_check_branch
      %188 = sbr.rel (0) target = $region77
    $region76: #{translator_noln_forward.3} parent=1 // pred_region
      %189 = dma.done [#allocation12], 512
    $region77: #{translator_noln_forward.3} parent=1 // pred_fallthru
      _
    // Predicated region
    $region78: #{translator_noln_forward.3} parent=1 // pred_check
      _
    $region79: #{translator_noln_forward.3} parent=1 // pred_check_branch
      %191 = sbr.rel (0) target = $region81
    $region80: #{translator_noln_forward.3} parent=1 // pred_region
      %192 = dma.done [#allocation12], 16
    $region81: #{translator_noln_forward.3} parent=1 // pred_fallthru
      _
    // Predicated region
    $region82: #{translator_noln_forward.3} parent=1 // pred_check
      _
    $region83: #{translator_noln_forward.3} parent=1 // pred_check_branch
      %194 = sbr.rel (0) target = $region85
    $region84: #{translator_noln_forward.3} parent=1 // pred_region
      %195 = dma.done [#allocation15], 128
    $region85: #{translator_noln_forward.3} parent=1 // pred_fallthru
      _
    // Predicated region
    $region86: #{translator_noln_forward.3} parent=1 // pred_check
      _
    $region87: #{translator_noln_forward.3} parent=1 // pred_check_branch
      %197 = sbr.rel (0) target = $region89
    $region88: #{translator_noln_forward.3} parent=1 // pred_region
      %198 = dma.done [#allocation15], 256
    $region89: #{translator_noln_forward.3} parent=1 // pred_fallthru
      _
    // Predicated region
    $region90: #{translator_noln_forward.3} parent=1 // pred_check
      _
    $region91: #{translator_noln_forward.3} parent=1 // pred_check_branch
      %200 = sbr.rel (0) target = $region93
    $region92: #{translator_noln_forward.3} parent=1 // pred_region
      %201 = dma.done [#allocation18], 128
    $region93: #{translator_noln_forward.3} parent=1 // pred_fallthru
      _
    // Predicated region
    $region94: #{translator_noln_forward.3} parent=1 // pred_check
      _
    $region95: #{translator_noln_forward.3} parent=1 // pred_check_branch
      %203 = sbr.rel (0) target = $region97
    $region96: #{translator_noln_forward.3} parent=1 // pred_region
      %204 = dma.done [#allocation18], 256
    $region97: #{translator_noln_forward.3} parent=1 // pred_fallthru
      _
    // Predicated region
    $region98: #{translator_noln_forward.3} parent=1 // pred_check
      _
    $region99: #{translator_noln_forward.3} parent=1 // pred_check_branch
      %206 = sbr.rel (0) target = $region101
    $region100: #{translator_noln_forward.3} parent=1 // pred_region
      %207 = dma.done [#allocation21], 64
    $region101: #{translator_noln_forward.3} parent=1 // pred_fallthru
      _
    // Predicated region
    $region102: #{translator_noln_forward.3} parent=1 // pred_check
      _
    $region103: #{translator_noln_forward.3} parent=1 // pred_check_branch
      %209 = sbr.rel (0) target = $region105
    $region104: #{translator_noln_forward.3} parent=1 // pred_region
      %210 = dma.done [#allocation21], 128
    $region105: #{translator_noln_forward.3} parent=1 // pred_fallthru
      _
    %v212 = vld [vmem:[#allocation5] sm:$0xf]
    %v213 = vld [vmem:[#allocation5 + $0x4] sm:$0xf]
    %v214 = vld [vmem:[#allocation5 + $0x8] sm:$0xf]
    %v215 = vld [vmem:[#allocation5 + $0xc] sm:$0xf]
    %v216 = vld [vmem:[#allocation7] sm:$0x1]
    %v217 = vld [vmem:[#allocation8] sm:$0xf]
    %v218 = vld [vmem:[#allocation8 + $0x4] sm:$0xf]
    %v219 = vld [vmem:[#allocation8 + $0x8] sm:$0xf]
    %v220 = vld [vmem:[#allocation8 + $0xc] sm:$0xf]
    %v221 = vld [vmem:[#allocation8 + $0x10] sm:$0xf]
    %v222 = vld [vmem:[#allocation8 + $0x14] sm:$0xf]
    %v223 = vld [vmem:[#allocation8 + $0x18] sm:$0xf]
    %v224 = vld [vmem:[#allocation8 + $0x1c] sm:$0xf]
    %v225 = vld [vmem:[#allocation10] sm:$0x1]
    %v226 = vld [vmem:[#allocation11] sm:$0xf]
    %v227 = vld [vmem:[#allocation11 + $0x4] sm:$0xf]
    %v228 = vld [vmem:[#allocation11 + $0x8] sm:$0xf]
    %v229 = vld [vmem:[#allocation11 + $0xc] sm:$0xf]
    %v230 = vld [vmem:[#allocation11 + $0x10] sm:$0xf]
    %v231 = vld [vmem:[#allocation11 + $0x14] sm:$0xf]
    %v232 = vld [vmem:[#allocation11 + $0x18] sm:$0xf]
    %v233 = vld [vmem:[#allocation11 + $0x1c] sm:$0xf]
    %v234 = vld [vmem:[#allocation13] sm:$0x1]
    %v235 = vld [vmem:[#allocation14] sm:$0xf]
    %v236 = vld [vmem:[#allocation14 + $0x4] sm:$0xf]
    %v237 = vld [vmem:[#allocation16] sm:$0xff]
    %v238 = vld [vmem:[#allocation16 + $0x8] sm:$0xff]
    %v239 = vld [vmem:[#allocation17] sm:$0xf]
    %v240 = vld [vmem:[#allocation17 + $0x4] sm:$0xf]
    %v241 = vld [vmem:[#allocation19] sm:$0xff]
    %v242 = vld [vmem:[#allocation19 + $0x8] sm:$0xff]
    %v243 = vld [vmem:[#allocation20] sm:$0xf]
    %v244 = vld [vmem:[#allocation22] sm:$0xff]
    %v245 = vld [vmem:[#allocation2] sm:$0xff]
    %v246 = vld [vmem:[#allocation2 + $0x8] sm:$0xff]
    %v247 = vpack.c.bf16 %v246, %v245
    %v249 = vlaneseq
    %v250 = vshrl.u32 %v249, 7
    %v251 = vsub.s32 0, %v250
    %v252 = vrot.slane %v216, %v251
    %v258 = vunpack.c.l.b16 %v212
    %v259 = vunpack.c.l.b16 %v213
    %v260 = vunpack.c.l.b16 %v214
    %v261 = vunpack.c.l.b16 %v215
    %v262 = vpack.c.b16 %v259, %v258
    %v263 = vpack.c.b16 %v261, %v260
    %vm266 = vcmask 261120
    %v268 = vsel %vm266, %v247, 0
    %270 = vmatprep.subr.bf16.mxu0 0
    %271 = vmatpush1.bf16.msra.mxu0 %v262
    %272 = vmatprep.subr.bf16.mxu0 0
    %273 = vmatpush1.bf16.msra.mxu0 %v263
    %274 = vmatprep.subr.bf16.mxu0 0
    %275 = vmatpush1.bf16.msra.mxu0 0
    %276 = vmatprep.subr.bf16.mxu0 0
    %277 = vmatpush1.bf16.msra.mxu0 0
    %278 = vmatprep.subr.bf16.mxu0 0
    %279 = vmatpush1.bf16.msra.mxu0 0
    %280 = vmatprep.subr.bf16.mxu0 0
    %281 = vmatpush1.bf16.msra.mxu0 0
    %282 = vmatprep.subr.bf16.mxu0 0
    %283 = vmatpush1.bf16.msra.mxu0 0
    %284 = vmatprep.subr.bf16.mxu0 0
    %285 = vmatpush1.bf16.msra.mxu0 0
    %286 = vmatprep.subr.bf16.mxu0 0
    %287 = vmatpush1.bf16.msra.mxu0 0
    %288 = vmatprep.subr.bf16.mxu0 0
    %289 = vmatpush1.bf16.msra.mxu0 0
    %290 = vmatprep.subr.bf16.mxu0 0
    %291 = vmatpush1.bf16.msra.mxu0 0
    %292 = vmatprep.subr.bf16.mxu0 0
    %293 = vmatpush1.bf16.msra.mxu0 0
    %294 = vmatprep.subr.bf16.mxu0 0
    %295 = vmatpush1.bf16.msra.mxu0 0
    %296 = vmatprep.subr.bf16.mxu0 0
    %297 = vmatpush1.bf16.msra.mxu0 0
    %298 = vmatprep.subr.bf16.mxu0 0
    %299 = vmatpush1.bf16.msra.mxu0 0
    %300 = vmatprep.subr.bf16.mxu0 0
    %301 = vmatpush1.bf16.msra.mxu0 0
    %302 = vmatprep.mubr.bf16.mxu0 0
    %303 = vmatmul.mubr.bf16.gmra.mrb[0].mxu0 %v268
    %v304 = vpop.f32.mrb[0].mxu0
    %v305 = vadd.f32 %v252, %v304
    %v306 = vpop.f32.mrb[0].mxu0
    %v307 = vpop.f32.mrb[0].mxu0
    %v308 = vadd.f32 %v252, %v307
    %v309 = vpop.f32.mrb[0].mxu0
    %310 = vdwg.mxu0
    %v311 = vmul.f32 %v305, 0.5
    %v312 = vmul.f32 %v308, 0.5
    %v313 = vmul.f32 %v305, 0.70710677
    %v314 = vmul.f32 %v308, 0.70710677
    %v315 = vand.u32 2147483647, %v313
    %v316 = vand.u32 2147483647, %v314
    %v317 = vmul.f32 %v315, 0.3275911
    %v318 = vmul.f32 %v316, 0.3275911
    %v319 = vadd.f32 %v317, 1.0
    %v320 = vadd.f32 %v318, 1.0
    %v321 = vrcp.pop %v319
    %v322 = vmul.f32 1.0, %v321
    %v323 = vrcp.pop %v320
    %v324 = vmul.f32 1.0, %v323
    %v325 = vmul.f32 %v322, 1.0614054
    %v326 = vmul.f32 %v324, 1.0614054
    %v327 = vadd.f32 %v325, -1.4531521
    %v328 = vadd.f32 %v326, -1.4531521
    %v329 = vmul.f32 %v327, %v322
    %v330 = vmul.f32 %v328, %v324
    %v331 = vadd.f32 %v329, 1.4214138
    %v332 = vadd.f32 %v330, 1.4214138
    %v333 = vmul.f32 %v331, %v322
    %v334 = vmul.f32 %v332, %v324
    %v335 = vadd.f32 %v333, -0.28449672
    %v336 = vadd.f32 %v334, -0.28449672
    %v337 = vmul.f32 %v335, %v322
    %v338 = vmul.f32 %v336, %v324
    %v339 = vadd.f32 %v337, 0.2548296
    %v340 = vadd.f32 %v338, 0.2548296
    %v341 = vmul.f32 %v339, %v322
    %v342 = vmul.f32 %v340, %v324
    %v343 = vsub.f32 0.0, %v315
    %v344 = vsub.f32 0.0, %v316
    %v345 = vmul.f32 %v343, %v315
    %v346 = vmul.f32 %v344, %v316
    %v347 = vmul.f32 %v345, 1.442695
    %v348 = vpow.pop %v347
    %v349 = vmul.f32 %v346, 1.442695
    %v350 = vpow.pop %v349
    %v351 = vmul.f32 %v341, %v348
    %v352 = vmul.f32 %v342, %v350
    %v353 = vsub.f32 1.0, %v351
    %v354 = vsub.f32 1.0, %v352
    %vm355 = vcmp.ge.f32.partialorder %v313, 0.0
    %vm356 = vcmp.ge.f32.partialorder %v314, 0.0
    %v357 = vsub.f32 0.0, %v353
    %v358 = vsub.f32 0.0, %v354
    %v359 = vsel %vm355, %v353, %v357
    %v360 = vsel %vm356, %v354, %v358
    %v361 = vadd.f32 %v359, 1.0
    %v362 = vadd.f32 %v360, 1.0
    %v363 = vmul.f32 %v311, %v361
    %v364 = vmul.f32 %v312, %v362
    %v365 = vpack.c.bf16 %v364, %v363
    %v367 = vlaneseq
    %v368 = vshrl.u32 %v367, 7
    %v369 = vsub.s32 0, %v368
    %v370 = vrot.slane %v225, %v369
    %v380 = vunpack.c.l.b16 %v217
    %v381 = vunpack.c.l.b16 %v218
    %v382 = vunpack.c.l.b16 %v219
    %v383 = vunpack.c.l.b16 %v220
    %v384 = vunpack.c.l.b16 %v221
    %v385 = vunpack.c.l.b16 %v222
    %v386 = vunpack.c.l.b16 %v223
    %v387 = vunpack.c.l.b16 %v224
    %v388 = vpack.c.b16 %v381, %v380
    %v389 = vpack.c.b16 %v383, %v382
    %v390 = vpack.c.b16 %v385, %v384
    %v391 = vpack.c.b16 %v387, %v386
    %vm396 = vcmask 523264
    %v398 = vsel %vm396, %v365, 0
    %400 = vmatprep.subr.bf16.mxu0 0
    %401 = vmatpush1.bf16.msra.mxu0 %v388
    %402 = vmatprep.subr.bf16.mxu0 0
    %403 = vmatpush1.bf16.msra.mxu0 %v389
    %404 = vmatprep.subr.bf16.mxu0 0
    %405 = vmatpush1.bf16.msra.mxu0 %v390
    %406 = vmatprep.subr.bf16.mxu0 0
    %407 = vmatpush1.bf16.msra.mxu0 %v391
    %408 = vmatprep.subr.bf16.mxu0 0
    %409 = vmatpush1.bf16.msra.mxu0 0
    %410 = vmatprep.subr.bf16.mxu0 0
    %411 = vmatpush1.bf16.msra.mxu0 0
    %412 = vmatprep.subr.bf16.mxu0 0
    %413 = vmatpush1.bf16.msra.mxu0 0
    %414 = vmatprep.subr.bf16.mxu0 0
    %415 = vmatpush1.bf16.msra.mxu0 0
    %416 = vmatprep.subr.bf16.mxu0 0
    %417 = vmatpush1.bf16.msra.mxu0 0
    %418 = vmatprep.subr.bf16.mxu0 0
    %419 = vmatpush1.bf16.msra.mxu0 0
    %420 = vmatprep.subr.bf16.mxu0 0
    %421 = vmatpush1.bf16.msra.mxu0 0
    %422 = vmatprep.subr.bf16.mxu0 0
    %423 = vmatpush1.bf16.msra.mxu0 0
    %424 = vmatprep.subr.bf16.mxu0 0
    %425 = vmatpush1.bf16.msra.mxu0 0
    %426 = vmatprep.subr.bf16.mxu0 0
    %427 = vmatpush1.bf16.msra.mxu0 0
    %428 = vmatprep.subr.bf16.mxu0 0
    %429 = vmatpush1.bf16.msra.mxu0 0
    %430 = vmatprep.subr.bf16.mxu0 0
    %431 = vmatpush1.bf16.msra.mxu0 0
    %432 = vmatprep.mubr.bf16.mxu0 0
    %433 = vmatmul.mubr.bf16.gmra.mrb[0].mxu0 %v398
    %v434 = vpop.f32.mrb[0].mxu0
    %v435 = vadd.f32 %v370, %v434
    %v436 = vpop.f32.mrb[0].mxu0
    %v437 = vpop.f32.mrb[0].mxu0
    %v438 = vadd.f32 %v370, %v437
    %v439 = vpop.f32.mrb[0].mxu0
    %440 = vdwg.mxu0
    %v441 = vmul.f32 %v435, 0.5
    %v442 = vmul.f32 %v438, 0.5
    %v443 = vmul.f32 %v435, 0.70710677
    %v444 = vmul.f32 %v438, 0.70710677
    %v445 = vand.u32 2147483647, %v443
    %v446 = vand.u32 2147483647, %v444
    %v447 = vmul.f32 %v445, 0.3275911
    %v448 = vmul.f32 %v446, 0.3275911
    %v449 = vadd.f32 %v447, 1.0
    %v450 = vadd.f32 %v448, 1.0
    %v451 = vrcp.pop %v449
    %v452 = vmul.f32 1.0, %v451
    %v453 = vrcp.pop %v450
    %v454 = vmul.f32 1.0, %v453
    %v455 = vmul.f32 %v452, 1.0614054
    %v456 = vmul.f32 %v454, 1.0614054
    %v457 = vadd.f32 %v455, -1.4531521
    %v458 = vadd.f32 %v456, -1.4531521
    %v459 = vmul.f32 %v457, %v452
    %v460 = vmul.f32 %v458, %v454
    %v461 = vadd.f32 %v459, 1.4214138
    %v462 = vadd.f32 %v460, 1.4214138
    %v463 = vmul.f32 %v461, %v452
    %v464 = vmul.f32 %v462, %v454
    %v465 = vadd.f32 %v463, -0.28449672
    %v466 = vadd.f32 %v464, -0.28449672
    %v467 = vmul.f32 %v465, %v452
    %v468 = vmul.f32 %v466, %v454
    %v469 = vadd.f32 %v467, 0.2548296
    %v470 = vadd.f32 %v468, 0.2548296
    %v471 = vmul.f32 %v469, %v452
    %v472 = vmul.f32 %v470, %v454
    %v473 = vsub.f32 0.0, %v445
    %v474 = vsub.f32 0.0, %v446
    %v475 = vmul.f32 %v473, %v445
    %v476 = vmul.f32 %v474, %v446
    %v477 = vmul.f32 %v475, 1.442695
    %v478 = vpow.pop %v477
    %v479 = vmul.f32 %v476, 1.442695
    %v480 = vpow.pop %v479
    %v481 = vmul.f32 %v471, %v478
    %v482 = vmul.f32 %v472, %v480
    %v483 = vsub.f32 1.0, %v481
    %v484 = vsub.f32 1.0, %v482
    %vm485 = vcmp.ge.f32.partialorder %v443, 0.0
    %vm486 = vcmp.ge.f32.partialorder %v444, 0.0
    %v487 = vsub.f32 0.0, %v483
    %v488 = vsub.f32 0.0, %v484
    %v489 = vsel %vm485, %v483, %v487
    %v490 = vsel %vm486, %v484, %v488
    %v491 = vadd.f32 %v489, 1.0
    %v492 = vadd.f32 %v490, 1.0
    %v493 = vmul.f32 %v441, %v491
    %v494 = vmul.f32 %v442, %v492
    %v495 = vpack.c.bf16 %v494, %v493
    %v497 = vlaneseq
    %v498 = vshrl.u32 %v497, 7
    %v499 = vsub.s32 0, %v498
    %v500 = vrot.slane %v234, %v499
    %v510 = vunpack.c.l.b16 %v226
    %v511 = vunpack.c.l.b16 %v227
    %v512 = vunpack.c.l.b16 %v228
    %v513 = vunpack.c.l.b16 %v229
    %v514 = vunpack.c.l.b16 %v230
    %v515 = vunpack.c.l.b16 %v231
    %v516 = vunpack.c.l.b16 %v232
    %v517 = vunpack.c.l.b16 %v233
    %v518 = vpack.c.b16 %v511, %v510
    %v519 = vpack.c.b16 %v513, %v512
    %v520 = vpack.c.b16 %v515, %v514
    %v521 = vpack.c.b16 %v517, %v516
    %v527 = vsel %vm396, %v495, 0
    %529 = vmatprep.subr.bf16.mxu0 0
    %530 = vmatpush1.bf16.msra.mxu0 %v518
    %531 = vmatprep.subr.bf16.mxu0 0
    %532 = vmatpush1.bf16.msra.mxu0 %v519
    %533 = vmatprep.subr.bf16.mxu0 0
    %534 = vmatpush1.bf16.msra.mxu0 %v520
    %535 = vmatprep.subr.bf16.mxu0 0
    %536 = vmatpush1.bf16.msra.mxu0 %v521
    %537 = vmatprep.subr.bf16.mxu0 0
    %538 = vmatpush1.bf16.msra.mxu0 0
    %539 = vmatprep.subr.bf16.mxu0 0
    %540 = vmatpush1.bf16.msra.mxu0 0
    %541 = vmatprep.subr.bf16.mxu0 0
    %542 = vmatpush1.bf16.msra.mxu0 0
    %543 = vmatprep.subr.bf16.mxu0 0
    %544 = vmatpush1.bf16.msra.mxu0 0
    %545 = vmatprep.subr.bf16.mxu0 0
    %546 = vmatpush1.bf16.msra.mxu0 0
    %547 = vmatprep.subr.bf16.mxu0 0
    %548 = vmatpush1.bf16.msra.mxu0 0
    %549 = vmatprep.subr.bf16.mxu0 0
    %550 = vmatpush1.bf16.msra.mxu0 0
    %551 = vmatprep.subr.bf16.mxu0 0
    %552 = vmatpush1.bf16.msra.mxu0 0
    %553 = vmatprep.subr.bf16.mxu0 0
    %554 = vmatpush1.bf16.msra.mxu0 0
    %555 = vmatprep.subr.bf16.mxu0 0
    %556 = vmatpush1.bf16.msra.mxu0 0
    %557 = vmatprep.subr.bf16.mxu0 0
    %558 = vmatpush1.bf16.msra.mxu0 0
    %559 = vmatprep.subr.bf16.mxu0 0
    %560 = vmatpush1.bf16.msra.mxu0 0
    %561 = vmatprep.mubr.bf16.mxu0 0
    %562 = vmatmul.mubr.bf16.gmra.mrb[0].mxu0 %v527
    %v563 = vpop.f32.mrb[0].mxu0
    %v564 = vadd.f32 %v500, %v563
    %v565 = vpop.f32.mrb[0].mxu0
    %v566 = vpop.f32.mrb[0].mxu0
    %v567 = vadd.f32 %v500, %v566
    %v568 = vpop.f32.mrb[0].mxu0
    %569 = vdwg.mxu0
    %v570 = vpack.c.bf16 %v564, %v564
    %572 = vset.pattern.permute.xlu0 0
    %573 = vperm.xlu0 %572, %v237
    %v574 = vpop.permute.xlu0 %573
    %577 = vset.pattern.permute.xlu0 0
    %578 = vperm.xlu0 %577, %v238
    %v579 = vpop.permute.xlu0 %578
    %v583 = vunpack.c.l.b16 %v235
    %v584 = vunpack.c.l.b16 %v236
    %v585 = vpack.c.b16 %v584, %v583
    %vm586 = vcmask 64512
    %v588 = vsel %vm586, %v585, 0
    %vm590 = vcmask 1043456
    %v592 = vsel %vm590, %v570, 0
    %594 = vmatprep.subr.bf16.mxu0 0
    %595 = vmatpush1.bf16.msra.mxu0 %v592
    %596 = vmatprep.subr.bf16.mxu0 0
    %597 = vmatpush1.bf16.msra.mxu0 0
    %598 = vmatprep.subr.bf16.mxu0 0
    %599 = vmatpush1.bf16.msra.mxu0 0
    %600 = vmatprep.subr.bf16.mxu0 0
    %601 = vmatpush1.bf16.msra.mxu0 0
    %602 = vmatprep.subr.bf16.mxu0 0
    %603 = vmatpush1.bf16.msra.mxu0 0
    %604 = vmatprep.subr.bf16.mxu0 0
    %605 = vmatpush1.bf16.msra.mxu0 0
    %606 = vmatprep.subr.bf16.mxu0 0
    %607 = vmatpush1.bf16.msra.mxu0 0
    %608 = vmatprep.subr.bf16.mxu0 0
    %609 = vmatpush1.bf16.msra.mxu0 0
    %610 = vmatprep.subr.bf16.mxu0 0
    %611 = vmatpush1.bf16.msra.mxu0 0
    %612 = vmatprep.subr.bf16.mxu0 0
    %613 = vmatpush1.bf16.msra.mxu0 0
    %614 = vmatprep.subr.bf16.mxu0 0
    %615 = vmatpush1.bf16.msra.mxu0 0
    %616 = vmatprep.subr.bf16.mxu0 0
    %617 = vmatpush1.bf16.msra.mxu0 0
    %618 = vmatprep.subr.bf16.mxu0 0
    %619 = vmatpush1.bf16.msra.mxu0 0
    %620 = vmatprep.subr.bf16.mxu0 0
    %621 = vmatpush1.bf16.msra.mxu0 0
    %622 = vmatprep.subr.bf16.mxu0 0
    %623 = vmatpush1.bf16.msra.mxu0 0
    %624 = vmatprep.subr.bf16.mxu0 0
    %625 = vmatpush1.bf16.msra.mxu0 0
    %626 = vmatprep.mubr.bf16.mxu0 0
    %627 = vmatmul.mubr.bf16.gmra.mrb[0].mxu0 %v588
    %v628 = vpop.f32.mrb[0].mxu0
    %v629 = vadd.f32 %v574, %v628
    %v630 = vpop.f32.mrb[0].mxu0
    %v631 = vpop.f32.mrb[0].mxu0
    %v632 = vadd.f32 %v579, %v631
    %v633 = vpop.f32.mrb[0].mxu0
    %634 = vdwg.mxu0
    %v635 = vmul.f32 %v629, 0.5
    %v636 = vmul.f32 %v632, 0.5
    %v637 = vmul.f32 %v629, 0.70710677
    %v638 = vmul.f32 %v632, 0.70710677
    %v639 = vand.u32 2147483647, %v637
    %v640 = vand.u32 2147483647, %v638
    %v641 = vmul.f32 %v639, 0.3275911
    %v642 = vmul.f32 %v640, 0.3275911
    %v643 = vadd.f32 %v641, 1.0
    %v644 = vadd.f32 %v642, 1.0
    %v645 = vrcp.pop %v643
    %v646 = vmul.f32 1.0, %v645
    %v647 = vrcp.pop %v644
    %v648 = vmul.f32 1.0, %v647
    %v649 = vmul.f32 %v646, 1.0614054
    %v650 = vmul.f32 %v648, 1.0614054
    %v651 = vadd.f32 %v649, -1.4531521
    %v652 = vadd.f32 %v650, -1.4531521
    %v653 = vmul.f32 %v651, %v646
    %v654 = vmul.f32 %v652, %v648
    %v655 = vadd.f32 %v653, 1.4214138
    %v656 = vadd.f32 %v654, 1.4214138
    %v657 = vmul.f32 %v655, %v646
    %v658 = vmul.f32 %v656, %v648
    %v659 = vadd.f32 %v657, -0.28449672
    %v660 = vadd.f32 %v658, -0.28449672
    %v661 = vmul.f32 %v659, %v646
    %v662 = vmul.f32 %v660, %v648
    %v663 = vadd.f32 %v661, 0.2548296
    %v664 = vadd.f32 %v662, 0.2548296
    %v665 = vmul.f32 %v663, %v646
    %v666 = vmul.f32 %v664, %v648
    %v667 = vsub.f32 0.0, %v639
    %v668 = vsub.f32 0.0, %v640
    %v669 = vmul.f32 %v667, %v639
    %v670 = vmul.f32 %v668, %v640
    %v671 = vmul.f32 %v669, 1.442695
    %v672 = vpow.pop %v671
    %v673 = vmul.f32 %v670, 1.442695
    %v674 = vpow.pop %v673
    %v675 = vmul.f32 %v665, %v672
    %v676 = vmul.f32 %v666, %v674
    %v677 = vsub.f32 1.0, %v675
    %v678 = vsub.f32 1.0, %v676
    %vm679 = vcmp.ge.f32.partialorder %v637, 0.0
    %vm680 = vcmp.ge.f32.partialorder %v638, 0.0
    %v681 = vsub.f32 0.0, %v677
    %v682 = vsub.f32 0.0, %v678
    %v683 = vsel %vm679, %v677, %v681
    %v684 = vsel %vm680, %v678, %v682
    %v685 = vadd.f32 %v683, 1.0
    %v686 = vadd.f32 %v684, 1.0
    %v687 = vmul.f32 %v635, %v685
    %v688 = vmul.f32 %v636, %v686
    %v689 = vpack.c.bf16 %v688, %v687
    %691 = vset.pattern.permute.xlu0 0
    %692 = vperm.xlu0 %691, %v241
    %v693 = vpop.permute.xlu0 %692
    %696 = vset.pattern.permute.xlu0 0
    %697 = vperm.xlu0 %696, %v242
    %v698 = vpop.permute.xlu0 %697
    %v702 = vunpack.c.l.b16 %v239
    %v703 = vunpack.c.l.b16 %v240
    %v704 = vpack.c.b16 %v703, %v702
    %vm705 = vcmask 130048
    %v707 = vsel %vm705, %v704, 0
    %709 = vmatprep.subr.bf16.mxu0 0
    %710 = vmatpush1.bf16.msra.mxu0 %v689
    %711 = vmatprep.subr.bf16.mxu0 0
    %712 = vmatpush1.bf16.msra.mxu0 0
    %713 = vmatprep.subr.bf16.mxu0 0
    %714 = vmatpush1.bf16.msra.mxu0 0
    %715 = vmatprep.subr.bf16.mxu0 0
    %716 = vmatpush1.bf16.msra.mxu0 0
    %717 = vmatprep.subr.bf16.mxu0 0
    %718 = vmatpush1.bf16.msra.mxu0 0
    %719 = vmatprep.subr.bf16.mxu0 0
    %720 = vmatpush1.bf16.msra.mxu0 0
    %721 = vmatprep.subr.bf16.mxu0 0
    %722 = vmatpush1.bf16.msra.mxu0 0
    %723 = vmatprep.subr.bf16.mxu0 0
    %724 = vmatpush1.bf16.msra.mxu0 0
    %725 = vmatprep.subr.bf16.mxu0 0
    %726 = vmatpush1.bf16.msra.mxu0 0
    %727 = vmatprep.subr.bf16.mxu0 0
    %728 = vmatpush1.bf16.msra.mxu0 0
    %729 = vmatprep.subr.bf16.mxu0 0
    %730 = vmatpush1.bf16.msra.mxu0 0
    %731 = vmatprep.subr.bf16.mxu0 0
    %732 = vmatpush1.bf16.msra.mxu0 0
    %733 = vmatprep.subr.bf16.mxu0 0
    %734 = vmatpush1.bf16.msra.mxu0 0
    %735 = vmatprep.subr.bf16.mxu0 0
    %736 = vmatpush1.bf16.msra.mxu0 0
    %737 = vmatprep.subr.bf16.mxu0 0
    %738 = vmatpush1.bf16.msra.mxu0 0
    %739 = vmatprep.subr.bf16.mxu0 0
    %740 = vmatpush1.bf16.msra.mxu0 0
    %741 = vmatprep.mubr.bf16.mxu0 0
    %742 = vmatmul.mubr.bf16.gmra.mrb[0].mxu0 %v707
    %v743 = vpop.f32.mrb[0].mxu0
    %v744 = vadd.f32 %v693, %v743
    %v745 = vpop.f32.mrb[0].mxu0
    %v746 = vpop.f32.mrb[0].mxu0
    %v747 = vadd.f32 %v698, %v746
    %v748 = vpop.f32.mrb[0].mxu0
    %749 = vdwg.mxu0
    %v750 = vmul.f32 %v744, 0.5
    %v751 = vmul.f32 %v747, 0.5
    %v752 = vmul.f32 %v744, 0.70710677
    %v753 = vmul.f32 %v747, 0.70710677
    %v754 = vand.u32 2147483647, %v752
    %v755 = vand.u32 2147483647, %v753
    %v756 = vmul.f32 %v754, 0.3275911
    %v757 = vmul.f32 %v755, 0.3275911
    %v758 = vadd.f32 %v756, 1.0
    %v759 = vadd.f32 %v757, 1.0
    %v760 = vrcp.pop %v758
    %v761 = vmul.f32 1.0, %v760
    %v762 = vrcp.pop %v759
    %v763 = vmul.f32 1.0, %v762
    %v764 = vmul.f32 %v761, 1.0614054
    %v765 = vmul.f32 %v763, 1.0614054
    %v766 = vadd.f32 %v764, -1.4531521
    %v767 = vadd.f32 %v765, -1.4531521
    %v768 = vmul.f32 %v766, %v761
    %v769 = vmul.f32 %v767, %v763
    %v770 = vadd.f32 %v768, 1.4214138
    %v771 = vadd.f32 %v769, 1.4214138
    %v772 = vmul.f32 %v770, %v761
    %v773 = vmul.f32 %v771, %v763
    %v774 = vadd.f32 %v772, -0.28449672
    %v775 = vadd.f32 %v773, -0.28449672
    %v776 = vmul.f32 %v774, %v761
    %v777 = vmul.f32 %v775, %v763
    %v778 = vadd.f32 %v776, 0.2548296
    %v779 = vadd.f32 %v777, 0.2548296
    %v780 = vmul.f32 %v778, %v761
    %v781 = vmul.f32 %v779, %v763
    %v782 = vsub.f32 0.0, %v754
    %v783 = vsub.f32 0.0, %v755
    %v784 = vmul.f32 %v782, %v754
    %v785 = vmul.f32 %v783, %v755
    %v786 = vmul.f32 %v784, 1.442695
    %v787 = vpow.pop %v786
    %v788 = vmul.f32 %v785, 1.442695
    %v789 = vpow.pop %v788
    %v790 = vmul.f32 %v780, %v787
    %v791 = vmul.f32 %v781, %v789
    %v792 = vsub.f32 1.0, %v790
    %v793 = vsub.f32 1.0, %v791
    %vm794 = vcmp.ge.f32.partialorder %v752, 0.0
    %vm795 = vcmp.ge.f32.partialorder %v753, 0.0
    %v796 = vsub.f32 0.0, %v792
    %v797 = vsub.f32 0.0, %v793
    %v798 = vsel %vm794, %v792, %v796
    %v799 = vsel %vm795, %v793, %v797
    %v800 = vadd.f32 %v798, 1.0
    %v801 = vadd.f32 %v799, 1.0
    %v802 = vmul.f32 %v750, %v800
    %v803 = vmul.f32 %v751, %v801
    %v804 = vpack.c.bf16 %v803, %v802
    %806 = vset.pattern.permute.xlu0 0
    %807 = vperm.xlu0 %806, %v244
    %v808 = vpop.permute.xlu0 %807
    %v811 = vsel %vm705, %v243, 0
    %813 = vmatprep.subr.bf16.mxu0 0
    %814 = vmatpush1.bf16.msra.mxu0 %v804
    %815 = vmatprep.subr.bf16.mxu0 0
    %816 = vmatpush1.bf16.msra.mxu0 0
    %817 = vmatprep.subr.bf16.mxu0 0
    %818 = vmatpush1.bf16.msra.mxu0 0
    %819 = vmatprep.subr.bf16.mxu0 0
    %820 = vmatpush1.bf16.msra.mxu0 0
    %821 = vmatprep.subr.bf16.mxu0 0
    %822 = vmatpush1.bf16.msra.mxu0 0
    %823 = vmatprep.subr.bf16.mxu0 0
    %824 = vmatpush1.bf16.msra.mxu0 0
    %825 = vmatprep.subr.bf16.mxu0 0
    %826 = vmatpush1.bf16.msra.mxu0 0
    %827 = vmatprep.subr.bf16.mxu0 0
    %828 = vmatpush1.bf16.msra.mxu0 0
    %829 = vmatprep.subr.bf16.mxu0 0
    %830 = vmatpush1.bf16.msra.mxu0 0
    %831 = vmatprep.subr.bf16.mxu0 0
    %832 = vmatpush1.bf16.msra.mxu0 0
    %833 = vmatprep.subr.bf16.mxu0 0
    %834 = vmatpush1.bf16.msra.mxu0 0
    %835 = vmatprep.subr.bf16.mxu0 0
    %836 = vmatpush1.bf16.msra.mxu0 0
    %837 = vmatprep.subr.bf16.mxu0 0
    %838 = vmatpush1.bf16.msra.mxu0 0
    %839 = vmatprep.subr.bf16.mxu0 0
    %840 = vmatpush1.bf16.msra.mxu0 0
    %841 = vmatprep.subr.bf16.mxu0 0
    %842 = vmatpush1.bf16.msra.mxu0 0
    %843 = vmatprep.subr.bf16.mxu0 0
    %844 = vmatpush1.bf16.msra.mxu0 0
    %845 = vmatprep.mubr.bf16.mxu0 0
    %846 = vmatmul.mubr.bf16.gmra.mrb[0].mxu0 %v811
    %v847 = vpop.f32.mrb[0].mxu0
    %v848 = vadd.f32 %v808, %v847
    %v849 = vpop.f32.mrb[0].mxu0
    %v850 = vpop.f32.mrb[0].mxu0
    %v851 = vpop.f32.mrb[0].mxu0
    %852 = vdwg.mxu0
    %v853 = vpack.c.bf16 %v567, %v567
    %v855 = vsel %vm590, %v853, 0
    %857 = vmatprep.subr.bf16.mxu0 0
    %858 = vmatpush1.bf16.msra.mxu0 %v855
    %859 = vmatprep.subr.bf16.mxu0 0
    %860 = vmatpush1.bf16.msra.mxu0 0
    %861 = vmatprep.subr.bf16.mxu0 0
    %862 = vmatpush1.bf16.msra.mxu0 0
    %863 = vmatprep.subr.bf16.mxu0 0
    %864 = vmatpush1.bf16.msra.mxu0 0
    %865 = vmatprep.subr.bf16.mxu0 0
    %866 = vmatpush1.bf16.msra.mxu0 0
    %867 = vmatprep.subr.bf16.mxu0 0
    %868 = vmatpush1.bf16.msra.mxu0 0
    %869 = vmatprep.subr.bf16.mxu0 0
    %870 = vmatpush1.bf16.msra.mxu0 0
    %871 = vmatprep.subr.bf16.mxu0 0
    %872 = vmatpush1.bf16.msra.mxu0 0
    %873 = vmatprep.subr.bf16.mxu0 0
    %874 = vmatpush1.bf16.msra.mxu0 0
    %875 = vmatprep.subr.bf16.mxu0 0
    %876 = vmatpush1.bf16.msra.mxu0 0
    %877 = vmatprep.subr.bf16.mxu0 0
    %878 = vmatpush1.bf16.msra.mxu0 0
    %879 = vmatprep.subr.bf16.mxu0 0
    %880 = vmatpush1.bf16.msra.mxu0 0
    %881 = vmatprep.subr.bf16.mxu0 0
    %882 = vmatpush1.bf16.msra.mxu0 0
    %883 = vmatprep.subr.bf16.mxu0 0
    %884 = vmatpush1.bf16.msra.mxu0 0
    %885 = vmatprep.subr.bf16.mxu0 0
    %886 = vmatpush1.bf16.msra.mxu0 0
    %887 = vmatprep.subr.bf16.mxu0 0
    %888 = vmatpush1.bf16.msra.mxu0 0
    %889 = vmatprep.mubr.bf16.mxu0 0
    %890 = vmatmul.mubr.bf16.gmra.mrb[0].mxu0 %v588
    %v891 = vpop.f32.mrb[0].mxu0
    %v892 = vadd.f32 %v574, %v891
    %v893 = vpop.f32.mrb[0].mxu0
    %v894 = vpop.f32.mrb[0].mxu0
    %v895 = vadd.f32 %v579, %v894
    %v896 = vpop.f32.mrb[0].mxu0
    %897 = vdwg.mxu0
    %v898 = vmul.f32 %v892, 0.5
    %v899 = vmul.f32 %v895, 0.5
    %v900 = vmul.f32 %v892, 0.70710677
    %v901 = vmul.f32 %v895, 0.70710677
    %v902 = vand.u32 2147483647, %v900
    %v903 = vand.u32 2147483647, %v901
    %v904 = vmul.f32 %v902, 0.3275911
    %v905 = vmul.f32 %v903, 0.3275911
    %v906 = vadd.f32 %v904, 1.0
    %v907 = vadd.f32 %v905, 1.0
    %v908 = vrcp.pop %v906
    %v909 = vmul.f32 1.0, %v908
    %v910 = vrcp.pop %v907
    %v911 = vmul.f32 1.0, %v910
    %v912 = vmul.f32 %v909, 1.0614054
    %v913 = vmul.f32 %v911, 1.0614054
    %v914 = vadd.f32 %v912, -1.4531521
    %v915 = vadd.f32 %v913, -1.4531521
    %v916 = vmul.f32 %v914, %v909
    %v917 = vmul.f32 %v915, %v911
    %v918 = vadd.f32 %v916, 1.4214138
    %v919 = vadd.f32 %v917, 1.4214138
    %v920 = vmul.f32 %v918, %v909
    %v921 = vmul.f32 %v919, %v911
    %v922 = vadd.f32 %v920, -0.28449672
    %v923 = vadd.f32 %v921, -0.28449672
    %v924 = vmul.f32 %v922, %v909
    %v925 = vmul.f32 %v923, %v911
    %v926 = vadd.f32 %v924, 0.2548296
    %v927 = vadd.f32 %v925, 0.2548296
    %v928 = vmul.f32 %v926, %v909
    %v929 = vmul.f32 %v927, %v911
    %v930 = vsub.f32 0.0, %v902
    %v931 = vsub.f32 0.0, %v903
    %v932 = vmul.f32 %v930, %v902
    %v933 = vmul.f32 %v931, %v903
    %v934 = vmul.f32 %v932, 1.442695
    %v935 = vpow.pop %v934
    %v936 = vmul.f32 %v933, 1.442695
    %v937 = vpow.pop %v936
    %v938 = vmul.f32 %v928, %v935
    %v939 = vmul.f32 %v929, %v937
    %v940 = vsub.f32 1.0, %v938
    %v941 = vsub.f32 1.0, %v939
    %vm942 = vcmp.ge.f32.partialorder %v900, 0.0
    %vm943 = vcmp.ge.f32.partialorder %v901, 0.0
    %v944 = vsub.f32 0.0, %v940
    %v945 = vsub.f32 0.0, %v941
    %v946 = vsel %vm942, %v940, %v944
    %v947 = vsel %vm943, %v941, %v945
    %v948 = vadd.f32 %v946, 1.0
    %v949 = vadd.f32 %v947, 1.0
    %v950 = vmul.f32 %v898, %v948
    %v951 = vmul.f32 %v899, %v949
    %v952 = vpack.c.bf16 %v951, %v950
    %953 = vmatprep.subr.bf16.mxu0 0
    %954 = vmatpush1.bf16.msra.mxu0 %v952
    %955 = vmatprep.subr.bf16.mxu0 0
    %956 = vmatpush1.bf16.msra.mxu0 0
    %957 = vmatprep.subr.bf16.mxu0 0
    %958 = vmatpush1.bf16.msra.mxu0 0
    %959 = vmatprep.subr.bf16.mxu0 0
    %960 = vmatpush1.bf16.msra.mxu0 0
    %961 = vmatprep.subr.bf16.mxu0 0
    %962 = vmatpush1.bf16.msra.mxu0 0
    %963 = vmatprep.subr.bf16.mxu0 0
    %964 = vmatpush1.bf16.msra.mxu0 0
    %965 = vmatprep.subr.bf16.mxu0 0
    %966 = vmatpush1.bf16.msra.mxu0 0
    %967 = vmatprep.subr.bf16.mxu0 0
    %968 = vmatpush1.bf16.msra.mxu0 0
    %969 = vmatprep.subr.bf16.mxu0 0
    %970 = vmatpush1.bf16.msra.mxu0 0
    %971 = vmatprep.subr.bf16.mxu0 0
    %972 = vmatpush1.bf16.msra.mxu0 0
    %973 = vmatprep.subr.bf16.mxu0 0
    %974 = vmatpush1.bf16.msra.mxu0 0
    %975 = vmatprep.subr.bf16.mxu0 0
    %976 = vmatpush1.bf16.msra.mxu0 0
    %977 = vmatprep.subr.bf16.mxu0 0
    %978 = vmatpush1.bf16.msra.mxu0 0
    %979 = vmatprep.subr.bf16.mxu0 0
    %980 = vmatpush1.bf16.msra.mxu0 0
    %981 = vmatprep.subr.bf16.mxu0 0
    %982 = vmatpush1.bf16.msra.mxu0 0
    %983 = vmatprep.subr.bf16.mxu0 0
    %984 = vmatpush1.bf16.msra.mxu0 0
    %985 = vmatprep.mubr.bf16.mxu0 0
    %986 = vmatmul.mubr.bf16.gmra.mrb[0].mxu0 %v707
    %v987 = vpop.f32.mrb[0].mxu0
    %v988 = vadd.f32 %v693, %v987
    %v989 = vpop.f32.mrb[0].mxu0
    %v990 = vpop.f32.mrb[0].mxu0
    %v991 = vadd.f32 %v698, %v990
    %v992 = vpop.f32.mrb[0].mxu0
    %993 = vdwg.mxu0
    %v994 = vmul.f32 %v988, 0.5
    %v995 = vmul.f32 %v991, 0.5
    %v996 = vmul.f32 %v988, 0.70710677
    %v997 = vmul.f32 %v991, 0.70710677
    %v998 = vand.u32 2147483647, %v996
    %v999 = vand.u32 2147483647, %v997
    %v1000 = vmul.f32 %v998, 0.3275911
    %v1001 = vmul.f32 %v999, 0.3275911
    %v1002 = vadd.f32 %v1000, 1.0
    %v1003 = vadd.f32 %v1001, 1.0
    %v1004 = vrcp.pop %v1002
    %v1005 = vmul.f32 1.0, %v1004
    %v1006 = vrcp.pop %v1003
    %v1007 = vmul.f32 1.0, %v1006
    %v1008 = vmul.f32 %v1005, 1.0614054
    %v1009 = vmul.f32 %v1007, 1.0614054
    %v1010 = vadd.f32 %v1008, -1.4531521
    %v1011 = vadd.f32 %v1009, -1.4531521
    %v1012 = vmul.f32 %v1010, %v1005
    %v1013 = vmul.f32 %v1011, %v1007
    %v1014 = vadd.f32 %v1012, 1.4214138
    %v1015 = vadd.f32 %v1013, 1.4214138
    %v1016 = vmul.f32 %v1014, %v1005
    %v1017 = vmul.f32 %v1015, %v1007
    %v1018 = vadd.f32 %v1016, -0.28449672
    %v1019 = vadd.f32 %v1017, -0.28449672
    %v1020 = vmul.f32 %v1018, %v1005
    %v1021 = vmul.f32 %v1019, %v1007
    %v1022 = vadd.f32 %v1020, 0.2548296
    %v1023 = vadd.f32 %v1021, 0.2548296
    %v1024 = vmul.f32 %v1022, %v1005
    %v1025 = vmul.f32 %v1023, %v1007
    %v1026 = vsub.f32 0.0, %v998
    %v1027 = vsub.f32 0.0, %v999
    %v1028 = vmul.f32 %v1026, %v998
    %v1029 = vmul.f32 %v1027, %v999
    %v1030 = vmul.f32 %v1028, 1.442695
    %v1031 = vpow.pop %v1030
    %v1032 = vmul.f32 %v1029, 1.442695
    %v1033 = vpow.pop %v1032
    %v1034 = vmul.f32 %v1024, %v1031
    %v1035 = vmul.f32 %v1025, %v1033
    %v1036 = vsub.f32 1.0, %v1034
    %v1037 = vsub.f32 1.0, %v1035
    %vm1038 = vcmp.ge.f32.partialorder %v996, 0.0
    %vm1039 = vcmp.ge.f32.partialorder %v997, 0.0
    %v1040 = vsub.f32 0.0, %v1036
    %v1041 = vsub.f32 0.0, %v1037
    %v1042 = vsel %vm1038, %v1036, %v1040
    %v1043 = vsel %vm1039, %v1037, %v1041
    %v1044 = vadd.f32 %v1042, 1.0
    %v1045 = vadd.f32 %v1043, 1.0
    %v1046 = vmul.f32 %v994, %v1044
    %v1047 = vmul.f32 %v995, %v1045
    %v1048 = vpack.c.bf16 %v1047, %v1046
    %1049 = vmatprep.subr.bf16.mxu0 0
    %1050 = vmatpush1.bf16.msra.mxu0 %v1048
    %1051 = vmatprep.subr.bf16.mxu0 0
    %1052 = vmatpush1.bf16.msra.mxu0 0
    %1053 = vmatprep.subr.bf16.mxu0 0
    %1054 = vmatpush1.bf16.msra.mxu0 0
    %1055 = vmatprep.subr.bf16.mxu0 0
    %1056 = vmatpush1.bf16.msra.mxu0 0
    %1057 = vmatprep.subr.bf16.mxu0 0
    %1058 = vmatpush1.bf16.msra.mxu0 0
    %1059 = vmatprep.subr.bf16.mxu0 0
    %1060 = vmatpush1.bf16.msra.mxu0 0
    %1061 = vmatprep.subr.bf16.mxu0 0
    %1062 = vmatpush1.bf16.msra.mxu0 0
    %1063 = vmatprep.subr.bf16.mxu0 0
    %1064 = vmatpush1.bf16.msra.mxu0 0
    %1065 = vmatprep.subr.bf16.mxu0 0
    %1066 = vmatpush1.bf16.msra.mxu0 0
    %1067 = vmatprep.subr.bf16.mxu0 0
    %1068 = vmatpush1.bf16.msra.mxu0 0
    %1069 = vmatprep.subr.bf16.mxu0 0
    %1070 = vmatpush1.bf16.msra.mxu0 0
    %1071 = vmatprep.subr.bf16.mxu0 0
    %1072 = vmatpush1.bf16.msra.mxu0 0
    %1073 = vmatprep.subr.bf16.mxu0 0
    %1074 = vmatpush1.bf16.msra.mxu0 0
    %1075 = vmatprep.subr.bf16.mxu0 0
    %1076 = vmatpush1.bf16.msra.mxu0 0
    %1077 = vmatprep.subr.bf16.mxu0 0
    %1078 = vmatpush1.bf16.msra.mxu0 0
    %1079 = vmatprep.subr.bf16.mxu0 0
    %1080 = vmatpush1.bf16.msra.mxu0 0
    %1081 = vmatprep.mubr.bf16.mxu0 0
    %1082 = vmatmul.mubr.bf16.gmra.mrb[0].mxu0 %v811
    %v1083 = vpop.f32.mrb[0].mxu0
    %v1084 = vadd.f32 %v808, %v1083
    %v1085 = vpop.f32.mrb[0].mxu0
    %v1086 = vpop.f32.mrb[0].mxu0
    %v1087 = vpop.f32.mrb[0].mxu0
    %1088 = vdwg.mxu0
    %1089 = vst [vmem:[#allocation23] sm:$0xff] %v848
    %1090 = vst [vmem:[#allocation23 + $0x8] sm:$0xff] %v1084
    // Predicated region
    $region106: #{translator_noln_forward.3} parent=1 // pred_check
      _
    $region107: #{translator_noln_forward.3} parent=1 // pred_check_branch
      %1092 = sbr.rel (0) target = $region109
    $region108: #{translator_noln_forward.3} parent=1 // pred_region
      %s1094 = ssub.s32 256, 256
      %1095 = vsyncadd [#allocation4], %s1094
      %s1096 = sshll.u32 [#allocation23], 4
      %s1097 = int_to_ptr.vmem [resolvable:$true] %s1096
      %1102 = dma.vmem_to_hbm [thread:$0]  %s1097, 256, %s13, [#allocation4], 128, 128, 8
    $region109: #{translator_noln_forward.3} parent=1 // pred_fallthru
      _
    // Predicated region
    $region110: #{translator_noln_forward.3} parent=1 // pred_check
      _
    $region111: #{translator_noln_forward.3} parent=1 // pred_check_branch
      %1104 = sbr.rel (0) target = $region113
    $region112: #{translator_noln_forward.3} parent=1 // pred_region
      %1105 = dma.done [#allocation4], 256
    $region113: #{translator_noln_forward.3} parent=1 // pred_fallthru
      _
    %1106 = vsyncpa [#allocation3], 1
    %1107 = vsyncpa [#allocation6], 1
    %1108 = vsyncpa [#allocation9], 1
    %1109 = vsyncpa [#allocation12], 1
    %1110 = vsyncpa [#allocation15], 1
    %1111 = vsyncpa [#allocation18], 1
    %1112 = vsyncpa [#allocation21], 1
    %1113 = vsyncpa [#allocation4], 1

// kernel: translator_noln_forward.2
$region0: #{translator_noln_forward.2}
  #allocation0 [shape = 'u32[]', space=smem, size = 0x4, offset = 0x4, fixed_abs, tag = 'smem constant byte address 0x4 - core index']
  #allocation1 [shape = 'u32[144,128]{1,0:T(1,128)}', space=vmem, size = 0x12000, scoped, tag = 'internal scratch']
  #allocation2 [shape = 'f32[2,8,32]{2,1,0:T(8,128)}', space=vmem, size = 0x2000, scoped, tag = 'scratch operand']
  %s0 = inlined_call_operand.hbm [shape: f32[2,8,32], index: 0, kind: input, shape index: {}]
  %s1 = inlined_call_operand.hbm [shape: bf16[5,32,64], index: 1, kind: input, shape index: {}]
  %s2 = inlined_call_operand.hbm [shape: f32[5,1,64], index: 2, kind: input, shape index: {}]
  %s3 = inlined_call_operand.hbm [shape: f32[5,1,64], index: 3, kind: input, shape index: {}]
  %s4 = inlined_call_operand.hbm [shape: f32[5,1,64], index: 4, kind: input, shape index: {}]
  %s5 = inlined_call_operand.hbm [shape: bf16[5,64,64], index: 5, kind: input, shape index: {}]
  %s6 = inlined_call_operand.hbm [shape: f32[5,1,64], index: 6, kind: input, shape index: {}]
  %s7 = inlined_call_operand.hbm [shape: f32[5,1,64], index: 7, kind: input, shape index: {}]
  %s8 = inlined_call_operand.hbm [shape: f32[5,1,64], index: 8, kind: input, shape index: {}]
  %s9 = inlined_call_operand.hbm [shape: bf16[5,64,32], index: 9, kind: input, shape index: {}]
  %s10 = inlined_call_operand.hbm [shape: f32[5,1,32], index: 10, kind: input, shape index: {}]
  %s11 = inlined_call_operand.hbm [shape: f32[5,1,32], index: 11, kind: input, shape index: {}]
  %s12 = inlined_call_operand.hbm [shape: f32[5,1,32], index: 12, kind: input, shape index: {}]
  %s13 = inlined_call_operand.hbm [shape: bf16[5,16,8], index: 13, kind: input, shape index: {}]
  %s14 = inlined_call_operand.hbm [shape: f32[5,16,1], index: 14, kind: input, shape index: {}]
  %s15 = inlined_call_operand.hbm [shape: f32[5,16,1], index: 15, kind: input, shape index: {}]
  %s16 = inlined_call_operand.hbm [shape: f32[5,16,1], index: 16, kind: input, shape index: {}]
  %s17 = inlined_call_operand.hbm [shape: bf16[5,16,16], index: 17, kind: input, shape index: {}]
  %s18 = inlined_call_operand.hbm [shape: f32[5,16,1], index: 18, kind: input, shape index: {}]
  %s19 = inlined_call_operand.hbm [shape: f32[5,16,1], index: 19, kind: input, shape index: {}]
  %s20 = inlined_call_operand.hbm [shape: f32[5,16,1], index: 20, kind: input, shape index: {}]
  %s21 = inlined_call_operand.hbm [shape: bf16[5,8,16], index: 21, kind: input, shape index: {}]
  %s22 = inlined_call_operand.hbm [shape: f32[5,8,1], index: 22, kind: input, shape index: {}]
  %s23 = inlined_call_operand.hbm [shape: f32[5,8,1], index: 23, kind: input, shape index: {}]
  %s24 = inlined_call_operand.hbm [shape: f32[5,8,1], index: 24, kind: input, shape index: {}]
  %s25 = inlined_call_operand.hbm [shape: f32[2,8,32], index: 25, kind: output, shape index: {}]
  %s26 = sld [smem:[#allocation0]]
  $region241: #{translator_noln_forward.2} parent=0
    _
  %s28 = ssub.s32 1, %s26
  %s29 = scalar_select 0, %s28, %s26
  $region1: #{translator_noln_forward.2} parent=0
    #allocation3 [shape = 'u8[8192]{0}', space=vmem, size = 0x2000, scoped, tag = 'input window, operand 0, single buffered']
    #allocation4 [shape = 's32[2]{0}', space=sflag, size = 0x8, scoped, tag = 'scoped memory for translator_noln_forward.2']
    #allocation5 [shape = 's32[2]{0}', space=sflag, size = 0x8, scoped, tag = 'scoped memory for translator_noln_forward.2']
    #allocation6 [shape = 'u8[16384]{0}', space=vmem, size = 0x4000, scoped, tag = 'input window, operand 1']
    #allocation7 [shape = 's32[2]{0}', space=sflag, size = 0x8, scoped, tag = 'scoped memory for translator_noln_forward.2']
    #allocation8 [shape = 'u8[1024]{0}', space=vmem, size = 0x400, scoped, tag = 'input window, operand 2']
    #allocation9 [shape = 'u8[1024]{0}', space=vmem, size = 0x400, scoped, tag = 'input window, operand 3']
    #allocation10 [shape = 's32[2]{0}', space=sflag, size = 0x8, scoped, tag = 'scoped memory for translator_noln_forward.2']
    #allocation11 [shape = 'u8[1024]{0}', space=vmem, size = 0x400, scoped, tag = 'input window, operand 4']
    #allocation12 [shape = 'u8[32768]{0}', space=vmem, size = 0x8000, scoped, tag = 'input window, operand 5']
    #allocation13 [shape = 's32[2]{0}', space=sflag, size = 0x8, scoped, tag = 'scoped memory for translator_noln_forward.2']
    #allocation14 [shape = 'u8[1024]{0}', space=vmem, size = 0x400, scoped, tag = 'input window, operand 6']
    #allocation15 [shape = 'u8[1024]{0}', space=vmem, size = 0x400, scoped, tag = 'input window, operand 7']
    #allocation16 [shape = 's32[2]{0}', space=sflag, size = 0x8, scoped, tag = 'scoped memory for translator_noln_forward.2']
    #allocation17 [shape = 'u8[1024]{0}', space=vmem, size = 0x400, scoped, tag = 'input window, operand 8']
    #allocation18 [shape = 'u8[32768]{0}', space=vmem, size = 0x8000, scoped, tag = 'input window, operand 9']
    #allocation19 [shape = 's32[2]{0}', space=sflag, size = 0x8, scoped, tag = 'scoped memory for translator_noln_forward.2']
    #allocation20 [shape = 'u8[1024]{0}', space=vmem, size = 0x400, scoped, tag = 'input window, operand 10']
    #allocation21 [shape = 'u8[1024]{0}', space=vmem, size = 0x400, scoped, tag = 'input window, operand 11']
    #allocation22 [shape = 's32[2]{0}', space=sflag, size = 0x8, scoped, tag = 'scoped memory for translator_noln_forward.2']
    #allocation23 [shape = 'u8[1024]{0}', space=vmem, size = 0x400, scoped, tag = 'input window, operand 12']
    #allocation24 [shape = 'u8[8192]{0}', space=vmem, size = 0x2000, scoped, tag = 'input window, operand 13']
    #allocation25 [shape = 's32[2]{0}', space=sflag, size = 0x8, scoped, tag = 'scoped memory for translator_noln_forward.2']
    #allocation26 [shape = 'u8[16384]{0}', space=vmem, size = 0x4000, scoped, tag = 'input window, operand 14']
    #allocation27 [shape = 'u8[16384]{0}', space=vmem, size = 0x4000, scoped, tag = 'input window, operand 15']
    #allocation28 [shape = 's32[2]{0}', space=sflag, size = 0x8, scoped, tag = 'scoped memory for translator_noln_forward.2']
    #allocation29 [shape = 'u8[16384]{0}', space=vmem, size = 0x4000, scoped, tag = 'input window, operand 16']
    #allocation30 [shape = 'u8[8192]{0}', space=vmem, size = 0x2000, scoped, tag = 'input window, operand 17']
    #allocation31 [shape = 's32[2]{0}', space=sflag, size = 0x8, scoped, tag = 'scoped memory for translator_noln_forward.2']
    #allocation32 [shape = 'u8[16384]{0}', space=vmem, size = 0x4000, scoped, tag = 'input window, operand 18']
    #allocation33 [shape = 'u8[16384]{0}', space=vmem, size = 0x4000, scoped, tag = 'input window, operand 19']
    #allocation34 [shape = 's32[2]{0}', space=sflag, size = 0x8, scoped, tag = 'scoped memory for translator_noln_forward.2']
    #allocation35 [shape = 'u8[16384]{0}', space=vmem, size = 0x4000, scoped, tag = 'input window, operand 20']
    #allocation36 [shape = 'u8[4096]{0}', space=vmem, size = 0x1000, scoped, tag = 'input window, operand 21']
    #allocation37 [shape = 's32[2]{0}', space=sflag, size = 0x8, scoped, tag = 'scoped memory for translator_noln_forward.2']
    #allocation38 [shape = 'u8[8192]{0}', space=vmem, size = 0x2000, scoped, tag = 'input window, operand 22']
    #allocation39 [shape = 'u8[8192]{0}', space=vmem, size = 0x2000, scoped, tag = 'input window, operand 23']
    #allocation40 [shape = 's32[2]{0}', space=sflag, size = 0x8, scoped, tag = 'scoped memory for translator_noln_forward.2']
    #allocation41 [shape = 'u8[8192]{0}', space=vmem, size = 0x2000, scoped, tag = 'input window, operand 24']
    #allocation42 [shape = 'u8[8192]{0}', space=vmem, size = 0x2000, scoped, tag = 'output window, operand 0, single buffered']
    %30 = vsyncpa [#allocation4], 0
    %31 = vsyncpa [#allocation7], 0
    %s32 = scalar_lea.sflag [#allocation7], 1
    %33 = vsyncpa %s32, 0
    %34 = vsyncpa [#allocation10], 0
    %s35 = scalar_lea.sflag [#allocation10], 1
    %36 = vsyncpa %s35, 0
    %37 = vsyncpa [#allocation13], 0
    %s38 = scalar_lea.sflag [#allocation13], 1
    %39 = vsyncpa %s38, 0
    %40 = vsyncpa [#allocation16], 0
    %s41 = scalar_lea.sflag [#allocation16], 1
    %42 = vsyncpa %s41, 0
    %43 = vsyncpa [#allocation19], 0
    %s44 = scalar_lea.sflag [#allocation19], 1
    %45 = vsyncpa %s44, 0
    %46 = vsyncpa [#allocation22], 0
    %s47 = scalar_lea.sflag [#allocation22], 1
    %48 = vsyncpa %s47, 0
    %49 = vsyncpa [#allocation25], 0
    %s50 = scalar_lea.sflag [#allocation25], 1
    %51 = vsyncpa %s50, 0
    %52 = vsyncpa [#allocation28], 0
    %s53 = scalar_lea.sflag [#allocation28], 1
    %54 = vsyncpa %s53, 0
    %55 = vsyncpa [#allocation31], 0
    %s56 = scalar_lea.sflag [#allocation31], 1
    %57 = vsyncpa %s56, 0
    %58 = vsyncpa [#allocation34], 0
    %s59 = scalar_lea.sflag [#allocation34], 1
    %60 = vsyncpa %s59, 0
    %61 = vsyncpa [#allocation37], 0
    %s62 = scalar_lea.sflag [#allocation37], 1
    %63 = vsyncpa %s62, 0
    %64 = vsyncpa [#allocation40], 0
    %s65 = scalar_lea.sflag [#allocation40], 1
    %66 = vsyncpa %s65, 0
    %67 = vsyncpa [#allocation5], 0
    loop: start=0, step=1, limit=7
    $region2: #{translator_noln_forward.2} parent=1 // loop_pre_header
      _
    $region3: #{translator_noln_forward.2} parent=1 // loop_header
      %s69 = sphi 0, %s73
      %p70 = scmp.ge.s32.totalorder %s69, 7
      %s76 = sphi 0, %s88
      %s77 = sphi 0, %s84
      %s78 = sphi 0, %s76
      %s79 = sphi 0, %s77
      %s80 = sphi 0, %s78
      %s81 = sphi 0, %s79
      %s91 = sphi 0, %s93
      %s94 = sphi 0, %s91
      %s95 = sphi 0, %s94
      %s111 = sphi 0, %s95
      %s117 = sphi 0, %s119
      %s120 = sphi 0, %s117
      %s121 = sphi 0, %s120
      %s137 = sphi 0, %s121
      %s143 = sphi 0, %s145
      %s146 = sphi 0, %s143
      %s147 = sphi 0, %s146
      %s163 = sphi 0, %s147
      %s169 = sphi 0, %s171
      %s172 = sphi 0, %s169
      %s173 = sphi 0, %s172
      %s189 = sphi 0, %s173
      %s195 = sphi 0, %s197
      %s198 = sphi 0, %s195
      %s199 = sphi 0, %s198
      %s215 = sphi 0, %s199
      %s221 = sphi 0, %s223
      %s224 = sphi 0, %s221
      %s225 = sphi 0, %s224
      %s241 = sphi 0, %s225
      %s247 = sphi 0, %s249
      %s250 = sphi 0, %s247
      %s251 = sphi 0, %s250
      %s267 = sphi 0, %s251
      %s273 = sphi 0, %s275
      %s276 = sphi 0, %s273
      %s277 = sphi 0, %s276
      %s293 = sphi 0, %s277
      %s299 = sphi 0, %s301
      %s302 = sphi 0, %s299
      %s303 = sphi 0, %s302
      %s319 = sphi 0, %s303
      %s325 = sphi 0, %s327
      %s328 = sphi 0, %s325
      %s329 = sphi 0, %s328
      %s345 = sphi 0, %s329
      %s351 = sphi 0, %s353
      %s354 = sphi 0, %s351
      %s355 = sphi 0, %s354
      %s371 = sphi 0, %s355
      %s377 = sphi 0, %s379
      %s380 = sphi 0, %s377
      %s381 = sphi 0, %s380
      %s397 = sphi 0, %s381
      %s403 = sphi 0, %s405
      %s406 = sphi 0, %s403
      %s407 = sphi 0, %s406
      %s423 = sphi 0, %s407
      %s429 = sphi 0, %s431
      %s432 = sphi 0, %s429
      %s433 = sphi 0, %s432
      %s449 = sphi 0, %s433
      %s455 = sphi 0, %s457
      %s458 = sphi 0, %s455
      %s459 = sphi 0, %s458
      %s475 = sphi 0, %s459
      %s481 = sphi 0, %s483
      %s484 = sphi 0, %s481
      %s485 = sphi 0, %s484
      %s501 = sphi 0, %s485
      %s507 = sphi 0, %s509
      %s510 = sphi 0, %s507
      %s511 = sphi 0, %s510
      %s527 = sphi 0, %s511
      %s533 = sphi 0, %s535
      %s536 = sphi 0, %s533
      %s537 = sphi 0, %s536
      %s553 = sphi 0, %s537
      %s559 = sphi 0, %s561
      %s562 = sphi 0, %s559
      %s563 = sphi 0, %s562
      %s579 = sphi 0, %s563
      %s585 = sphi 0, %s587
      %s588 = sphi 0, %s585
      %s589 = sphi 0, %s588
      %s605 = sphi 0, %s589
      %s611 = sphi 0, %s613
      %s614 = sphi 0, %s611
      %s615 = sphi 0, %s614
      %s631 = sphi 0, %s615
      %s637 = sphi 0, %s639
      %s640 = sphi 0, %s637
      %s641 = sphi 0, %s640
      %s657 = sphi 0, %s641
      %s663 = sphi 0, %s665
      %s666 = sphi 0, %s663
      %s667 = sphi 0, %s666
      %s683 = sphi 0, %s667
      %s689 = sphi 0, %s691
      %s692 = sphi 0, %s689
      %s693 = sphi 0, %s692
      %s709 = sphi 0, %s693
      %s715 = sphi 0, %s717
      %s718 = sphi 0, %s715
      %s719 = sphi 0, %s718
      %s735 = sphi 0, %s719
      %s741 = sphi 0, %s743
      %s744 = sphi 0, %s741
      %s745 = sphi 0, %s744
      %s761 = sphi 0, %s745
    $region4: #{translator_noln_forward.2} parent=1 // loop_header_branch
      %72 = sbr.rel (%p70) target = $region8
    $region5: #{translator_noln_forward.2} parent=1 // loop_body
      %s74 = ssub.s32 %s69, 1
      %s75 = ssub.s32 %s69, 2
      %s82 = sadd.s32 1, %s77
      %p83 = scmp.ge.s32.totalorder %s82, 5
      %s84 = scalar_select %p83, 0, %s82
      %s85 = sadd.s32 1, %s76
      %s86 = scalar_select %p83, %s85, %s76
      %p87 = scmp.ge.s32.totalorder %s86, 1
      %s88 = scalar_select %p87, 0, %s86
      %s89 = ssub.s32 %s76, %s88
      %p90 = scmp.eq.s32.totalorder %s89, 0
      %s92 = sadd.s32 %s91, 1
      %s93 = scalar_select %p90, %s91, %s92
      %p96 = pneg %p90
      %p97 = scmp.eq.s32.totalorder %s69, 4
      %p98 = por %p96, %p97
      %p99 = scmp.ne.s32.totalorder %s91, %s94
      %p100 = scmp.eq.s32.totalorder %s69, 0
      %p101 = por %p99, %p100
      %p102 = scmp.ne.s32.totalorder %s91, %s94
      %p103 = scmp.eq.s32.totalorder %s74, 4
      %p104 = por %p102, %p103
      %p105 = scmp.ne.s32.totalorder %s94, %s95
      %p106 = scmp.eq.s32.totalorder %s74, 0
      %p107 = por %p105, %p106
      %p108 = scmp.ne.s32.totalorder %s94, %s95
      %p109 = scmp.eq.s32.totalorder %s75, 4
      %p110 = por %p108, %p109
      %p112 = scmp.ne.s32.totalorder %s95, %s111
      %p113 = scmp.eq.s32.totalorder %s75, 0
      %p114 = por %p112, %p113
      %s115 = ssub.s32 %s77, %s84
      %p116 = scmp.eq.s32.totalorder %s115, 0
      %s118 = sadd.s32 %s117, 1
      %s119 = scalar_select %p116, %s117, %s118
      %p122 = pneg %p116
      %p123 = scmp.eq.s32.totalorder %s69, 4
      %p124 = por %p122, %p123
      %p125 = scmp.ne.s32.totalorder %s117, %s120
      %p126 = scmp.eq.s32.totalorder %s69, 0
      %p127 = por %p125, %p126
      %p128 = scmp.ne.s32.totalorder %s117, %s120
      %p129 = scmp.eq.s32.totalorder %s74, 4
      %p130 = por %p128, %p129
      %p131 = scmp.ne.s32.totalorder %s120, %s121
      %p132 = scmp.eq.s32.totalorder %s74, 0
      %p133 = por %p131, %p132
      %p134 = scmp.ne.s32.totalorder %s120, %s121
      %p135 = scmp.eq.s32.totalorder %s75, 4
      %p136 = por %p134, %p135
      %p138 = scmp.ne.s32.totalorder %s121, %s137
      %p139 = scmp.eq.s32.totalorder %s75, 0
      %p140 = por %p138, %p139
      %s141 = ssub.s32 %s77, %s84
      %p142 = scmp.eq.s32.totalorder %s141, 0
      %s144 = sadd.s32 %s143, 1
      %s145 = scalar_select %p142, %s143, %s144
      %p148 = pneg %p142
      %p149 = scmp.eq.s32.totalorder %s69, 4
      %p150 = por %p148, %p149
      %p151 = scmp.ne.s32.totalorder %s143, %s146
      %p152 = scmp.eq.s32.totalorder %s69, 0
      %p153 = por %p151, %p152
      %p154 = scmp.ne.s32.totalorder %s143, %s146
      %p155 = scmp.eq.s32.totalorder %s74, 4
      %p156 = por %p154, %p155
      %p157 = scmp.ne.s32.totalorder %s146, %s147
      %p158 = scmp.eq.s32.totalorder %s74, 0
      %p159 = por %p157, %p158
      %p160 = scmp.ne.s32.totalorder %s146, %s147
      %p161 = scmp.eq.s32.totalorder %s75, 4
      %p162 = por %p160, %p161
      %p164 = scmp.ne.s32.totalorder %s147, %s163
      %p165 = scmp.eq.s32.totalorder %s75, 0
      %p166 = por %p164, %p165
      %s167 = ssub.s32 %s77, %s84
      %p168 = scmp.eq.s32.totalorder %s167, 0
      %s170 = sadd.s32 %s169, 1
      %s171 = scalar_select %p168, %s169, %s170
      %p174 = pneg %p168
      %p175 = scmp.eq.s32.totalorder %s69, 4
      %p176 = por %p174, %p175
      %p177 = scmp.ne.s32.totalorder %s169, %s172
      %p178 = scmp.eq.s32.totalorder %s69, 0
      %p179 = por %p177, %p178
      %p180 = scmp.ne.s32.totalorder %s169, %s172
      %p181 = scmp.eq.s32.totalorder %s74, 4
      %p182 = por %p180, %p181
      %p183 = scmp.ne.s32.totalorder %s172, %s173
      %p184 = scmp.eq.s32.totalorder %s74, 0
      %p185 = por %p183, %p184
      %p186 = scmp.ne.s32.totalorder %s172, %s173
      %p187 = scmp.eq.s32.totalorder %s75, 4
      %p188 = por %p186, %p187
      %p190 = scmp.ne.s32.totalorder %s173, %s189
      %p191 = scmp.eq.s32.totalorder %s75, 0
      %p192 = por %p190, %p191
      %s193 = ssub.s32 %s77, %s84
      %p194 = scmp.eq.s32.totalorder %s193, 0
      %s196 = sadd.s32 %s195, 1
      %s197 = scalar_select %p194, %s195, %s196
      %p200 = pneg %p194
      %p201 = scmp.eq.s32.totalorder %s69, 4
      %p202 = por %p200, %p201
      %p203 = scmp.ne.s32.totalorder %s195, %s198
      %p204 = scmp.eq.s32.totalorder %s69, 0
      %p205 = por %p203, %p204
      %p206 = scmp.ne.s32.totalorder %s195, %s198
      %p207 = scmp.eq.s32.totalorder %s74, 4
      %p208 = por %p206, %p207
      %p209 = scmp.ne.s32.totalorder %s198, %s199
      %p210 = scmp.eq.s32.totalorder %s74, 0
      %p211 = por %p209, %p210
      %p212 = scmp.ne.s32.totalorder %s198, %s199
      %p213 = scmp.eq.s32.totalorder %s75, 4
      %p214 = por %p212, %p213
      %p216 = scmp.ne.s32.totalorder %s199, %s215
      %p217 = scmp.eq.s32.totalorder %s75, 0
      %p218 = por %p216, %p217
      %s219 = ssub.s32 %s77, %s84
      %p220 = scmp.eq.s32.totalorder %s219, 0
      %s222 = sadd.s32 %s221, 1
      %s223 = scalar_select %p220, %s221, %s222
      %p226 = pneg %p220
      %p227 = scmp.eq.s32.totalorder %s69, 4
      %p228 = por %p226, %p227
      %p229 = scmp.ne.s32.totalorder %s221, %s224
      %p230 = scmp.eq.s32.totalorder %s69, 0
      %p231 = por %p229, %p230
      %p232 = scmp.ne.s32.totalorder %s221, %s224
      %p233 = scmp.eq.s32.totalorder %s74, 4
      %p234 = por %p232, %p233
      %p235 = scmp.ne.s32.totalorder %s224, %s225
      %p236 = scmp.eq.s32.totalorder %s74, 0
      %p237 = por %p235, %p236
      %p238 = scmp.ne.s32.totalorder %s224, %s225
      %p239 = scmp.eq.s32.totalorder %s75, 4
      %p240 = por %p238, %p239
      %p242 = scmp.ne.s32.totalorder %s225, %s241
      %p243 = scmp.eq.s32.totalorder %s75, 0
      %p244 = por %p242, %p243
      %s245 = ssub.s32 %s77, %s84
      %p246 = scmp.eq.s32.totalorder %s245, 0
      %s248 = sadd.s32 %s247, 1
      %s249 = scalar_select %p246, %s247, %s248
      %p252 = pneg %p246
      %p253 = scmp.eq.s32.totalorder %s69, 4
      %p254 = por %p252, %p253
      %p255 = scmp.ne.s32.totalorder %s247, %s250
      %p256 = scmp.eq.s32.totalorder %s69, 0
      %p257 = por %p255, %p256
      %p258 = scmp.ne.s32.totalorder %s247, %s250
      %p259 = scmp.eq.s32.totalorder %s74, 4
      %p260 = por %p258, %p259
      %p261 = scmp.ne.s32.totalorder %s250, %s251
      %p262 = scmp.eq.s32.totalorder %s74, 0
      %p263 = por %p261, %p262
      %p264 = scmp.ne.s32.totalorder %s250, %s251
      %p265 = scmp.eq.s32.totalorder %s75, 4
      %p266 = por %p264, %p265
      %p268 = scmp.ne.s32.totalorder %s251, %s267
      %p269 = scmp.eq.s32.totalorder %s75, 0
      %p270 = por %p268, %p269
      %s271 = ssub.s32 %s77, %s84
      %p272 = scmp.eq.s32.totalorder %s271, 0
      %s274 = sadd.s32 %s273, 1
      %s275 = scalar_select %p272, %s273, %s274
      %p278 = pneg %p272
      %p279 = scmp.eq.s32.totalorder %s69, 4
      %p280 = por %p278, %p279
      %p281 = scmp.ne.s32.totalorder %s273, %s276
      %p282 = scmp.eq.s32.totalorder %s69, 0
      %p283 = por %p281, %p282
      %p284 = scmp.ne.s32.totalorder %s273, %s276
      %p285 = scmp.eq.s32.totalorder %s74, 4
      %p286 = por %p284, %p285
      %p287 = scmp.ne.s32.totalorder %s276, %s277
      %p288 = scmp.eq.s32.totalorder %s74, 0
      %p289 = por %p287, %p288
      %p290 = scmp.ne.s32.totalorder %s276, %s277
      %p291 = scmp.eq.s32.totalorder %s75, 4
      %p292 = por %p290, %p291
      %p294 = scmp.ne.s32.totalorder %s277, %s293
      %p295 = scmp.eq.s32.totalorder %s75, 0
      %p296 = por %p294, %p295
      %s297 = ssub.s32 %s77, %s84
      %p298 = scmp.eq.s32.totalorder %s297, 0
      %s300 = sadd.s32 %s299, 1
      %s301 = scalar_select %p298, %s299, %s300
      %p304 = pneg %p298
      %p305 = scmp.eq.s32.totalorder %s69, 4
      %p306 = por %p304, %p305
      %p307 = scmp.ne.s32.totalorder %s299, %s302
      %p308 = scmp.eq.s32.totalorder %s69, 0
      %p309 = por %p307, %p308
      %p310 = scmp.ne.s32.totalorder %s299, %s302
      %p311 = scmp.eq.s32.totalorder %s74, 4
      %p312 = por %p310, %p311
      %p313 = scmp.ne.s32.totalorder %s302, %s303
      %p314 = scmp.eq.s32.totalorder %s74, 0
      %p315 = por %p313, %p314
      %p316 = scmp.ne.s32.totalorder %s302, %s303
      %p317 = scmp.eq.s32.totalorder %s75, 4
      %p318 = por %p316, %p317
      %p320 = scmp.ne.s32.totalorder %s303, %s319
      %p321 = scmp.eq.s32.totalorder %s75, 0
      %p322 = por %p320, %p321
      %s323 = ssub.s32 %s77, %s84
      %p324 = scmp.eq.s32.totalorder %s323, 0
      %s326 = sadd.s32 %s325, 1
      %s327 = scalar_select %p324, %s325, %s326
      %p330 = pneg %p324
      %p331 = scmp.eq.s32.totalorder %s69, 4
      %p332 = por %p330, %p331
      %p333 = scmp.ne.s32.totalorder %s325, %s328
      %p334 = scmp.eq.s32.totalorder %s69, 0
      %p335 = por %p333, %p334
      %p336 = scmp.ne.s32.totalorder %s325, %s328
      %p337 = scmp.eq.s32.totalorder %s74, 4
      %p338 = por %p336, %p337
      %p339 = scmp.ne.s32.totalorder %s328, %s329
      %p340 = scmp.eq.s32.totalorder %s74, 0
      %p341 = por %p339, %p340
      %p342 = scmp.ne.s32.totalorder %s328, %s329
      %p343 = scmp.eq.s32.totalorder %s75, 4
      %p344 = por %p342, %p343
      %p346 = scmp.ne.s32.totalorder %s329, %s345
      %p347 = scmp.eq.s32.totalorder %s75, 0
      %p348 = por %p346, %p347
      %s349 = ssub.s32 %s77, %s84
      %p350 = scmp.eq.s32.totalorder %s349, 0
      %s352 = sadd.s32 %s351, 1
      %s353 = scalar_select %p350, %s351, %s352
      %p356 = pneg %p350
      %p357 = scmp.eq.s32.totalorder %s69, 4
      %p358 = por %p356, %p357
      %p359 = scmp.ne.s32.totalorder %s351, %s354
      %p360 = scmp.eq.s32.totalorder %s69, 0
      %p361 = por %p359, %p360
      %p362 = scmp.ne.s32.totalorder %s351, %s354
      %p363 = scmp.eq.s32.totalorder %s74, 4
      %p364 = por %p362, %p363
      %p365 = scmp.ne.s32.totalorder %s354, %s355
      %p366 = scmp.eq.s32.totalorder %s74, 0
      %p367 = por %p365, %p366
      %p368 = scmp.ne.s32.totalorder %s354, %s355
      %p369 = scmp.eq.s32.totalorder %s75, 4
      %p370 = por %p368, %p369
      %p372 = scmp.ne.s32.totalorder %s355, %s371
      %p373 = scmp.eq.s32.totalorder %s75, 0
      %p374 = por %p372, %p373
      %s375 = ssub.s32 %s77, %s84
      %p376 = scmp.eq.s32.totalorder %s375, 0
      %s378 = sadd.s32 %s377, 1
      %s379 = scalar_select %p376, %s377, %s378
      %p382 = pneg %p376
      %p383 = scmp.eq.s32.totalorder %s69, 4
      %p384 = por %p382, %p383
      %p385 = scmp.ne.s32.totalorder %s377, %s380
      %p386 = scmp.eq.s32.totalorder %s69, 0
      %p387 = por %p385, %p386
      %p388 = scmp.ne.s32.totalorder %s377, %s380
      %p389 = scmp.eq.s32.totalorder %s74, 4
      %p390 = por %p388, %p389
      %p391 = scmp.ne.s32.totalorder %s380, %s381
      %p392 = scmp.eq.s32.totalorder %s74, 0
      %p393 = por %p391, %p392
      %p394 = scmp.ne.s32.totalorder %s380, %s381
      %p395 = scmp.eq.s32.totalorder %s75, 4
      %p396 = por %p394, %p395
      %p398 = scmp.ne.s32.totalorder %s381, %s397
      %p399 = scmp.eq.s32.totalorder %s75, 0
      %p400 = por %p398, %p399
      %s401 = ssub.s32 %s77, %s84
      %p402 = scmp.eq.s32.totalorder %s401, 0
      %s404 = sadd.s32 %s403, 1
      %s405 = scalar_select %p402, %s403, %s404
      %p408 = pneg %p402
      %p409 = scmp.eq.s32.totalorder %s69, 4
      %p410 = por %p408, %p409
      %p411 = scmp.ne.s32.totalorder %s403, %s406
      %p412 = scmp.eq.s32.totalorder %s69, 0
      %p413 = por %p411, %p412
      %p414 = scmp.ne.s32.totalorder %s403, %s406
      %p415 = scmp.eq.s32.totalorder %s74, 4
      %p416 = por %p414, %p415
      %p417 = scmp.ne.s32.totalorder %s406, %s407
      %p418 = scmp.eq.s32.totalorder %s74, 0
      %p419 = por %p417, %p418
      %p420 = scmp.ne.s32.totalorder %s406, %s407
      %p421 = scmp.eq.s32.totalorder %s75, 4
      %p422 = por %p420, %p421
      %p424 = scmp.ne.s32.totalorder %s407, %s423
      %p425 = scmp.eq.s32.totalorder %s75, 0
      %p426 = por %p424, %p425
      %s427 = ssub.s32 %s77, %s84
      %p428 = scmp.eq.s32.totalorder %s427, 0
      %s430 = sadd.s32 %s429, 1
      %s431 = scalar_select %p428, %s429, %s430
      %p434 = pneg %p428
      %p435 = scmp.eq.s32.totalorder %s69, 4
      %p436 = por %p434, %p435
      %p437 = scmp.ne.s32.totalorder %s429, %s432
      %p438 = scmp.eq.s32.totalorder %s69, 0
      %p439 = por %p437, %p438
      %p440 = scmp.ne.s32.totalorder %s429, %s432
      %p441 = scmp.eq.s32.totalorder %s74, 4
      %p442 = por %p440, %p441
      %p443 = scmp.ne.s32.totalorder %s432, %s433
      %p444 = scmp.eq.s32.totalorder %s74, 0
      %p445 = por %p443, %p444
      %p446 = scmp.ne.s32.totalorder %s432, %s433
      %p447 = scmp.eq.s32.totalorder %s75, 4
      %p448 = por %p446, %p447
      %p450 = scmp.ne.s32.totalorder %s433, %s449
      %p451 = scmp.eq.s32.totalorder %s75, 0
      %p452 = por %p450, %p451
      %s453 = ssub.s32 %s77, %s84
      %p454 = scmp.eq.s32.totalorder %s453, 0
      %s456 = sadd.s32 %s455, 1
      %s457 = scalar_select %p454, %s455, %s456
      %p460 = pneg %p454
      %p461 = scmp.eq.s32.totalorder %s69, 4
      %p462 = por %p460, %p461
      %p463 = scmp.ne.s32.totalorder %s455, %s458
      %p464 = scmp.eq.s32.totalorder %s69, 0
      %p465 = por %p463, %p464
      %p466 = scmp.ne.s32.totalorder %s455, %s458
      %p467 = scmp.eq.s32.totalorder %s74, 4
      %p468 = por %p466, %p467
      %p469 = scmp.ne.s32.totalorder %s458, %s459
      %p470 = scmp.eq.s32.totalorder %s74, 0
      %p471 = por %p469, %p470
      %p472 = scmp.ne.s32.totalorder %s458, %s459
      %p473 = scmp.eq.s32.totalorder %s75, 4
      %p474 = por %p472, %p473
      %p476 = scmp.ne.s32.totalorder %s459, %s475
      %p477 = scmp.eq.s32.totalorder %s75, 0
      %p478 = por %p476, %p477
      %s479 = ssub.s32 %s77, %s84
      %p480 = scmp.eq.s32.totalorder %s479, 0
      %s482 = sadd.s32 %s481, 1
      %s483 = scalar_select %p480, %s481, %s482
      %p486 = pneg %p480
      %p487 = scmp.eq.s32.totalorder %s69, 4
      %p488 = por %p486, %p487
      %p489 = scmp.ne.s32.totalorder %s481, %s484
      %p490 = scmp.eq.s32.totalorder %s69, 0
      %p491 = por %p489, %p490
      %p492 = scmp.ne.s32.totalorder %s481, %s484
      %p493 = scmp.eq.s32.totalorder %s74, 4
      %p494 = por %p492, %p493
      %p495 = scmp.ne.s32.totalorder %s484, %s485
      %p496 = scmp.eq.s32.totalorder %s74, 0
      %p497 = por %p495, %p496
      %p498 = scmp.ne.s32.totalorder %s484, %s485
      %p499 = scmp.eq.s32.totalorder %s75, 4
      %p500 = por %p498, %p499
      %p502 = scmp.ne.s32.totalorder %s485, %s501
      %p503 = scmp.eq.s32.totalorder %s75, 0
      %p504 = por %p502, %p503
      %s505 = ssub.s32 %s77, %s84
      %p506 = scmp.eq.s32.totalorder %s505, 0
      %s508 = sadd.s32 %s507, 1
      %s509 = scalar_select %p506, %s507, %s508
      %p512 = pneg %p506
      %p513 = scmp.eq.s32.totalorder %s69, 4
      %p514 = por %p512, %p513
      %p515 = scmp.ne.s32.totalorder %s507, %s510
      %p516 = scmp.eq.s32.totalorder %s69, 0
      %p517 = por %p515, %p516
      %p518 = scmp.ne.s32.totalorder %s507, %s510
      %p519 = scmp.eq.s32.totalorder %s74, 4
      %p520 = por %p518, %p519
      %p521 = scmp.ne.s32.totalorder %s510, %s511
      %p522 = scmp.eq.s32.totalorder %s74, 0
      %p523 = por %p521, %p522
      %p524 = scmp.ne.s32.totalorder %s510, %s511
      %p525 = scmp.eq.s32.totalorder %s75, 4
      %p526 = por %p524, %p525
      %p528 = scmp.ne.s32.totalorder %s511, %s527
      %p529 = scmp.eq.s32.totalorder %s75, 0
      %p530 = por %p528, %p529
      %s531 = ssub.s32 %s77, %s84
      %p532 = scmp.eq.s32.totalorder %s531, 0
      %s534 = sadd.s32 %s533, 1
      %s535 = scalar_select %p532, %s533, %s534
      %p538 = pneg %p532
      %p539 = scmp.eq.s32.totalorder %s69, 4
      %p540 = por %p538, %p539
      %p541 = scmp.ne.s32.totalorder %s533, %s536
      %p542 = scmp.eq.s32.totalorder %s69, 0
      %p543 = por %p541, %p542
      %p544 = scmp.ne.s32.totalorder %s533, %s536
      %p545 = scmp.eq.s32.totalorder %s74, 4
      %p546 = por %p544, %p545
      %p547 = scmp.ne.s32.totalorder %s536, %s537
      %p548 = scmp.eq.s32.totalorder %s74, 0
      %p549 = por %p547, %p548
      %p550 = scmp.ne.s32.totalorder %s536, %s537
      %p551 = scmp.eq.s32.totalorder %s75, 4
      %p552 = por %p550, %p551
      %p554 = scmp.ne.s32.totalorder %s537, %s553
      %p555 = scmp.eq.s32.totalorder %s75, 0
      %p556 = por %p554, %p555
      %s557 = ssub.s32 %s77, %s84
      %p558 = scmp.eq.s32.totalorder %s557, 0
      %s560 = sadd.s32 %s559, 1
      %s561 = scalar_select %p558, %s559, %s560
      %p564 = pneg %p558
      %p565 = scmp.eq.s32.totalorder %s69, 4
      %p566 = por %p564, %p565
      %p567 = scmp.ne.s32.totalorder %s559, %s562
      %p568 = scmp.eq.s32.totalorder %s69, 0
      %p569 = por %p567, %p568
      %p570 = scmp.ne.s32.totalorder %s559, %s562
      %p571 = scmp.eq.s32.totalorder %s74, 4
      %p572 = por %p570, %p571
      %p573 = scmp.ne.s32.totalorder %s562, %s563
      %p574 = scmp.eq.s32.totalorder %s74, 0
      %p575 = por %p573, %p574
      %p576 = scmp.ne.s32.totalorder %s562, %s563
      %p577 = scmp.eq.s32.totalorder %s75, 4
      %p578 = por %p576, %p577
      %p580 = scmp.ne.s32.totalorder %s563, %s579
      %p581 = scmp.eq.s32.totalorder %s75, 0
      %p582 = por %p580, %p581
      %s583 = ssub.s32 %s77, %s84
      %p584 = scmp.eq.s32.totalorder %s583, 0
      %s586 = sadd.s32 %s585, 1
      %s587 = scalar_select %p584, %s585, %s586
      %p590 = pneg %p584
      %p591 = scmp.eq.s32.totalorder %s69, 4
      %p592 = por %p590, %p591
      %p593 = scmp.ne.s32.totalorder %s585, %s588
      %p594 = scmp.eq.s32.totalorder %s69, 0
      %p595 = por %p593, %p594
      %p596 = scmp.ne.s32.totalorder %s585, %s588
      %p597 = scmp.eq.s32.totalorder %s74, 4
      %p598 = por %p596, %p597
      %p599 = scmp.ne.s32.totalorder %s588, %s589
      %p600 = scmp.eq.s32.totalorder %s74, 0
      %p601 = por %p599, %p600
      %p602 = scmp.ne.s32.totalorder %s588, %s589
      %p603 = scmp.eq.s32.totalorder %s75, 4
      %p604 = por %p602, %p603
      %p606 = scmp.ne.s32.totalorder %s589, %s605
      %p607 = scmp.eq.s32.totalorder %s75, 0
      %p608 = por %p606, %p607
      %s609 = ssub.s32 %s77, %s84
      %p610 = scmp.eq.s32.totalorder %s609, 0
      %s612 = sadd.s32 %s611, 1
      %s613 = scalar_select %p610, %s611, %s612
      %p616 = pneg %p610
      %p617 = scmp.eq.s32.totalorder %s69, 4
      %p618 = por %p616, %p617
      %p619 = scmp.ne.s32.totalorder %s611, %s614
      %p620 = scmp.eq.s32.totalorder %s69, 0
      %p621 = por %p619, %p620
      %p622 = scmp.ne.s32.totalorder %s611, %s614
      %p623 = scmp.eq.s32.totalorder %s74, 4
      %p624 = por %p622, %p623
      %p625 = scmp.ne.s32.totalorder %s614, %s615
      %p626 = scmp.eq.s32.totalorder %s74, 0
      %p627 = por %p625, %p626
      %p628 = scmp.ne.s32.totalorder %s614, %s615
      %p629 = scmp.eq.s32.totalorder %s75, 4
      %p630 = por %p628, %p629
      %p632 = scmp.ne.s32.totalorder %s615, %s631
      %p633 = scmp.eq.s32.totalorder %s75, 0
      %p634 = por %p632, %p633
      %s635 = ssub.s32 %s77, %s84
      %p636 = scmp.eq.s32.totalorder %s635, 0
      %s638 = sadd.s32 %s637, 1
      %s639 = scalar_select %p636, %s637, %s638
      %p642 = pneg %p636
      %p643 = scmp.eq.s32.totalorder %s69, 4
      %p644 = por %p642, %p643
      %p645 = scmp.ne.s32.totalorder %s637, %s640
      %p646 = scmp.eq.s32.totalorder %s69, 0
      %p647 = por %p645, %p646
      %p648 = scmp.ne.s32.totalorder %s637, %s640
      %p649 = scmp.eq.s32.totalorder %s74, 4
      %p650 = por %p648, %p649
      %p651 = scmp.ne.s32.totalorder %s640, %s641
      %p652 = scmp.eq.s32.totalorder %s74, 0
      %p653 = por %p651, %p652
      %p654 = scmp.ne.s32.totalorder %s640, %s641
      %p655 = scmp.eq.s32.totalorder %s75, 4
      %p656 = por %p654, %p655
      %p658 = scmp.ne.s32.totalorder %s641, %s657
      %p659 = scmp.eq.s32.totalorder %s75, 0
      %p660 = por %p658, %p659
      %s661 = ssub.s32 %s77, %s84
      %p662 = scmp.eq.s32.totalorder %s661, 0
      %s664 = sadd.s32 %s663, 1
      %s665 = scalar_select %p662, %s663, %s664
      %p668 = pneg %p662
      %p669 = scmp.eq.s32.totalorder %s69, 4
      %p670 = por %p668, %p669
      %p671 = scmp.ne.s32.totalorder %s663, %s666
      %p672 = scmp.eq.s32.totalorder %s69, 0
      %p673 = por %p671, %p672
      %p674 = scmp.ne.s32.totalorder %s663, %s666
      %p675 = scmp.eq.s32.totalorder %s74, 4
      %p676 = por %p674, %p675
      %p677 = scmp.ne.s32.totalorder %s666, %s667
      %p678 = scmp.eq.s32.totalorder %s74, 0
      %p679 = por %p677, %p678
      %p680 = scmp.ne.s32.totalorder %s666, %s667
      %p681 = scmp.eq.s32.totalorder %s75, 4
      %p682 = por %p680, %p681
      %p684 = scmp.ne.s32.totalorder %s667, %s683
      %p685 = scmp.eq.s32.totalorder %s75, 0
      %p686 = por %p684, %p685
      %s687 = ssub.s32 %s77, %s84
      %p688 = scmp.eq.s32.totalorder %s687, 0
      %s690 = sadd.s32 %s689, 1
      %s691 = scalar_select %p688, %s689, %s690
      %p694 = pneg %p688
      %p695 = scmp.eq.s32.totalorder %s69, 4
      %p696 = por %p694, %p695
      %p697 = scmp.ne.s32.totalorder %s689, %s692
      %p698 = scmp.eq.s32.totalorder %s69, 0
      %p699 = por %p697, %p698
      %p700 = scmp.ne.s32.totalorder %s689, %s692
      %p701 = scmp.eq.s32.totalorder %s74, 4
      %p702 = por %p700, %p701
      %p703 = scmp.ne.s32.totalorder %s692, %s693
      %p704 = scmp.eq.s32.totalorder %s74, 0
      %p705 = por %p703, %p704
      %p706 = scmp.ne.s32.totalorder %s692, %s693
      %p707 = scmp.eq.s32.totalorder %s75, 4
      %p708 = por %p706, %p707
      %p710 = scmp.ne.s32.totalorder %s693, %s709
      %p711 = scmp.eq.s32.totalorder %s75, 0
      %p712 = por %p710, %p711
      %s713 = ssub.s32 %s77, %s84
      %p714 = scmp.eq.s32.totalorder %s713, 0
      %s716 = sadd.s32 %s715, 1
      %s717 = scalar_select %p714, %s715, %s716
      %p720 = pneg %p714
      %p721 = scmp.eq.s32.totalorder %s69, 4
      %p722 = por %p720, %p721
      %p723 = scmp.ne.s32.totalorder %s715, %s718
      %p724 = scmp.eq.s32.totalorder %s69, 0
      %p725 = por %p723, %p724
      %p726 = scmp.ne.s32.totalorder %s715, %s718
      %p727 = scmp.eq.s32.totalorder %s74, 4
      %p728 = por %p726, %p727
      %p729 = scmp.ne.s32.totalorder %s718, %s719
      %p730 = scmp.eq.s32.totalorder %s74, 0
      %p731 = por %p729, %p730
      %p732 = scmp.ne.s32.totalorder %s718, %s719
      %p733 = scmp.eq.s32.totalorder %s75, 4
      %p734 = por %p732, %p733
      %p736 = scmp.ne.s32.totalorder %s719, %s735
      %p737 = scmp.eq.s32.totalorder %s75, 0
      %p738 = por %p736, %p737
      %s739 = ssub.s32 %s76, %s88
      %p740 = scmp.eq.s32.totalorder %s739, 0
      %s742 = sadd.s32 %s741, 1
      %s743 = scalar_select %p740, %s741, %s742
      %p746 = pneg %p740
      %p747 = scmp.eq.s32.totalorder %s69, 4
      %p748 = por %p746, %p747
      %p749 = scmp.ne.s32.totalorder %s741, %s744
      %p750 = scmp.eq.s32.totalorder %s69, 0
      %p751 = por %p749, %p750
      %p752 = scmp.ne.s32.totalorder %s741, %s744
      %p753 = scmp.eq.s32.totalorder %s74, 4
      %p754 = por %p752, %p753
      %p755 = scmp.ne.s32.totalorder %s744, %s745
      %p756 = scmp.eq.s32.totalorder %s74, 0
      %p757 = por %p755, %p756
      %p758 = scmp.ne.s32.totalorder %s744, %s745
      %p759 = scmp.eq.s32.totalorder %s75, 4
      %p760 = por %p758, %p759
      %p762 = scmp.ne.s32.totalorder %s745, %s761
      %p763 = scmp.eq.s32.totalorder %s75, 0
      %p764 = por %p762, %p763
      %p765 = scmp.le.s32.totalorder 1, %s69
      %p766 = scmp.lt.s32.totalorder %s69, 6
      %p767 = pnand %p765, %p766
      %p768 = pneg %p767
      // Predicated region
      $region9: #{translator_noln_forward.2} parent=5 // pred_check
        _
      $region10: #{translator_noln_forward.2} parent=5 // pred_check_branch
        %770 = sbr.rel (%p767) target = $region12
      $region11: #{translator_noln_forward.2} parent=5 // pred_region
        %s771 = ssub.s32 %s69, 1
        // Predicated region
        $region13: #{translator_noln_forward.2} parent=11 // pred_check
          %p772 = pneg %p107
        $region14: #{translator_noln_forward.2} parent=11 // pred_check_branch
          %774 = sbr.rel (%p772) target = $region16
        $region15: #{translator_noln_forward.2} parent=11 // pred_region
          %s775 = smul.u32 2, %s78
          %s777 = ssub.s32 256, 256
          %778 = vsyncadd [#allocation4], %s777
          %s779 = smul.addr %s775, 128
          %s780 = scalar_lea.hbm %s0, %s779
          %s781 = sshll.u32 [#allocation3], 4
          %s782 = int_to_ptr.vmem [resolvable:$true] %s781
          %787 = dma.hbm_to_vmem [thread:$0]  %s780, 256, %s782, [#allocation4], 128, 128, 8
        $region16: #{translator_noln_forward.2} parent=11 // pred_fallthru
          _
      $region12: #{translator_noln_forward.2} parent=5 // pred_fallthru
        _
      %p788 = scmp.lt.s32.totalorder %s69, 5
      // Predicated region
      $region17: #{translator_noln_forward.2} parent=5 // pred_check
        %p789 = pneg %p788
      $region18: #{translator_noln_forward.2} parent=5 // pred_check_branch
        %791 = sbr.rel (%p789) target = $region20
      $region19: #{translator_noln_forward.2} parent=5 // pred_region
        // Predicated region
        $region21: #{translator_noln_forward.2} parent=19 // pred_check
          %p792 = pneg %p127
        $region22: #{translator_noln_forward.2} parent=19 // pred_check_branch
          %794 = sbr.rel (%p792) target = $region24
        $region23: #{translator_noln_forward.2} parent=19 // pred_region
          %s795 = sand.u32 %s69, 1
          %s796 = scalar_lea.sflag [#allocation7], %s795
          %s797 = sand.u32 %s117, 1
          %s798 = smul.addr %s797, 16
          %s799 = scalar_lea.vmem [#allocation6], %s798
          %s801 = ssub.s32 256, 256
          %802 = vsyncadd %s796, %s801
          %s803 = smul.addr %s77, 4
          %s804 = smul.addr %s803, 64
          %s805 = scalar_lea.hbm %s1, %s804
          %s806 = sshll.u32 %s799, 4
          %s807 = int_to_ptr.vmem [resolvable:$true] %s806
          %812 = dma.hbm_to_vmem [thread:$0]  %s805, 256, %s807, %s796, 64, 64, 4
        $region24: #{translator_noln_forward.2} parent=19 // pred_fallthru
          _
        // Predicated region
        $region25: #{translator_noln_forward.2} parent=19 // pred_check
          %p813 = pneg %p153
        $region26: #{translator_noln_forward.2} parent=19 // pred_check_branch
          %815 = sbr.rel (%p813) target = $region28
        $region27: #{translator_noln_forward.2} parent=19 // pred_region
          %s816 = sand.u32 %s69, 1
          %s817 = scalar_lea.sflag [#allocation7], %s816
          %s818 = sand.u32 %s143, 1
          %s819 = scalar_lea.vmem [#allocation8], %s818
          %s821 = ssub.s32 16, 16
          %822 = vsyncadd %s817, %s821
          %s823 = smul.addr %s77, 16
          %s824 = scalar_lea.hbm %s2, %s823
          %s826 = sshll.u32 %s819, 4
          %s827 = int_to_ptr.vmem [resolvable:$true] %s826
          %829 = dma.hbm_to_vmem [thread:$0]  %s824, 16, %s827, %s817
        $region28: #{translator_noln_forward.2} parent=19 // pred_fallthru
          _
        // Predicated region
        $region29: #{translator_noln_forward.2} parent=19 // pred_check
          %p830 = pneg %p179
        $region30: #{translator_noln_forward.2} parent=19 // pred_check_branch
          %832 = sbr.rel (%p830) target = $region32
        $region31: #{translator_noln_forward.2} parent=19 // pred_region
          %s833 = sand.u32 %s69, 1
          %s834 = scalar_lea.sflag [#allocation10], %s833
          %s835 = sand.u32 %s169, 1
          %s836 = scalar_lea.vmem [#allocation9], %s835
          %s838 = ssub.s32 16, 16
          %839 = vsyncadd %s834, %s838
          %s840 = smul.addr %s77, 16
          %s841 = scalar_lea.hbm %s3, %s840
          %s843 = sshll.u32 %s836, 4
          %s844 = int_to_ptr.vmem [resolvable:$true] %s843
          %846 = dma.hbm_to_vmem [thread:$0]  %s841, 16, %s844, %s834
        $region32: #{translator_noln_forward.2} parent=19 // pred_fallthru
          _
        // Predicated region
        $region33: #{translator_noln_forward.2} parent=19 // pred_check
          %p847 = pneg %p205
        $region34: #{translator_noln_forward.2} parent=19 // pred_check_branch
          %849 = sbr.rel (%p847) target = $region36
        $region35: #{translator_noln_forward.2} parent=19 // pred_region
          %s850 = sand.u32 %s69, 1
          %s851 = scalar_lea.sflag [#allocation10], %s850
          %s852 = sand.u32 %s195, 1
          %s853 = scalar_lea.vmem [#allocation11], %s852
          %s855 = ssub.s32 16, 16
          %856 = vsyncadd %s851, %s855
          %s857 = smul.addr %s77, 16
          %s858 = scalar_lea.hbm %s4, %s857
          %s860 = sshll.u32 %s853, 4
          %s861 = int_to_ptr.vmem [resolvable:$true] %s860
          %863 = dma.hbm_to_vmem [thread:$0]  %s858, 16, %s861, %s851
        $region36: #{translator_noln_forward.2} parent=19 // pred_fallthru
          _
        // Predicated region
        $region37: #{translator_noln_forward.2} parent=19 // pred_check
          %p864 = pneg %p231
        $region38: #{translator_noln_forward.2} parent=19 // pred_check_branch
          %866 = sbr.rel (%p864) target = $region40
        $region39: #{translator_noln_forward.2} parent=19 // pred_region
          %s867 = sand.u32 %s69, 1
          %s868 = scalar_lea.sflag [#allocation13], %s867
          %s869 = sand.u32 %s221, 1
          %s870 = smul.addr %s869, 32
          %s871 = scalar_lea.vmem [#allocation12], %s870
          %s873 = ssub.s32 512, 512
          %874 = vsyncadd %s868, %s873
          %s875 = smul.addr %s77, 8
          %s876 = smul.addr %s875, 64
          %s877 = scalar_lea.hbm %s5, %s876
          %s878 = sshll.u32 %s871, 4
          %s879 = int_to_ptr.vmem [resolvable:$true] %s878
          %884 = dma.hbm_to_vmem [thread:$0]  %s877, 512, %s879, %s868, 64, 64, 4
        $region40: #{translator_noln_forward.2} parent=19 // pred_fallthru
          _
        // Predicated region
        $region41: #{translator_noln_forward.2} parent=19 // pred_check
          %p885 = pneg %p257
        $region42: #{translator_noln_forward.2} parent=19 // pred_check_branch
          %887 = sbr.rel (%p885) target = $region44
        $region43: #{translator_noln_forward.2} parent=19 // pred_region
          %s888 = sand.u32 %s69, 1
          %s889 = scalar_lea.sflag [#allocation13], %s888
          %s890 = sand.u32 %s247, 1
          %s891 = scalar_lea.vmem [#allocation14], %s890
          %s893 = ssub.s32 16, 16
          %894 = vsyncadd %s889, %s893
          %s895 = smul.addr %s77, 16
          %s896 = scalar_lea.hbm %s6, %s895
          %s898 = sshll.u32 %s891, 4
          %s899 = int_to_ptr.vmem [resolvable:$true] %s898
          %901 = dma.hbm_to_vmem [thread:$0]  %s896, 16, %s899, %s889
        $region44: #{translator_noln_forward.2} parent=19 // pred_fallthru
          _
        // Predicated region
        $region45: #{translator_noln_forward.2} parent=19 // pred_check
          %p902 = pneg %p283
        $region46: #{translator_noln_forward.2} parent=19 // pred_check_branch
          %904 = sbr.rel (%p902) target = $region48
        $region47: #{translator_noln_forward.2} parent=19 // pred_region
          %s905 = sand.u32 %s69, 1
          %s906 = scalar_lea.sflag [#allocation16], %s905
          %s907 = sand.u32 %s273, 1
          %s908 = scalar_lea.vmem [#allocation15], %s907
          %s910 = ssub.s32 16, 16
          %911 = vsyncadd %s906, %s910
          %s912 = smul.addr %s77, 16
          %s913 = scalar_lea.hbm %s7, %s912
          %s915 = sshll.u32 %s908, 4
          %s916 = int_to_ptr.vmem [resolvable:$true] %s915
          %918 = dma.hbm_to_vmem [thread:$0]  %s913, 16, %s916, %s906
        $region48: #{translator_noln_forward.2} parent=19 // pred_fallthru
          _
        // Predicated region
        $region49: #{translator_noln_forward.2} parent=19 // pred_check
          %p919 = pneg %p309
        $region50: #{translator_noln_forward.2} parent=19 // pred_check_branch
          %921 = sbr.rel (%p919) target = $region52
        $region51: #{translator_noln_forward.2} parent=19 // pred_region
          %s922 = sand.u32 %s69, 1
          %s923 = scalar_lea.sflag [#allocation16], %s922
          %s924 = sand.u32 %s299, 1
          %s925 = scalar_lea.vmem [#allocation17], %s924
          %s927 = ssub.s32 16, 16
          %928 = vsyncadd %s923, %s927
          %s929 = smul.addr %s77, 16
          %s930 = scalar_lea.hbm %s8, %s929
          %s932 = sshll.u32 %s925, 4
          %s933 = int_to_ptr.vmem [resolvable:$true] %s932
          %935 = dma.hbm_to_vmem [thread:$0]  %s930, 16, %s933, %s923
        $region52: #{translator_noln_forward.2} parent=19 // pred_fallthru
          _
        // Predicated region
        $region53: #{translator_noln_forward.2} parent=19 // pred_check
          %p936 = pneg %p335
        $region54: #{translator_noln_forward.2} parent=19 // pred_check_branch
          %938 = sbr.rel (%p936) target = $region56
        $region55: #{translator_noln_forward.2} parent=19 // pred_region
          %s939 = sand.u32 %s69, 1
          %s940 = scalar_lea.sflag [#allocation19], %s939
          %s941 = sand.u32 %s325, 1
          %s942 = smul.addr %s941, 32
          %s943 = scalar_lea.vmem [#allocation18], %s942
          %s945 = ssub.s32 512, 512
          %946 = vsyncadd %s940, %s945
          %s947 = smul.addr %s77, 8
          %s948 = smul.addr %s947, 64
          %s949 = scalar_lea.hbm %s9, %s948
          %s950 = sshll.u32 %s943, 4
          %s951 = int_to_ptr.vmem [resolvable:$true] %s950
          %956 = dma.hbm_to_vmem [thread:$0]  %s949, 512, %s951, %s940, 64, 64, 4
        $region56: #{translator_noln_forward.2} parent=19 // pred_fallthru
          _
        // Predicated region
        $region57: #{translator_noln_forward.2} parent=19 // pred_check
          %p957 = pneg %p361
        $region58: #{translator_noln_forward.2} parent=19 // pred_check_branch
          %959 = sbr.rel (%p957) target = $region60
        $region59: #{translator_noln_forward.2} parent=19 // pred_region
          %s960 = sand.u32 %s69, 1
          %s961 = scalar_lea.sflag [#allocation19], %s960
          %s962 = sand.u32 %s351, 1
          %s963 = scalar_lea.vmem [#allocation20], %s962
          %s965 = ssub.s32 16, 16
          %966 = vsyncadd %s961, %s965
          %s967 = smul.addr %s77, 16
          %s968 = scalar_lea.hbm %s10, %s967
          %s970 = sshll.u32 %s963, 4
          %s971 = int_to_ptr.vmem [resolvable:$true] %s970
          %973 = dma.hbm_to_vmem [thread:$0]  %s968, 16, %s971, %s961
        $region60: #{translator_noln_forward.2} parent=19 // pred_fallthru
          _
        // Predicated region
        $region61: #{translator_noln_forward.2} parent=19 // pred_check
          %p974 = pneg %p387
        $region62: #{translator_noln_forward.2} parent=19 // pred_check_branch
          %976 = sbr.rel (%p974) target = $region64
        $region63: #{translator_noln_forward.2} parent=19 // pred_region
          %s977 = sand.u32 %s69, 1
          %s978 = scalar_lea.sflag [#allocation22], %s977
          %s979 = sand.u32 %s377, 1
          %s980 = scalar_lea.vmem [#allocation21], %s979
          %s982 = ssub.s32 16, 16
          %983 = vsyncadd %s978, %s982
          %s984 = smul.addr %s77, 16
          %s985 = scalar_lea.hbm %s11, %s984
          %s987 = sshll.u32 %s980, 4
          %s988 = int_to_ptr.vmem [resolvable:$true] %s987
          %990 = dma.hbm_to_vmem [thread:$0]  %s985, 16, %s988, %s978
        $region64: #{translator_noln_forward.2} parent=19 // pred_fallthru
          _
        // Predicated region
        $region65: #{translator_noln_forward.2} parent=19 // pred_check
          %p991 = pneg %p413
        $region66: #{translator_noln_forward.2} parent=19 // pred_check_branch
          %993 = sbr.rel (%p991) target = $region68
        $region67: #{translator_noln_forward.2} parent=19 // pred_region
          %s994 = sand.u32 %s69, 1
          %s995 = scalar_lea.sflag [#allocation22], %s994
          %s996 = sand.u32 %s403, 1
          %s997 = scalar_lea.vmem [#allocation23], %s996
          %s999 = ssub.s32 16, 16
          %1000 = vsyncadd %s995, %s999
          %s1001 = smul.addr %s77, 16
          %s1002 = scalar_lea.hbm %s12, %s1001
          %s1004 = sshll.u32 %s997, 4
          %s1005 = int_to_ptr.vmem [resolvable:$true] %s1004
          %1007 = dma.hbm_to_vmem [thread:$0]  %s1002, 16, %s1005, %s995
        $region68: #{translator_noln_forward.2} parent=19 // pred_fallthru
          _
        // Predicated region
        $region69: #{translator_noln_forward.2} parent=19 // pred_check
          %p1008 = pneg %p439
        $region70: #{translator_noln_forward.2} parent=19 // pred_check_branch
          %1010 = sbr.rel (%p1008) target = $region72
        $region71: #{translator_noln_forward.2} parent=19 // pred_region
          %s1011 = sand.u32 %s69, 1
          %s1012 = scalar_lea.sflag [#allocation25], %s1011
          %s1013 = sand.u32 %s429, 1
          %s1014 = smul.addr %s1013, 8
          %s1015 = scalar_lea.vmem [#allocation24], %s1014
          %s1017 = ssub.s32 128, 128
          %1018 = vsyncadd %s1012, %s1017
          %s1019 = smul.addr %s77, 2
          %s1020 = smul.addr %s1019, 64
          %s1021 = scalar_lea.hbm %s13, %s1020
          %s1022 = sshll.u32 %s1015, 4
          %s1023 = int_to_ptr.vmem [resolvable:$true] %s1022
          %1028 = dma.hbm_to_vmem [thread:$0]  %s1021, 128, %s1023, %s1012, 64, 64, 4
        $region72: #{translator_noln_forward.2} parent=19 // pred_fallthru
          _
        // Predicated region
        $region73: #{translator_noln_forward.2} parent=19 // pred_check
          %p1029 = pneg %p465
        $region74: #{translator_noln_forward.2} parent=19 // pred_check_branch
          %1031 = sbr.rel (%p1029) target = $region76
        $region75: #{translator_noln_forward.2} parent=19 // pred_region
          %s1032 = sand.u32 %s69, 1
          %s1033 = scalar_lea.sflag [#allocation25], %s1032
          %s1034 = sand.u32 %s455, 1
          %s1035 = smul.addr %s1034, 16
          %s1036 = scalar_lea.vmem [#allocation26], %s1035
          %s1038 = ssub.s32 256, 256
          %1039 = vsyncadd %s1033, %s1038
          %s1040 = smul.addr %s77, 2
          %s1041 = smul.addr %s1040, 128
          %s1042 = scalar_lea.hbm %s14, %s1041
          %s1043 = sshll.u32 %s1036, 4
          %s1044 = int_to_ptr.vmem [resolvable:$true] %s1043
          %1049 = dma.hbm_to_vmem [thread:$0]  %s1042, 256, %s1044, %s1033, 128, 128, 8
        $region76: #{translator_noln_forward.2} parent=19 // pred_fallthru
          _
        // Predicated region
        $region77: #{translator_noln_forward.2} parent=19 // pred_check
          %p1050 = pneg %p491
        $region78: #{translator_noln_forward.2} parent=19 // pred_check_branch
          %1052 = sbr.rel (%p1050) target = $region80
        $region79: #{translator_noln_forward.2} parent=19 // pred_region
          %s1053 = sand.u32 %s69, 1
          %s1054 = scalar_lea.sflag [#allocation28], %s1053
          %s1055 = sand.u32 %s481, 1
          %s1056 = smul.addr %s1055, 16
          %s1057 = scalar_lea.vmem [#allocation27], %s1056
          %s1059 = ssub.s32 256, 256
          %1060 = vsyncadd %s1054, %s1059
          %s1061 = smul.addr %s77, 2
          %s1062 = smul.addr %s1061, 128
          %s1063 = scalar_lea.hbm %s15, %s1062
          %s1064 = sshll.u32 %s1057, 4
          %s1065 = int_to_ptr.vmem [resolvable:$true] %s1064
          %1070 = dma.hbm_to_vmem [thread:$0]  %s1063, 256, %s1065, %s1054, 128, 128, 8
        $region80: #{translator_noln_forward.2} parent=19 // pred_fallthru
          _
        // Predicated region
        $region81: #{translator_noln_forward.2} parent=19 // pred_check
          %p1071 = pneg %p517
        $region82: #{translator_noln_forward.2} parent=19 // pred_check_branch
          %1073 = sbr.rel (%p1071) target = $region84
        $region83: #{translator_noln_forward.2} parent=19 // pred_region
          %s1074 = sand.u32 %s69, 1
          %s1075 = scalar_lea.sflag [#allocation28], %s1074
          %s1076 = sand.u32 %s507, 1
          %s1077 = smul.addr %s1076, 16
          %s1078 = scalar_lea.vmem [#allocation29], %s1077
          %s1080 = ssub.s32 256, 256
          %1081 = vsyncadd %s1075, %s1080
          %s1082 = smul.addr %s77, 2
          %s1083 = smul.addr %s1082, 128
          %s1084 = scalar_lea.hbm %s16, %s1083
          %s1085 = sshll.u32 %s1078, 4
          %s1086 = int_to_ptr.vmem [resolvable:$true] %s1085
          %1091 = dma.hbm_to_vmem [thread:$0]  %s1084, 256, %s1086, %s1075, 128, 128, 8
        $region84: #{translator_noln_forward.2} parent=19 // pred_fallthru
          _
        // Predicated region
        $region85: #{translator_noln_forward.2} parent=19 // pred_check
          %p1092 = pneg %p543
        $region86: #{translator_noln_forward.2} parent=19 // pred_check_branch
          %1094 = sbr.rel (%p1092) target = $region88
        $region87: #{translator_noln_forward.2} parent=19 // pred_region
          %s1095 = sand.u32 %s69, 1
          %s1096 = scalar_lea.sflag [#allocation31], %s1095
          %s1097 = sand.u32 %s533, 1
          %s1098 = smul.addr %s1097, 8
          %s1099 = scalar_lea.vmem [#allocation30], %s1098
          %s1101 = ssub.s32 128, 128
          %1102 = vsyncadd %s1096, %s1101
          %s1103 = smul.addr %s77, 2
          %s1104 = smul.addr %s1103, 64
          %s1105 = scalar_lea.hbm %s17, %s1104
          %s1106 = sshll.u32 %s1099, 4
          %s1107 = int_to_ptr.vmem [resolvable:$true] %s1106
          %1112 = dma.hbm_to_vmem [thread:$0]  %s1105, 128, %s1107, %s1096, 64, 64, 4
        $region88: #{translator_noln_forward.2} parent=19 // pred_fallthru
          _
        // Predicated region
        $region89: #{translator_noln_forward.2} parent=19 // pred_check
          %p1113 = pneg %p569
        $region90: #{translator_noln_forward.2} parent=19 // pred_check_branch
          %1115 = sbr.rel (%p1113) target = $region92
        $region91: #{translator_noln_forward.2} parent=19 // pred_region
          %s1116 = sand.u32 %s69, 1
          %s1117 = scalar_lea.sflag [#allocation31], %s1116
          %s1118 = sand.u32 %s559, 1
          %s1119 = smul.addr %s1118, 16
          %s1120 = scalar_lea.vmem [#allocation32], %s1119
          %s1122 = ssub.s32 256, 256
          %1123 = vsyncadd %s1117, %s1122
          %s1124 = smul.addr %s77, 2
          %s1125 = smul.addr %s1124, 128
          %s1126 = scalar_lea.hbm %s18, %s1125
          %s1127 = sshll.u32 %s1120, 4
          %s1128 = int_to_ptr.vmem [resolvable:$true] %s1127
          %1133 = dma.hbm_to_vmem [thread:$0]  %s1126, 256, %s1128, %s1117, 128, 128, 8
        $region92: #{translator_noln_forward.2} parent=19 // pred_fallthru
          _
        // Predicated region
        $region93: #{translator_noln_forward.2} parent=19 // pred_check
          %p1134 = pneg %p595
        $region94: #{translator_noln_forward.2} parent=19 // pred_check_branch
          %1136 = sbr.rel (%p1134) target = $region96
        $region95: #{translator_noln_forward.2} parent=19 // pred_region
          %s1137 = sand.u32 %s69, 1
          %s1138 = scalar_lea.sflag [#allocation34], %s1137
          %s1139 = sand.u32 %s585, 1
          %s1140 = smul.addr %s1139, 16
          %s1141 = scalar_lea.vmem [#allocation33], %s1140
          %s1143 = ssub.s32 256, 256
          %1144 = vsyncadd %s1138, %s1143
          %s1145 = smul.addr %s77, 2
          %s1146 = smul.addr %s1145, 128
          %s1147 = scalar_lea.hbm %s19, %s1146
          %s1148 = sshll.u32 %s1141, 4
          %s1149 = int_to_ptr.vmem [resolvable:$true] %s1148
          %1154 = dma.hbm_to_vmem [thread:$0]  %s1147, 256, %s1149, %s1138, 128, 128, 8
        $region96: #{translator_noln_forward.2} parent=19 // pred_fallthru
          _
        // Predicated region
        $region97: #{translator_noln_forward.2} parent=19 // pred_check
          %p1155 = pneg %p621
        $region98: #{translator_noln_forward.2} parent=19 // pred_check_branch
          %1157 = sbr.rel (%p1155) target = $region100
        $region99: #{translator_noln_forward.2} parent=19 // pred_region
          %s1158 = sand.u32 %s69, 1
          %s1159 = scalar_lea.sflag [#allocation34], %s1158
          %s1160 = sand.u32 %s611, 1
          %s1161 = smul.addr %s1160, 16
          %s1162 = scalar_lea.vmem [#allocation35], %s1161
          %s1164 = ssub.s32 256, 256
          %1165 = vsyncadd %s1159, %s1164
          %s1166 = smul.addr %s77, 2
          %s1167 = smul.addr %s1166, 128
          %s1168 = scalar_lea.hbm %s20, %s1167
          %s1169 = sshll.u32 %s1162, 4
          %s1170 = int_to_ptr.vmem [resolvable:$true] %s1169
          %1175 = dma.hbm_to_vmem [thread:$0]  %s1168, 256, %s1170, %s1159, 128, 128, 8
        $region100: #{translator_noln_forward.2} parent=19 // pred_fallthru
          _
        // Predicated region
        $region101: #{translator_noln_forward.2} parent=19 // pred_check
          %p1176 = pneg %p647
        $region102: #{translator_noln_forward.2} parent=19 // pred_check_branch
          %1178 = sbr.rel (%p1176) target = $region104
        $region103: #{translator_noln_forward.2} parent=19 // pred_region
          %s1179 = sand.u32 %s69, 1
          %s1180 = scalar_lea.sflag [#allocation37], %s1179
          %s1181 = sand.u32 %s637, 1
          %s1182 = smul.addr %s1181, 4
          %s1183 = scalar_lea.vmem [#allocation36], %s1182
          %s1185 = ssub.s32 64, 64
          %1186 = vsyncadd %s1180, %s1185
          %s1187 = smul.addr %s77, 64
          %s1188 = scalar_lea.hbm %s21, %s1187
          %s1190 = sshll.u32 %s1183, 4
          %s1191 = int_to_ptr.vmem [resolvable:$true] %s1190
          %1193 = dma.hbm_to_vmem [thread:$0]  %s1188, 64, %s1191, %s1180
        $region104: #{translator_noln_forward.2} parent=19 // pred_fallthru
          _
        // Predicated region
        $region105: #{translator_noln_forward.2} parent=19 // pred_check
          %p1194 = pneg %p673
        $region106: #{translator_noln_forward.2} parent=19 // pred_check_branch
          %1196 = sbr.rel (%p1194) target = $region108
        $region107: #{translator_noln_forward.2} parent=19 // pred_region
          %s1197 = sand.u32 %s69, 1
          %s1198 = scalar_lea.sflag [#allocation37], %s1197
          %s1199 = sand.u32 %s663, 1
          %s1200 = smul.addr %s1199, 8
          %s1201 = scalar_lea.vmem [#allocation38], %s1200
          %s1203 = ssub.s32 128, 128
          %1204 = vsyncadd %s1198, %s1203
          %s1205 = smul.addr %s77, 128
          %s1206 = scalar_lea.hbm %s22, %s1205
          %s1208 = sshll.u32 %s1201, 4
          %s1209 = int_to_ptr.vmem [resolvable:$true] %s1208
          %1211 = dma.hbm_to_vmem [thread:$0]  %s1206, 128, %s1209, %s1198
        $region108: #{translator_noln_forward.2} parent=19 // pred_fallthru
          _
        // Predicated region
        $region109: #{translator_noln_forward.2} parent=19 // pred_check
          %p1212 = pneg %p699
        $region110: #{translator_noln_forward.2} parent=19 // pred_check_branch
          %1214 = sbr.rel (%p1212) target = $region112
        $region111: #{translator_noln_forward.2} parent=19 // pred_region
          %s1215 = sand.u32 %s69, 1
          %s1216 = scalar_lea.sflag [#allocation40], %s1215
          %s1217 = sand.u32 %s689, 1
          %s1218 = smul.addr %s1217, 8
          %s1219 = scalar_lea.vmem [#allocation39], %s1218
          %s1221 = ssub.s32 128, 128
          %1222 = vsyncadd %s1216, %s1221
          %s1223 = smul.addr %s77, 128
          %s1224 = scalar_lea.hbm %s23, %s1223
          %s1226 = sshll.u32 %s1219, 4
          %s1227 = int_to_ptr.vmem [resolvable:$true] %s1226
          %1229 = dma.hbm_to_vmem [thread:$0]  %s1224, 128, %s1227, %s1216
        $region112: #{translator_noln_forward.2} parent=19 // pred_fallthru
          _
        // Predicated region
        $region113: #{translator_noln_forward.2} parent=19 // pred_check
          %p1230 = pneg %p725
        $region114: #{translator_noln_forward.2} parent=19 // pred_check_branch
          %1232 = sbr.rel (%p1230) target = $region116
        $region115: #{translator_noln_forward.2} parent=19 // pred_region
          %s1233 = sand.u32 %s69, 1
          %s1234 = scalar_lea.sflag [#allocation40], %s1233
          %s1235 = sand.u32 %s715, 1
          %s1236 = smul.addr %s1235, 8
          %s1237 = scalar_lea.vmem [#allocation41], %s1236
          %s1239 = ssub.s32 128, 128
          %1240 = vsyncadd %s1234, %s1239
          %s1241 = smul.addr %s77, 128
          %s1242 = scalar_lea.hbm %s24, %s1241
          %s1244 = sshll.u32 %s1237, 4
          %s1245 = int_to_ptr.vmem [resolvable:$true] %s1244
          %1247 = dma.hbm_to_vmem [thread:$0]  %s1242, 128, %s1245, %s1234
        $region116: #{translator_noln_forward.2} parent=19 // pred_fallthru
          _
      $region20: #{translator_noln_forward.2} parent=5 // pred_fallthru
        _
      %p1248 = scmp.le.s32.totalorder 1, %s69
      %p1249 = scmp.lt.s32.totalorder %s69, 6
      %p1250 = pnand %p1248, %p1249
      %p1251 = pneg %p1250
      // Predicated region
      $region117: #{translator_noln_forward.2} parent=5 // pred_check
        _
      $region118: #{translator_noln_forward.2} parent=5 // pred_check_branch
        %1253 = sbr.rel (%p1250) target = $region120
      $region119: #{translator_noln_forward.2} parent=5 // pred_region
        %s1254 = ssub.s32 %s69, 1
        // Predicated region
        $region121: #{translator_noln_forward.2} parent=119 // pred_check
          %p1255 = pneg %p107
        $region122: #{translator_noln_forward.2} parent=119 // pred_check_branch
          %1257 = sbr.rel (%p1255) target = $region124
        $region123: #{translator_noln_forward.2} parent=119 // pred_region
          %1258 = dma.done [#allocation4], 256
        $region124: #{translator_noln_forward.2} parent=119 // pred_fallthru
          _
        %s1259 = sand.u32 %s74, 1
        %s1260 = scalar_lea.sflag [#allocation7], %s1259
        %s1261 = sand.u32 %s120, 1
        %s1262 = smul.addr %s1261, 16
        %s1263 = scalar_lea.vmem [#allocation6], %s1262
        // Predicated region
        $region125: #{translator_noln_forward.2} parent=119 // pred_check
          %p1264 = pneg %p133
        $region126: #{translator_noln_forward.2} parent=119 // pred_check_branch
          %1266 = sbr.rel (%p1264) target = $region128
        $region127: #{translator_noln_forward.2} parent=119 // pred_region
          %1267 = dma.done %s1260, 256
        $region128: #{translator_noln_forward.2} parent=119 // pred_fallthru
          _
        %s1268 = sand.u32 %s74, 1
        %s1269 = scalar_lea.sflag [#allocation7], %s1268
        %s1270 = sand.u32 %s146, 1
        %s1271 = scalar_lea.vmem [#allocation8], %s1270
        // Predicated region
        $region129: #{translator_noln_forward.2} parent=119 // pred_check
          %p1272 = pneg %p159
        $region130: #{translator_noln_forward.2} parent=119 // pred_check_branch
          %1274 = sbr.rel (%p1272) target = $region132
        $region131: #{translator_noln_forward.2} parent=119 // pred_region
          %1275 = dma.done %s1269, 16
        $region132: #{translator_noln_forward.2} parent=119 // pred_fallthru
          _
        %s1276 = sand.u32 %s74, 1
        %s1277 = scalar_lea.sflag [#allocation10], %s1276
        %s1278 = sand.u32 %s172, 1
        %s1279 = scalar_lea.vmem [#allocation9], %s1278
        // Predicated region
        $region133: #{translator_noln_forward.2} parent=119 // pred_check
          %p1280 = pneg %p185
        $region134: #{translator_noln_forward.2} parent=119 // pred_check_branch
          %1282 = sbr.rel (%p1280) target = $region136
        $region135: #{translator_noln_forward.2} parent=119 // pred_region
          %1283 = dma.done %s1277, 16
        $region136: #{translator_noln_forward.2} parent=119 // pred_fallthru
          _
        %s1284 = sand.u32 %s74, 1
        %s1285 = scalar_lea.sflag [#allocation10], %s1284
        %s1286 = sand.u32 %s198, 1
        %s1287 = scalar_lea.vmem [#allocation11], %s1286
        // Predicated region
        $region137: #{translator_noln_forward.2} parent=119 // pred_check
          %p1288 = pneg %p211
        $region138: #{translator_noln_forward.2} parent=119 // pred_check_branch
          %1290 = sbr.rel (%p1288) target = $region140
        $region139: #{translator_noln_forward.2} parent=119 // pred_region
          %1291 = dma.done %s1285, 16
        $region140: #{translator_noln_forward.2} parent=119 // pred_fallthru
          _
        %s1292 = sand.u32 %s74, 1
        %s1293 = scalar_lea.sflag [#allocation13], %s1292
        %s1294 = sand.u32 %s224, 1
        %s1295 = smul.addr %s1294, 32
        %s1296 = scalar_lea.vmem [#allocation12], %s1295
        // Predicated region
        $region141: #{translator_noln_forward.2} parent=119 // pred_check
          %p1297 = pneg %p237
        $region142: #{translator_noln_forward.2} parent=119 // pred_check_branch
          %1299 = sbr.rel (%p1297) target = $region144
        $region143: #{translator_noln_forward.2} parent=119 // pred_region
          %1300 = dma.done %s1293, 512
        $region144: #{translator_noln_forward.2} parent=119 // pred_fallthru
          _
        %s1301 = sand.u32 %s74, 1
        %s1302 = scalar_lea.sflag [#allocation13], %s1301
        %s1303 = sand.u32 %s250, 1
        %s1304 = scalar_lea.vmem [#allocation14], %s1303
        // Predicated region
        $region145: #{translator_noln_forward.2} parent=119 // pred_check
          %p1305 = pneg %p263
        $region146: #{translator_noln_forward.2} parent=119 // pred_check_branch
          %1307 = sbr.rel (%p1305) target = $region148
        $region147: #{translator_noln_forward.2} parent=119 // pred_region
          %1308 = dma.done %s1302, 16
        $region148: #{translator_noln_forward.2} parent=119 // pred_fallthru
          _
        %s1309 = sand.u32 %s74, 1
        %s1310 = scalar_lea.sflag [#allocation16], %s1309
        %s1311 = sand.u32 %s276, 1
        %s1312 = scalar_lea.vmem [#allocation15], %s1311
        // Predicated region
        $region149: #{translator_noln_forward.2} parent=119 // pred_check
          %p1313 = pneg %p289
        $region150: #{translator_noln_forward.2} parent=119 // pred_check_branch
          %1315 = sbr.rel (%p1313) target = $region152
        $region151: #{translator_noln_forward.2} parent=119 // pred_region
          %1316 = dma.done %s1310, 16
        $region152: #{translator_noln_forward.2} parent=119 // pred_fallthru
          _
        %s1317 = sand.u32 %s74, 1
        %s1318 = scalar_lea.sflag [#allocation16], %s1317
        %s1319 = sand.u32 %s302, 1
        %s1320 = scalar_lea.vmem [#allocation17], %s1319
        // Predicated region
        $region153: #{translator_noln_forward.2} parent=119 // pred_check
          %p1321 = pneg %p315
        $region154: #{translator_noln_forward.2} parent=119 // pred_check_branch
          %1323 = sbr.rel (%p1321) target = $region156
        $region155: #{translator_noln_forward.2} parent=119 // pred_region
          %1324 = dma.done %s1318, 16
        $region156: #{translator_noln_forward.2} parent=119 // pred_fallthru
          _
        %s1325 = sand.u32 %s74, 1
        %s1326 = scalar_lea.sflag [#allocation19], %s1325
        %s1327 = sand.u32 %s328, 1
        %s1328 = smul.addr %s1327, 32
        %s1329 = scalar_lea.vmem [#allocation18], %s1328
        // Predicated region
        $region157: #{translator_noln_forward.2} parent=119 // pred_check
          %p1330 = pneg %p341
        $region158: #{translator_noln_forward.2} parent=119 // pred_check_branch
          %1332 = sbr.rel (%p1330) target = $region160
        $region159: #{translator_noln_forward.2} parent=119 // pred_region
          %1333 = dma.done %s1326, 512
        $region160: #{translator_noln_forward.2} parent=119 // pred_fallthru
          _
        %s1334 = sand.u32 %s74, 1
        %s1335 = scalar_lea.sflag [#allocation19], %s1334
        %s1336 = sand.u32 %s354, 1
        %s1337 = scalar_lea.vmem [#allocation20], %s1336
        // Predicated region
        $region161: #{translator_noln_forward.2} parent=119 // pred_check
          %p1338 = pneg %p367
        $region162: #{translator_noln_forward.2} parent=119 // pred_check_branch
          %1340 = sbr.rel (%p1338) target = $region164
        $region163: #{translator_noln_forward.2} parent=119 // pred_region
          %1341 = dma.done %s1335, 16
        $region164: #{translator_noln_forward.2} parent=119 // pred_fallthru
          _
        %s1342 = sand.u32 %s74, 1
        %s1343 = scalar_lea.sflag [#allocation22], %s1342
        %s1344 = sand.u32 %s380, 1
        %s1345 = scalar_lea.vmem [#allocation21], %s1344
        // Predicated region
        $region165: #{translator_noln_forward.2} parent=119 // pred_check
          %p1346 = pneg %p393
        $region166: #{translator_noln_forward.2} parent=119 // pred_check_branch
          %1348 = sbr.rel (%p1346) target = $region168
        $region167: #{translator_noln_forward.2} parent=119 // pred_region
          %1349 = dma.done %s1343, 16
        $region168: #{translator_noln_forward.2} parent=119 // pred_fallthru
          _
        %s1350 = sand.u32 %s74, 1
        %s1351 = scalar_lea.sflag [#allocation22], %s1350
        %s1352 = sand.u32 %s406, 1
        %s1353 = scalar_lea.vmem [#allocation23], %s1352
        // Predicated region
        $region169: #{translator_noln_forward.2} parent=119 // pred_check
          %p1354 = pneg %p419
        $region170: #{translator_noln_forward.2} parent=119 // pred_check_branch
          %1356 = sbr.rel (%p1354) target = $region172
        $region171: #{translator_noln_forward.2} parent=119 // pred_region
          %1357 = dma.done %s1351, 16
        $region172: #{translator_noln_forward.2} parent=119 // pred_fallthru
          _
        %s1358 = sand.u32 %s74, 1
        %s1359 = scalar_lea.sflag [#allocation25], %s1358
        %s1360 = sand.u32 %s432, 1
        %s1361 = smul.addr %s1360, 8
        %s1362 = scalar_lea.vmem [#allocation24], %s1361
        // Predicated region
        $region173: #{translator_noln_forward.2} parent=119 // pred_check
          %p1363 = pneg %p445
        $region174: #{translator_noln_forward.2} parent=119 // pred_check_branch
          %1365 = sbr.rel (%p1363) target = $region176
        $region175: #{translator_noln_forward.2} parent=119 // pred_region
          %1366 = dma.done %s1359, 128
        $region176: #{translator_noln_forward.2} parent=119 // pred_fallthru
          _
        %s1367 = sand.u32 %s74, 1
        %s1368 = scalar_lea.sflag [#allocation25], %s1367
        %s1369 = sand.u32 %s458, 1
        %s1370 = smul.addr %s1369, 16
        %s1371 = scalar_lea.vmem [#allocation26], %s1370
        // Predicated region
        $region177: #{translator_noln_forward.2} parent=119 // pred_check
          %p1372 = pneg %p471
        $region178: #{translator_noln_forward.2} parent=119 // pred_check_branch
          %1374 = sbr.rel (%p1372) target = $region180
        $region179: #{translator_noln_forward.2} parent=119 // pred_region
          %1375 = dma.done %s1368, 256
        $region180: #{translator_noln_forward.2} parent=119 // pred_fallthru
          _
        %s1376 = sand.u32 %s74, 1
        %s1377 = scalar_lea.sflag [#allocation28], %s1376
        %s1378 = sand.u32 %s484, 1
        %s1379 = smul.addr %s1378, 16
        %s1380 = scalar_lea.vmem [#allocation27], %s1379
        // Predicated region
        $region181: #{translator_noln_forward.2} parent=119 // pred_check
          %p1381 = pneg %p497
        $region182: #{translator_noln_forward.2} parent=119 // pred_check_branch
          %1383 = sbr.rel (%p1381) target = $region184
        $region183: #{translator_noln_forward.2} parent=119 // pred_region
          %1384 = dma.done %s1377, 256
        $region184: #{translator_noln_forward.2} parent=119 // pred_fallthru
          _
        %s1385 = sand.u32 %s74, 1
        %s1386 = scalar_lea.sflag [#allocation28], %s1385
        %s1387 = sand.u32 %s510, 1
        %s1388 = smul.addr %s1387, 16
        %s1389 = scalar_lea.vmem [#allocation29], %s1388
        // Predicated region
        $region185: #{translator_noln_forward.2} parent=119 // pred_check
          %p1390 = pneg %p523
        $region186: #{translator_noln_forward.2} parent=119 // pred_check_branch
          %1392 = sbr.rel (%p1390) target = $region188
        $region187: #{translator_noln_forward.2} parent=119 // pred_region
          %1393 = dma.done %s1386, 256
        $region188: #{translator_noln_forward.2} parent=119 // pred_fallthru
          _
        %s1394 = sand.u32 %s74, 1
        %s1395 = scalar_lea.sflag [#allocation31], %s1394
        %s1396 = sand.u32 %s536, 1
        %s1397 = smul.addr %s1396, 8
        %s1398 = scalar_lea.vmem [#allocation30], %s1397
        // Predicated region
        $region189: #{translator_noln_forward.2} parent=119 // pred_check
          %p1399 = pneg %p549
        $region190: #{translator_noln_forward.2} parent=119 // pred_check_branch
          %1401 = sbr.rel (%p1399) target = $region192
        $region191: #{translator_noln_forward.2} parent=119 // pred_region
          %1402 = dma.done %s1395, 128
        $region192: #{translator_noln_forward.2} parent=119 // pred_fallthru
          _
        %s1403 = sand.u32 %s74, 1
        %s1404 = scalar_lea.sflag [#allocation31], %s1403
        %s1405 = sand.u32 %s562, 1
        %s1406 = smul.addr %s1405, 16
        %s1407 = scalar_lea.vmem [#allocation32], %s1406
        // Predicated region
        $region193: #{translator_noln_forward.2} parent=119 // pred_check
          %p1408 = pneg %p575
        $region194: #{translator_noln_forward.2} parent=119 // pred_check_branch
          %1410 = sbr.rel (%p1408) target = $region196
        $region195: #{translator_noln_forward.2} parent=119 // pred_region
          %1411 = dma.done %s1404, 256
        $region196: #{translator_noln_forward.2} parent=119 // pred_fallthru
          _
        %s1412 = sand.u32 %s74, 1
        %s1413 = scalar_lea.sflag [#allocation34], %s1412
        %s1414 = sand.u32 %s588, 1
        %s1415 = smul.addr %s1414, 16
        %s1416 = scalar_lea.vmem [#allocation33], %s1415
        // Predicated region
        $region197: #{translator_noln_forward.2} parent=119 // pred_check
          %p1417 = pneg %p601
        $region198: #{translator_noln_forward.2} parent=119 // pred_check_branch
          %1419 = sbr.rel (%p1417) target = $region200
        $region199: #{translator_noln_forward.2} parent=119 // pred_region
          %1420 = dma.done %s1413, 256
        $region200: #{translator_noln_forward.2} parent=119 // pred_fallthru
          _
        %s1421 = sand.u32 %s74, 1
        %s1422 = scalar_lea.sflag [#allocation34], %s1421
        %s1423 = sand.u32 %s614, 1
        %s1424 = smul.addr %s1423, 16
        %s1425 = scalar_lea.vmem [#allocation35], %s1424
        // Predicated region
        $region201: #{translator_noln_forward.2} parent=119 // pred_check
          %p1426 = pneg %p627
        $region202: #{translator_noln_forward.2} parent=119 // pred_check_branch
          %1428 = sbr.rel (%p1426) target = $region204
        $region203: #{translator_noln_forward.2} parent=119 // pred_region
          %1429 = dma.done %s1422, 256
        $region204: #{translator_noln_forward.2} parent=119 // pred_fallthru
          _
        %s1430 = sand.u32 %s74, 1
        %s1431 = scalar_lea.sflag [#allocation37], %s1430
        %s1432 = sand.u32 %s640, 1
        %s1433 = smul.addr %s1432, 4
        %s1434 = scalar_lea.vmem [#allocation36], %s1433
        // Predicated region
        $region205: #{translator_noln_forward.2} parent=119 // pred_check
          %p1435 = pneg %p653
        $region206: #{translator_noln_forward.2} parent=119 // pred_check_branch
          %1437 = sbr.rel (%p1435) target = $region208
        $region207: #{translator_noln_forward.2} parent=119 // pred_region
          %1438 = dma.done %s1431, 64
        $region208: #{translator_noln_forward.2} parent=119 // pred_fallthru
          _
        %s1439 = sand.u32 %s74, 1
        %s1440 = scalar_lea.sflag [#allocation37], %s1439
        %s1441 = sand.u32 %s666, 1
        %s1442 = smul.addr %s1441, 8
        %s1443 = scalar_lea.vmem [#allocation38], %s1442
        // Predicated region
        $region209: #{translator_noln_forward.2} parent=119 // pred_check
          %p1444 = pneg %p679
        $region210: #{translator_noln_forward.2} parent=119 // pred_check_branch
          %1446 = sbr.rel (%p1444) target = $region212
        $region211: #{translator_noln_forward.2} parent=119 // pred_region
          %1447 = dma.done %s1440, 128
        $region212: #{translator_noln_forward.2} parent=119 // pred_fallthru
          _
        %s1448 = sand.u32 %s74, 1
        %s1449 = scalar_lea.sflag [#allocation40], %s1448
        %s1450 = sand.u32 %s692, 1
        %s1451 = smul.addr %s1450, 8
        %s1452 = scalar_lea.vmem [#allocation39], %s1451
        // Predicated region
        $region213: #{translator_noln_forward.2} parent=119 // pred_check
          %p1453 = pneg %p705
        $region214: #{translator_noln_forward.2} parent=119 // pred_check_branch
          %1455 = sbr.rel (%p1453) target = $region216
        $region215: #{translator_noln_forward.2} parent=119 // pred_region
          %1456 = dma.done %s1449, 128
        $region216: #{translator_noln_forward.2} parent=119 // pred_fallthru
          _
        %s1457 = sand.u32 %s74, 1
        %s1458 = scalar_lea.sflag [#allocation40], %s1457
        %s1459 = sand.u32 %s718, 1
        %s1460 = smul.addr %s1459, 8
        %s1461 = scalar_lea.vmem [#allocation41], %s1460
        // Predicated region
        $region217: #{translator_noln_forward.2} parent=119 // pred_check
          %p1462 = pneg %p731
        $region218: #{translator_noln_forward.2} parent=119 // pred_check_branch
          %1464 = sbr.rel (%p1462) target = $region220
        $region219: #{translator_noln_forward.2} parent=119 // pred_region
          %1465 = dma.done %s1458, 128
        $region220: #{translator_noln_forward.2} parent=119 // pred_fallthru
          _
        %p1466 = pneg %p107
        %p1467 = pneg %p104
        %s1468 = sand.u32 %s74, 1
        %s1469 = scalar_lea.sflag [#allocation7], %s1468
        %s1470 = sand.u32 %s120, 1
        %s1471 = smul.addr %s1470, 16
        %s1472 = scalar_lea.vmem [#allocation6], %s1471
        %p1473 = pneg %p133
        %p1474 = pneg %p130
        %s1475 = sand.u32 %s74, 1
        %s1476 = scalar_lea.sflag [#allocation7], %s1475
        %s1477 = sand.u32 %s146, 1
        %s1478 = scalar_lea.vmem [#allocation8], %s1477
        %p1479 = pneg %p159
        %p1480 = pneg %p156
        %s1481 = sand.u32 %s74, 1
        %s1482 = scalar_lea.sflag [#allocation10], %s1481
        %s1483 = sand.u32 %s172, 1
        %s1484 = scalar_lea.vmem [#allocation9], %s1483
        %p1485 = pneg %p185
        %p1486 = pneg %p182
        %s1487 = sand.u32 %s74, 1
        %s1488 = scalar_lea.sflag [#allocation10], %s1487
        %s1489 = sand.u32 %s198, 1
        %s1490 = scalar_lea.vmem [#allocation11], %s1489
        %p1491 = pneg %p211
        %p1492 = pneg %p208
        %s1493 = sand.u32 %s74, 1
        %s1494 = scalar_lea.sflag [#allocation13], %s1493
        %s1495 = sand.u32 %s224, 1
        %s1496 = smul.addr %s1495, 32
        %s1497 = scalar_lea.vmem [#allocation12], %s1496
        %p1498 = pneg %p237
        %p1499 = pneg %p234
        %s1500 = sand.u32 %s74, 1
        %s1501 = scalar_lea.sflag [#allocation13], %s1500
        %s1502 = sand.u32 %s250, 1
        %s1503 = scalar_lea.vmem [#allocation14], %s1502
        %p1504 = pneg %p263
        %p1505 = pneg %p260
        %s1506 = sand.u32 %s74, 1
        %s1507 = scalar_lea.sflag [#allocation16], %s1506
        %s1508 = sand.u32 %s276, 1
        %s1509 = scalar_lea.vmem [#allocation15], %s1508
        %p1510 = pneg %p289
        %p1511 = pneg %p286
        %s1512 = sand.u32 %s74, 1
        %s1513 = scalar_lea.sflag [#allocation16], %s1512
        %s1514 = sand.u32 %s302, 1
        %s1515 = scalar_lea.vmem [#allocation17], %s1514
        %p1516 = pneg %p315
        %p1517 = pneg %p312
        %s1518 = sand.u32 %s74, 1
        %s1519 = scalar_lea.sflag [#allocation19], %s1518
        %s1520 = sand.u32 %s328, 1
        %s1521 = smul.addr %s1520, 32
        %s1522 = scalar_lea.vmem [#allocation18], %s1521
        %p1523 = pneg %p341
        %p1524 = pneg %p338
        %s1525 = sand.u32 %s74, 1
        %s1526 = scalar_lea.sflag [#allocation19], %s1525
        %s1527 = sand.u32 %s354, 1
        %s1528 = scalar_lea.vmem [#allocation20], %s1527
        %p1529 = pneg %p367
        %p1530 = pneg %p364
        %s1531 = sand.u32 %s74, 1
        %s1532 = scalar_lea.sflag [#allocation22], %s1531
        %s1533 = sand.u32 %s380, 1
        %s1534 = scalar_lea.vmem [#allocation21], %s1533
        %p1535 = pneg %p393
        %p1536 = pneg %p390
        %s1537 = sand.u32 %s74, 1
        %s1538 = scalar_lea.sflag [#allocation22], %s1537
        %s1539 = sand.u32 %s406, 1
        %s1540 = scalar_lea.vmem [#allocation23], %s1539
        %p1541 = pneg %p419
        %p1542 = pneg %p416
        %s1543 = sand.u32 %s74, 1
        %s1544 = scalar_lea.sflag [#allocation25], %s1543
        %s1545 = sand.u32 %s432, 1
        %s1546 = smul.addr %s1545, 8
        %s1547 = scalar_lea.vmem [#allocation24], %s1546
        %p1548 = pneg %p445
        %p1549 = pneg %p442
        %s1550 = sand.u32 %s74, 1
        %s1551 = scalar_lea.sflag [#allocation25], %s1550
        %s1552 = sand.u32 %s458, 1
        %s1553 = smul.addr %s1552, 16
        %s1554 = scalar_lea.vmem [#allocation26], %s1553
        %p1555 = pneg %p471
        %p1556 = pneg %p468
        %s1557 = sand.u32 %s74, 1
        %s1558 = scalar_lea.sflag [#allocation28], %s1557
        %s1559 = sand.u32 %s484, 1
        %s1560 = smul.addr %s1559, 16
        %s1561 = scalar_lea.vmem [#allocation27], %s1560
        %p1562 = pneg %p497
        %p1563 = pneg %p494
        %s1564 = sand.u32 %s74, 1
        %s1565 = scalar_lea.sflag [#allocation28], %s1564
        %s1566 = sand.u32 %s510, 1
        %s1567 = smul.addr %s1566, 16
        %s1568 = scalar_lea.vmem [#allocation29], %s1567
        %p1569 = pneg %p523
        %p1570 = pneg %p520
        %s1571 = sand.u32 %s74, 1
        %s1572 = scalar_lea.sflag [#allocation31], %s1571
        %s1573 = sand.u32 %s536, 1
        %s1574 = smul.addr %s1573, 8
        %s1575 = scalar_lea.vmem [#allocation30], %s1574
        %p1576 = pneg %p549
        %p1577 = pneg %p546
        %s1578 = sand.u32 %s74, 1
        %s1579 = scalar_lea.sflag [#allocation31], %s1578
        %s1580 = sand.u32 %s562, 1
        %s1581 = smul.addr %s1580, 16
        %s1582 = scalar_lea.vmem [#allocation32], %s1581
        %p1583 = pneg %p575
        %p1584 = pneg %p572
        %s1585 = sand.u32 %s74, 1
        %s1586 = scalar_lea.sflag [#allocation34], %s1585
        %s1587 = sand.u32 %s588, 1
        %s1588 = smul.addr %s1587, 16
        %s1589 = scalar_lea.vmem [#allocation33], %s1588
        %p1590 = pneg %p601
        %p1591 = pneg %p598
        %s1592 = sand.u32 %s74, 1
        %s1593 = scalar_lea.sflag [#allocation34], %s1592
        %s1594 = sand.u32 %s614, 1
        %s1595 = smul.addr %s1594, 16
        %s1596 = scalar_lea.vmem [#allocation35], %s1595
        %p1597 = pneg %p627
        %p1598 = pneg %p624
        %s1599 = sand.u32 %s74, 1
        %s1600 = scalar_lea.sflag [#allocation37], %s1599
        %s1601 = sand.u32 %s640, 1
        %s1602 = smul.addr %s1601, 4
        %s1603 = scalar_lea.vmem [#allocation36], %s1602
        %p1604 = pneg %p653
        %p1605 = pneg %p650
        %s1606 = sand.u32 %s74, 1
        %s1607 = scalar_lea.sflag [#allocation37], %s1606
        %s1608 = sand.u32 %s666, 1
        %s1609 = smul.addr %s1608, 8
        %s1610 = scalar_lea.vmem [#allocation38], %s1609
        %p1611 = pneg %p679
        %p1612 = pneg %p676
        %s1613 = sand.u32 %s74, 1
        %s1614 = scalar_lea.sflag [#allocation40], %s1613
        %s1615 = sand.u32 %s692, 1
        %s1616 = smul.addr %s1615, 8
        %s1617 = scalar_lea.vmem [#allocation39], %s1616
        %p1618 = pneg %p705
        %p1619 = pneg %p702
        %s1620 = sand.u32 %s74, 1
        %s1621 = scalar_lea.sflag [#allocation40], %s1620
        %s1622 = sand.u32 %s718, 1
        %s1623 = smul.addr %s1622, 8
        %s1624 = scalar_lea.vmem [#allocation41], %s1623
        %p1625 = pneg %p731
        %p1626 = pneg %p728
        %p1627 = pneg %p757
        %p1628 = pneg %p754
        %s1629 = smul.u32 2, %s78
        %s1630 = smul.u32 2, %s78
        %v1632 = vld [vmem:[%s1263] sm:$0xf]
        %v1633 = vld [vmem:[%s1263 + $0x4] sm:$0xf]
        %v1634 = vld [vmem:[%s1263 + $0x8] sm:$0xf]
        %v1635 = vld [vmem:[%s1263 + $0xc] sm:$0xf]
        %v1636 = vld [vmem:[%s1271] sm:$0x1]
        %v1637 = vld [vmem:[%s1279] sm:$0x1]
        %v1638 = vld [vmem:[%s1287] sm:$0x1]
        %v1639 = vld [vmem:[%s1296] sm:$0xf]
        %v1640 = vld [vmem:[%s1296 + $0x4] sm:$0xf]
        %v1641 = vld [vmem:[%s1296 + $0x8] sm:$0xf]
        %v1642 = vld [vmem:[%s1296 + $0xc] sm:$0xf]
        %v1643 = vld [vmem:[%s1296 + $0x10] sm:$0xf]
        %v1644 = vld [vmem:[%s1296 + $0x14] sm:$0xf]
        %v1645 = vld [vmem:[%s1296 + $0x18] sm:$0xf]
        %v1646 = vld [vmem:[%s1296 + $0x1c] sm:$0xf]
        %v1647 = vld [vmem:[%s1304] sm:$0x1]
        %v1648 = vld [vmem:[%s1312] sm:$0x1]
        %v1649 = vld [vmem:[%s1320] sm:$0x1]
        %v1650 = vld [vmem:[%s1329] sm:$0xf]
        %v1651 = vld [vmem:[%s1329 + $0x4] sm:$0xf]
        %v1652 = vld [vmem:[%s1329 + $0x8] sm:$0xf]
        %v1653 = vld [vmem:[%s1329 + $0xc] sm:$0xf]
        %v1654 = vld [vmem:[%s1329 + $0x10] sm:$0xf]
        %v1655 = vld [vmem:[%s1329 + $0x14] sm:$0xf]
        %v1656 = vld [vmem:[%s1329 + $0x18] sm:$0xf]
        %v1657 = vld [vmem:[%s1329 + $0x1c] sm:$0xf]
        %v1658 = vld [vmem:[%s1337] sm:$0x1]
        %v1659 = vld [vmem:[%s1345] sm:$0x1]
        %v1660 = vld [vmem:[%s1353] sm:$0x1]
        %v1661 = vld [vmem:[%s1362] sm:$0xf]
        %v1662 = vld [vmem:[%s1362 + $0x4] sm:$0xf]
        %v1663 = vld [vmem:[%s1371] sm:$0xff]
        %v1664 = vld [vmem:[%s1371 + $0x8] sm:$0xff]
        %v1665 = vld [vmem:[%s1380] sm:$0xff]
        %v1666 = vld [vmem:[%s1380 + $0x8] sm:$0xff]
        %v1667 = vld [vmem:[%s1389] sm:$0xff]
        %v1668 = vld [vmem:[%s1389 + $0x8] sm:$0xff]
        %v1669 = vld [vmem:[%s1398] sm:$0xf]
        %v1670 = vld [vmem:[%s1398 + $0x4] sm:$0xf]
        %v1671 = vld [vmem:[%s1407] sm:$0xff]
        %v1672 = vld [vmem:[%s1407 + $0x8] sm:$0xff]
        %v1673 = vld [vmem:[%s1416] sm:$0xff]
        %v1674 = vld [vmem:[%s1416 + $0x8] sm:$0xff]
        %v1675 = vld [vmem:[%s1425] sm:$0xff]
        %v1676 = vld [vmem:[%s1425 + $0x8] sm:$0xff]
        %v1677 = vld [vmem:[%s1434] sm:$0xf]
        %v1678 = vld [vmem:[%s1443] sm:$0xff]
        %v1679 = vld [vmem:[%s1452] sm:$0xff]
        %v1680 = vld [vmem:[%s1461] sm:$0xff]
        %p1681 = scmp.eq.s32.totalorder %s79, 0
        // Predicated region
        $region221: #{translator_noln_forward.2} parent=119 // pred_check
          %p1682 = pneg %p1681
        $region222: #{translator_noln_forward.2} parent=119 // pred_check_branch
          %1684 = sbr.rel (%p1682) target = $region224
        $region223: #{translator_noln_forward.2} parent=119 // pred_region
          %v1685 = vld [vmem:[#allocation3] sm:$0xff]
          %v1686 = vld [vmem:[#allocation3 + $0x8] sm:$0xff]
          %vm1687 = vcmask 261120
          %1688 = vst.msk [vmem:[#allocation2] sm:$0xff] %vm1687, %v1685
          %1689 = vst.msk [vmem:[#allocation2 + $0x8] sm:$0xff] %vm1687, %v1686
        $region224: #{translator_noln_forward.2} parent=119 // pred_fallthru
          _
        %v1690 = vld [vmem:[#allocation2] sm:$0xff]
        %v1691 = vld [vmem:[#allocation2 + $0x8] sm:$0xff]
        %v1692 = vpack.c.bf16 %v1691, %v1690
        %v1694 = vlaneseq
        %v1695 = vshrl.u32 %v1694, 7
        %v1696 = vsub.s32 0, %v1695
        %v1697 = vrot.slane %v1636, %v1696
        %v1703 = vunpack.c.l.b16 %v1632
        %v1704 = vunpack.c.l.b16 %v1633
        %v1705 = vunpack.c.l.b16 %v1634
        %v1706 = vunpack.c.l.b16 %v1635
        %v1707 = vpack.c.b16 %v1704, %v1703
        %v1708 = vpack.c.b16 %v1706, %v1705
        %vm1711 = vcmask 261120
        %v1713 = vsel %vm1711, %v1692, 0
        %1715 = vmatprep.subr.bf16.mxu0 0
        %1716 = vmatpush1.bf16.msra.mxu0 %v1707
        %1717 = vmatprep.subr.bf16.mxu0 0
        %1718 = vmatpush1.bf16.msra.mxu0 %v1708
        %1719 = vmatprep.subr.bf16.mxu0 0
        %1720 = vmatpush1.bf16.msra.mxu0 0
        %1721 = vmatprep.subr.bf16.mxu0 0
        %1722 = vmatpush1.bf16.msra.mxu0 0
        %1723 = vmatprep.subr.bf16.mxu0 0
        %1724 = vmatpush1.bf16.msra.mxu0 0
        %1725 = vmatprep.subr.bf16.mxu0 0
        %1726 = vmatpush1.bf16.msra.mxu0 0
        %1727 = vmatprep.subr.bf16.mxu0 0
        %1728 = vmatpush1.bf16.msra.mxu0 0
        %1729 = vmatprep.subr.bf16.mxu0 0
        %1730 = vmatpush1.bf16.msra.mxu0 0
        %1731 = vmatprep.subr.bf16.mxu0 0
        %1732 = vmatpush1.bf16.msra.mxu0 0
        %1733 = vmatprep.subr.bf16.mxu0 0
        %1734 = vmatpush1.bf16.msra.mxu0 0
        %1735 = vmatprep.subr.bf16.mxu0 0
        %1736 = vmatpush1.bf16.msra.mxu0 0
        %1737 = vmatprep.subr.bf16.mxu0 0
        %1738 = vmatpush1.bf16.msra.mxu0 0
        %1739 = vmatprep.subr.bf16.mxu0 0
        %1740 = vmatpush1.bf16.msra.mxu0 0
        %1741 = vmatprep.subr.bf16.mxu0 0
        %1742 = vmatpush1.bf16.msra.mxu0 0
        %1743 = vmatprep.subr.bf16.mxu0 0
        %1744 = vmatpush1.bf16.msra.mxu0 0
        %1745 = vmatprep.subr.bf16.mxu0 0
        %1746 = vmatpush1.bf16.msra.mxu0 0
        %1747 = vmatprep.mubr.bf16.mxu0 0
        %1748 = vmatmul.mubr.bf16.gmra.mrb[0].mxu0 %v1713
        %v1749 = vpop.f32.mrb[0].mxu0
        %v1750 = vadd.f32 %v1697, %v1749
        %v1751 = vpop.f32.mrb[0].mxu0
        %v1752 = vpop.f32.mrb[0].mxu0
        %v1753 = vadd.f32 %v1697, %v1752
        %v1754 = vpop.f32.mrb[0].mxu0
        %1755 = vdwg.mxu0
        %vm1756 = vcmask 523264
        %v1757 = vsel %vm1756, %v1750, 0.0
        %1758 = vadd.xlane.f32.xlu0 %v1757
        %v1759 = vpop.xlane.xlu0 %1758
        %v1760 = vsel %vm1756, %v1753, 0.0
        %1761 = vadd.xlane.f32.xlu0 %v1760
        %v1762 = vpop.xlane.xlu0 %1761
        %v1763 = vrcp.pop 64.0
        %v1764 = vmul.f32 %v1759, %v1763
        %v1765 = vmul.f32 %v1762, %v1763
        %v1766 = vsub.f32 %v1750, %v1764
        %v1767 = vsub.f32 %v1753, %v1765
        %v1768 = vmul.f32 %v1766, %v1766
        %v1769 = vmul.f32 %v1767, %v1767
        %v1770 = vsel %vm1756, %v1768, 0.0
        %1771 = vadd.xlane.f32.xlu0 %v1770
        %v1772 = vpop.xlane.xlu0 %1771
        %v1773 = vsel %vm1756, %v1769, 0.0
        %1774 = vadd.xlane.f32.xlu0 %v1773
        %v1775 = vpop.xlane.xlu0 %1774
        %v1776 = vmul.f32 %v1772, %v1763
        %v1777 = vmul.f32 %v1775, %v1763
        %v1778 = vadd.f32 %v1776, 1e-05
        %v1779 = vadd.f32 %v1777, 1e-05
        %v1780 = vrsqrt.pop %v1778
        %v1781 = vrsqrt.pop %v1779
        %v1782 = vmul.f32 %v1766, %v1780
        %v1783 = vmul.f32 %v1767, %v1781
        %v1785 = vlaneseq
        %v1786 = vshrl.u32 %v1785, 7
        %v1787 = vsub.s32 0, %v1786
        %v1788 = vrot.slane %v1637, %v1787
        %v1790 = vmul.f32 %v1782, %v1788
        %v1791 = vmul.f32 %v1783, %v1788
        %v1793 = vlaneseq
        %v1794 = vshrl.u32 %v1793, 7
        %v1795 = vsub.s32 0, %v1794
        %v1796 = vrot.slane %v1638, %v1795
        %v1798 = vadd.f32 %v1790, %v1796
        %v1799 = vadd.f32 %v1791, %v1796
        %v1800 = vmul.f32 %v1798, 0.5
        %v1801 = vmul.f32 %v1799, 0.5
        %v1802 = vmul.f32 %v1798, 0.70710677
        %v1803 = vmul.f32 %v1799, 0.70710677
        %v1804 = vand.u32 2147483647, %v1802
        %v1805 = vand.u32 2147483647, %v1803
        %v1806 = vmul.f32 %v1804, 0.3275911
        %v1807 = vmul.f32 %v1805, 0.3275911
        %v1808 = vadd.f32 %v1806, 1.0
        %v1809 = vadd.f32 %v1807, 1.0
        %v1810 = vrcp.pop %v1808
        %v1811 = vmul.f32 1.0, %v1810
        %v1812 = vrcp.pop %v1809
        %v1813 = vmul.f32 1.0, %v1812
        %v1814 = vmul.f32 %v1811, 1.0614054
        %v1815 = vmul.f32 %v1813, 1.0614054
        %v1816 = vadd.f32 %v1814, -1.4531521
        %v1817 = vadd.f32 %v1815, -1.4531521
        %v1818 = vmul.f32 %v1816, %v1811
        %v1819 = vmul.f32 %v1817, %v1813
        %v1820 = vadd.f32 %v1818, 1.4214138
        %v1821 = vadd.f32 %v1819, 1.4214138
        %v1822 = vmul.f32 %v1820, %v1811
        %v1823 = vmul.f32 %v1821, %v1813
        %v1824 = vadd.f32 %v1822, -0.28449672
        %v1825 = vadd.f32 %v1823, -0.28449672
        %v1826 = vmul.f32 %v1824, %v1811
        %v1827 = vmul.f32 %v1825, %v1813
        %v1828 = vadd.f32 %v1826, 0.2548296
        %v1829 = vadd.f32 %v1827, 0.2548296
        %v1830 = vmul.f32 %v1828, %v1811
        %v1831 = vmul.f32 %v1829, %v1813
        %v1832 = vsub.f32 0.0, %v1804
        %v1833 = vsub.f32 0.0, %v1805
        %v1834 = vmul.f32 %v1832, %v1804
        %v1835 = vmul.f32 %v1833, %v1805
        %v1836 = vmul.f32 %v1834, 1.442695
        %v1837 = vpow.pop %v1836
        %v1838 = vmul.f32 %v1835, 1.442695
        %v1839 = vpow.pop %v1838
        %v1840 = vmul.f32 %v1830, %v1837
        %v1841 = vmul.f32 %v1831, %v1839
        %v1842 = vsub.f32 1.0, %v1840
        %v1843 = vsub.f32 1.0, %v1841
        %vm1844 = vcmp.ge.f32.partialorder %v1802, 0.0
        %vm1845 = vcmp.ge.f32.partialorder %v1803, 0.0
        %v1846 = vsub.f32 0.0, %v1842
        %v1847 = vsub.f32 0.0, %v1843
        %v1848 = vsel %vm1844, %v1842, %v1846
        %v1849 = vsel %vm1845, %v1843, %v1847
        %v1850 = vadd.f32 %v1848, 1.0
        %v1851 = vadd.f32 %v1849, 1.0
        %v1852 = vmul.f32 %v1800, %v1850
        %v1853 = vmul.f32 %v1801, %v1851
        %v1854 = vpack.c.bf16 %v1853, %v1852
        %v1856 = vlaneseq
        %v1857 = vshrl.u32 %v1856, 7
        %v1858 = vsub.s32 0, %v1857
        %v1859 = vrot.slane %v1647, %v1858
        %v1869 = vunpack.c.l.b16 %v1639
        %v1870 = vunpack.c.l.b16 %v1640
        %v1871 = vunpack.c.l.b16 %v1641
        %v1872 = vunpack.c.l.b16 %v1642
        %v1873 = vunpack.c.l.b16 %v1643
        %v1874 = vunpack.c.l.b16 %v1644
        %v1875 = vunpack.c.l.b16 %v1645
        %v1876 = vunpack.c.l.b16 %v1646
        %v1877 = vpack.c.b16 %v1870, %v1869
        %v1878 = vpack.c.b16 %v1872, %v1871
        %v1879 = vpack.c.b16 %v1874, %v1873
        %v1880 = vpack.c.b16 %v1876, %v1875
        %v1886 = vsel %vm1756, %v1854, 0
        %1888 = vmatprep.subr.bf16.mxu0 0
        %1889 = vmatpush1.bf16.msra.mxu0 %v1877
        %1890 = vmatprep.subr.bf16.mxu0 0
        %1891 = vmatpush1.bf16.msra.mxu0 %v1878
        %1892 = vmatprep.subr.bf16.mxu0 0
        %1893 = vmatpush1.bf16.msra.mxu0 %v1879
        %1894 = vmatprep.subr.bf16.mxu0 0
        %1895 = vmatpush1.bf16.msra.mxu0 %v1880
        %1896 = vmatprep.subr.bf16.mxu0 0
        %1897 = vmatpush1.bf16.msra.mxu0 0
        %1898 = vmatprep.subr.bf16.mxu0 0
        %1899 = vmatpush1.bf16.msra.mxu0 0
        %1900 = vmatprep.subr.bf16.mxu0 0
        %1901 = vmatpush1.bf16.msra.mxu0 0
        %1902 = vmatprep.subr.bf16.mxu0 0
        %1903 = vmatpush1.bf16.msra.mxu0 0
        %1904 = vmatprep.subr.bf16.mxu0 0
        %1905 = vmatpush1.bf16.msra.mxu0 0
        %1906 = vmatprep.subr.bf16.mxu0 0
        %1907 = vmatpush1.bf16.msra.mxu0 0
        %1908 = vmatprep.subr.bf16.mxu0 0
        %1909 = vmatpush1.bf16.msra.mxu0 0
        %1910 = vmatprep.subr.bf16.mxu0 0
        %1911 = vmatpush1.bf16.msra.mxu0 0
        %1912 = vmatprep.subr.bf16.mxu0 0
        %1913 = vmatpush1.bf16.msra.mxu0 0
        %1914 = vmatprep.subr.bf16.mxu0 0
        %1915 = vmatpush1.bf16.msra.mxu0 0
        %1916 = vmatprep.subr.bf16.mxu0 0
        %1917 = vmatpush1.bf16.msra.mxu0 0
        %1918 = vmatprep.subr.bf16.mxu0 0
        %1919 = vmatpush1.bf16.msra.mxu0 0
        %1920 = vmatprep.mubr.bf16.mxu0 0
        %1921 = vmatmul.mubr.bf16.gmra.mrb[0].mxu0 %v1886
        %v1922 = vpop.f32.mrb[0].mxu0
        %v1923 = vadd.f32 %v1859, %v1922
        %v1924 = vpop.f32.mrb[0].mxu0
        %v1925 = vpop.f32.mrb[0].mxu0
        %v1926 = vadd.f32 %v1859, %v1925
        %v1927 = vpop.f32.mrb[0].mxu0
        %1928 = vdwg.mxu0
        %v1929 = vsel %vm1756, %v1923, 0.0
        %1930 = vadd.xlane.f32.xlu0 %v1929
        %v1931 = vpop.xlane.xlu0 %1930
        %v1932 = vsel %vm1756, %v1926, 0.0
        %1933 = vadd.xlane.f32.xlu0 %v1932
        %v1934 = vpop.xlane.xlu0 %1933
        %v1935 = vmul.f32 %v1931, %v1763
        %v1936 = vmul.f32 %v1934, %v1763
        %v1937 = vsub.f32 %v1923, %v1935
        %v1938 = vsub.f32 %v1926, %v1936
        %v1939 = vmul.f32 %v1937, %v1937
        %v1940 = vmul.f32 %v1938, %v1938
        %v1941 = vsel %vm1756, %v1939, 0.0
        %1942 = vadd.xlane.f32.xlu0 %v1941
        %v1943 = vpop.xlane.xlu0 %1942
        %v1944 = vsel %vm1756, %v1940, 0.0
        %1945 = vadd.xlane.f32.xlu0 %v1944
        %v1946 = vpop.xlane.xlu0 %1945
        %v1947 = vmul.f32 %v1943, %v1763
        %v1948 = vmul.f32 %v1946, %v1763
        %v1949 = vadd.f32 %v1947, 1e-05
        %v1950 = vadd.f32 %v1948, 1e-05
        %v1951 = vrsqrt.pop %v1949
        %v1952 = vrsqrt.pop %v1950
        %v1953 = vmul.f32 %v1937, %v1951
        %v1954 = vmul.f32 %v1938, %v1952
        %v1956 = vlaneseq
        %v1957 = vshrl.u32 %v1956, 7
        %v1958 = vsub.s32 0, %v1957
        %v1959 = vrot.slane %v1648, %v1958
        %v1961 = vmul.f32 %v1953, %v1959
        %v1962 = vmul.f32 %v1954, %v1959
        %v1964 = vlaneseq
        %v1965 = vshrl.u32 %v1964, 7
        %v1966 = vsub.s32 0, %v1965
        %v1967 = vrot.slane %v1649, %v1966
        %v1969 = vadd.f32 %v1961, %v1967
        %v1970 = vadd.f32 %v1962, %v1967
        %v1971 = vmul.f32 %v1969, 0.5
        %v1972 = vmul.f32 %v1970, 0.5
        %v1973 = vmul.f32 %v1969, 0.70710677
        %v1974 = vmul.f32 %v1970, 0.70710677
        %v1975 = vand.u32 2147483647, %v1973
        %v1976 = vand.u32 2147483647, %v1974
        %v1977 = vmul.f32 %v1975, 0.3275911
        %v1978 = vmul.f32 %v1976, 0.3275911
        %v1979 = vadd.f32 %v1977, 1.0
        %v1980 = vadd.f32 %v1978, 1.0
        %v1981 = vrcp.pop %v1979
        %v1982 = vmul.f32 1.0, %v1981
        %v1983 = vrcp.pop %v1980
        %v1984 = vmul.f32 1.0, %v1983
        %v1985 = vmul.f32 %v1982, 1.0614054
        %v1986 = vmul.f32 %v1984, 1.0614054
        %v1987 = vadd.f32 %v1985, -1.4531521
        %v1988 = vadd.f32 %v1986, -1.4531521
        %v1989 = vmul.f32 %v1987, %v1982
        %v1990 = vmul.f32 %v1988, %v1984
        %v1991 = vadd.f32 %v1989, 1.4214138
        %v1992 = vadd.f32 %v1990, 1.4214138
        %v1993 = vmul.f32 %v1991, %v1982
        %v1994 = vmul.f32 %v1992, %v1984
        %v1995 = vadd.f32 %v1993, -0.28449672
        %v1996 = vadd.f32 %v1994, -0.28449672
        %v1997 = vmul.f32 %v1995, %v1982
        %v1998 = vmul.f32 %v1996, %v1984
        %v1999 = vadd.f32 %v1997, 0.2548296
        %v2000 = vadd.f32 %v1998, 0.2548296
        %v2001 = vmul.f32 %v1999, %v1982
        %v2002 = vmul.f32 %v2000, %v1984
        %v2003 = vsub.f32 0.0, %v1975
        %v2004 = vsub.f32 0.0, %v1976
        %v2005 = vmul.f32 %v2003, %v1975
        %v2006 = vmul.f32 %v2004, %v1976
        %v2007 = vmul.f32 %v2005, 1.442695
        %v2008 = vpow.pop %v2007
        %v2009 = vmul.f32 %v2006, 1.442695
        %v2010 = vpow.pop %v2009
        %v2011 = vmul.f32 %v2001, %v2008
        %v2012 = vmul.f32 %v2002, %v2010
        %v2013 = vsub.f32 1.0, %v2011
        %v2014 = vsub.f32 1.0, %v2012
        %vm2015 = vcmp.ge.f32.partialorder %v1973, 0.0
        %vm2016 = vcmp.ge.f32.partialorder %v1974, 0.0
        %v2017 = vsub.f32 0.0, %v2013
        %v2018 = vsub.f32 0.0, %v2014
        %v2019 = vsel %vm2015, %v2013, %v2017
        %v2020 = vsel %vm2016, %v2014, %v2018
        %v2021 = vadd.f32 %v2019, 1.0
        %v2022 = vadd.f32 %v2020, 1.0
        %v2023 = vmul.f32 %v1971, %v2021
        %v2024 = vmul.f32 %v1972, %v2022
        %v2025 = vpack.c.bf16 %v2024, %v2023
        %v2027 = vlaneseq
        %v2028 = vshrl.u32 %v2027, 7
        %v2029 = vsub.s32 0, %v2028
        %v2030 = vrot.slane %v1658, %v2029
        %v2040 = vunpack.c.l.b16 %v1650
        %v2041 = vunpack.c.l.b16 %v1651
        %v2042 = vunpack.c.l.b16 %v1652
        %v2043 = vunpack.c.l.b16 %v1653
        %v2044 = vunpack.c.l.b16 %v1654
        %v2045 = vunpack.c.l.b16 %v1655
        %v2046 = vunpack.c.l.b16 %v1656
        %v2047 = vunpack.c.l.b16 %v1657
        %v2048 = vpack.c.b16 %v2041, %v2040
        %v2049 = vpack.c.b16 %v2043, %v2042
        %v2050 = vpack.c.b16 %v2045, %v2044
        %v2051 = vpack.c.b16 %v2047, %v2046
        %v2057 = vsel %vm1756, %v2025, 0
        %2059 = vmatprep.subr.bf16.mxu0 0
        %2060 = vmatpush1.bf16.msra.mxu0 %v2048
        %2061 = vmatprep.subr.bf16.mxu0 0
        %2062 = vmatpush1.bf16.msra.mxu0 %v2049
        %2063 = vmatprep.subr.bf16.mxu0 0
        %2064 = vmatpush1.bf16.msra.mxu0 %v2050
        %2065 = vmatprep.subr.bf16.mxu0 0
        %2066 = vmatpush1.bf16.msra.mxu0 %v2051
        %2067 = vmatprep.subr.bf16.mxu0 0
        %2068 = vmatpush1.bf16.msra.mxu0 0
        %2069 = vmatprep.subr.bf16.mxu0 0
        %2070 = vmatpush1.bf16.msra.mxu0 0
        %2071 = vmatprep.subr.bf16.mxu0 0
        %2072 = vmatpush1.bf16.msra.mxu0 0
        %2073 = vmatprep.subr.bf16.mxu0 0
        %2074 = vmatpush1.bf16.msra.mxu0 0
        %2075 = vmatprep.subr.bf16.mxu0 0
        %2076 = vmatpush1.bf16.msra.mxu0 0
        %2077 = vmatprep.subr.bf16.mxu0 0
        %2078 = vmatpush1.bf16.msra.mxu0 0
        %2079 = vmatprep.subr.bf16.mxu0 0
        %2080 = vmatpush1.bf16.msra.mxu0 0
        %2081 = vmatprep.subr.bf16.mxu0 0
        %2082 = vmatpush1.bf16.msra.mxu0 0
        %2083 = vmatprep.subr.bf16.mxu0 0
        %2084 = vmatpush1.bf16.msra.mxu0 0
        %2085 = vmatprep.subr.bf16.mxu0 0
        %2086 = vmatpush1.bf16.msra.mxu0 0
        %2087 = vmatprep.subr.bf16.mxu0 0
        %2088 = vmatpush1.bf16.msra.mxu0 0
        %2089 = vmatprep.subr.bf16.mxu0 0
        %2090 = vmatpush1.bf16.msra.mxu0 0
        %2091 = vmatprep.mubr.bf16.mxu0 0
        %2092 = vmatmul.mubr.bf16.gmra.mrb[0].mxu0 %v2057
        %v2093 = vpop.f32.mrb[0].mxu0
        %v2094 = vadd.f32 %v2030, %v2093
        %v2095 = vpop.f32.mrb[0].mxu0
        %v2096 = vpop.f32.mrb[0].mxu0
        %v2097 = vadd.f32 %v2030, %v2096
        %v2098 = vpop.f32.mrb[0].mxu0
        %2099 = vdwg.mxu0
        %v2100 = vsel %vm1711, %v2094, 0.0
        %2101 = vadd.xlane.f32.xlu0 %v2100
        %v2102 = vpop.xlane.xlu0 %2101
        %v2103 = vsel %vm1711, %v2097, 0.0
        %2104 = vadd.xlane.f32.xlu0 %v2103
        %v2105 = vpop.xlane.xlu0 %2104
        %v2106 = vrcp.pop 32.0
        %v2107 = vmul.f32 %v2102, %v2106
        %v2108 = vmul.f32 %v2105, %v2106
        %v2109 = vsub.f32 %v2094, %v2107
        %v2110 = vsub.f32 %v2097, %v2108
        %v2111 = vmul.f32 %v2109, %v2109
        %v2112 = vmul.f32 %v2110, %v2110
        %v2113 = vsel %vm1711, %v2111, 0.0
        %2114 = vadd.xlane.f32.xlu0 %v2113
        %v2115 = vpop.xlane.xlu0 %2114
        %v2116 = vsel %vm1711, %v2112, 0.0
        %2117 = vadd.xlane.f32.xlu0 %v2116
        %v2118 = vpop.xlane.xlu0 %2117
        %v2119 = vmul.f32 %v2115, %v2106
        %v2120 = vmul.f32 %v2118, %v2106
        %v2121 = vadd.f32 %v2119, 1e-05
        %v2122 = vadd.f32 %v2120, 1e-05
        %v2123 = vrsqrt.pop %v2121
        %v2124 = vrsqrt.pop %v2122
        %v2125 = vmul.f32 %v2109, %v2123
        %v2126 = vmul.f32 %v2110, %v2124
        %v2128 = vlaneseq
        %v2129 = vshrl.u32 %v2128, 7
        %v2130 = vsub.s32 0, %v2129
        %v2131 = vrot.slane %v1659, %v2130
        %v2133 = vmul.f32 %v2125, %v2131
        %v2134 = vmul.f32 %v2126, %v2131
        %v2136 = vlaneseq
        %v2137 = vshrl.u32 %v2136, 7
        %v2138 = vsub.s32 0, %v2137
        %v2139 = vrot.slane %v1660, %v2138
        %v2141 = vadd.f32 %v2133, %v2139
        %v2142 = vadd.f32 %v2134, %v2139
        %v2143 = vadd.f32 %v2141, %v1690
        %v2144 = vadd.f32 %v2142, %v1691
        %v2145 = vpack.c.bf16 %v2143, %v2143
        %2147 = vset.pattern.permute.xlu0 0
        %2148 = vperm.xlu0 %2147, %v1663
        %v2149 = vpop.permute.xlu0 %2148
        %2152 = vset.pattern.permute.xlu0 0
        %2153 = vperm.xlu0 %2152, %v1664
        %v2154 = vpop.permute.xlu0 %2153
        %v2158 = vunpack.c.l.b16 %v1661
        %v2159 = vunpack.c.l.b16 %v1662
        %v2160 = vpack.c.b16 %v2159, %v2158
        %vm2161 = vcmask 64512
        %v2163 = vsel %vm2161, %v2160, 0
        %vm2165 = vcmask 1043456
        %v2167 = vsel %vm2165, %v2145, 0
        %2169 = vmatprep.subr.bf16.mxu0 0
        %2170 = vmatpush1.bf16.msra.mxu0 %v2167
        %2171 = vmatprep.subr.bf16.mxu0 0
        %2172 = vmatpush1.bf16.msra.mxu0 0
        %2173 = vmatprep.subr.bf16.mxu0 0
        %2174 = vmatpush1.bf16.msra.mxu0 0
        %2175 = vmatprep.subr.bf16.mxu0 0
        %2176 = vmatpush1.bf16.msra.mxu0 0
        %2177 = vmatprep.subr.bf16.mxu0 0
        %2178 = vmatpush1.bf16.msra.mxu0 0
        %2179 = vmatprep.subr.bf16.mxu0 0
        %2180 = vmatpush1.bf16.msra.mxu0 0
        %2181 = vmatprep.subr.bf16.mxu0 0
        %2182 = vmatpush1.bf16.msra.mxu0 0
        %2183 = vmatprep.subr.bf16.mxu0 0
        %2184 = vmatpush1.bf16.msra.mxu0 0
        %2185 = vmatprep.subr.bf16.mxu0 0
        %2186 = vmatpush1.bf16.msra.mxu0 0
        %2187 = vmatprep.subr.bf16.mxu0 0
        %2188 = vmatpush1.bf16.msra.mxu0 0
        %2189 = vmatprep.subr.bf16.mxu0 0
        %2190 = vmatpush1.bf16.msra.mxu0 0
        %2191 = vmatprep.subr.bf16.mxu0 0
        %2192 = vmatpush1.bf16.msra.mxu0 0
        %2193 = vmatprep.subr.bf16.mxu0 0
        %2194 = vmatpush1.bf16.msra.mxu0 0
        %2195 = vmatprep.subr.bf16.mxu0 0
        %2196 = vmatpush1.bf16.msra.mxu0 0
        %2197 = vmatprep.subr.bf16.mxu0 0
        %2198 = vmatpush1.bf16.msra.mxu0 0
        %2199 = vmatprep.subr.bf16.mxu0 0
        %2200 = vmatpush1.bf16.msra.mxu0 0
        %2201 = vmatprep.mubr.bf16.mxu0 0
        %2202 = vmatmul.mubr.bf16.gmra.mrb[0].mxu0 %v2163
        %v2203 = vpop.f32.mrb[0].mxu0
        %v2204 = vadd.f32 %v2149, %v2203
        %v2205 = vpop.f32.mrb[0].mxu0
        %v2206 = vpop.f32.mrb[0].mxu0
        %v2207 = vadd.f32 %v2154, %v2206
        %v2208 = vpop.f32.mrb[0].mxu0
        %2209 = vdwg.mxu0
        %v2210 = vsel %vm1711, %v2204, 0.0
        %v2211 = vsel %vm1711, %v2207, 0.0
        %v2212 = vadd.f32 %v2210, %v2211
        %v2213 = vrot.slane %v2212, 4
        %v2214 = vadd.f32 %v2212, %v2213
        %v2215 = vrot.slane %v2214, 2
        %v2216 = vadd.f32 %v2214, %v2215
        %v2217 = vrot.slane %v2216, 1
        %v2218 = vadd.f32 %v2216, %v2217
        %v2219 = vrcp.pop 16.0
        %v2220 = vmul.f32 %v2218, %v2219
        %v2221 = vsub.f32 %v2204, %v2220
        %v2222 = vsub.f32 %v2207, %v2220
        %v2223 = vmul.f32 %v2221, %v2221
        %v2224 = vmul.f32 %v2222, %v2222
        %v2225 = vsel %vm1711, %v2223, 0.0
        %v2226 = vsel %vm1711, %v2224, 0.0
        %v2227 = vadd.f32 %v2225, %v2226
        %v2228 = vrot.slane %v2227, 4
        %v2229 = vadd.f32 %v2227, %v2228
        %v2230 = vrot.slane %v2229, 2
        %v2231 = vadd.f32 %v2229, %v2230
        %v2232 = vrot.slane %v2231, 1
        %v2233 = vadd.f32 %v2231, %v2232
        %v2234 = vmul.f32 %v2233, %v2219
        %v2235 = vadd.f32 %v2234, 1e-05
        %v2236 = vrsqrt.pop %v2235
        %v2237 = vmul.f32 %v2221, %v2236
        %v2238 = vmul.f32 %v2222, %v2236
        %2240 = vset.pattern.permute.xlu0 0
        %2241 = vperm.xlu0 %2240, %v1665
        %v2242 = vpop.permute.xlu0 %2241
        %2245 = vset.pattern.permute.xlu0 0
        %2246 = vperm.xlu0 %2245, %v1666
        %v2247 = vpop.permute.xlu0 %2246
        %v2249 = vmul.f32 %v2237, %v2242
        %v2250 = vmul.f32 %v2238, %v2247
        %2252 = vset.pattern.permute.xlu0 0
        %2253 = vperm.xlu0 %2252, %v1667
        %v2254 = vpop.permute.xlu0 %2253
        %2257 = vset.pattern.permute.xlu0 0
        %2258 = vperm.xlu0 %2257, %v1668
        %v2259 = vpop.permute.xlu0 %2258
        %v2261 = vadd.f32 %v2249, %v2254
        %v2262 = vadd.f32 %v2250, %v2259
        %v2263 = vmul.f32 %v2261, 0.5
        %v2264 = vmul.f32 %v2262, 0.5
        %v2265 = vmul.f32 %v2261, 0.70710677
        %v2266 = vmul.f32 %v2262, 0.70710677
        %v2267 = vand.u32 2147483647, %v2265
        %v2268 = vand.u32 2147483647, %v2266
        %v2269 = vmul.f32 %v2267, 0.3275911
        %v2270 = vmul.f32 %v2268, 0.3275911
        %v2271 = vadd.f32 %v2269, 1.0
        %v2272 = vadd.f32 %v2270, 1.0
        %v2273 = vrcp.pop %v2271
        %v2274 = vmul.f32 1.0, %v2273
        %v2275 = vrcp.pop %v2272
        %v2276 = vmul.f32 1.0, %v2275
        %v2277 = vmul.f32 %v2274, 1.0614054
        %v2278 = vmul.f32 %v2276, 1.0614054
        %v2279 = vadd.f32 %v2277, -1.4531521
        %v2280 = vadd.f32 %v2278, -1.4531521
        %v2281 = vmul.f32 %v2279, %v2274
        %v2282 = vmul.f32 %v2280, %v2276
        %v2283 = vadd.f32 %v2281, 1.4214138
        %v2284 = vadd.f32 %v2282, 1.4214138
        %v2285 = vmul.f32 %v2283, %v2274
        %v2286 = vmul.f32 %v2284, %v2276
        %v2287 = vadd.f32 %v2285, -0.28449672
        %v2288 = vadd.f32 %v2286, -0.28449672
        %v2289 = vmul.f32 %v2287, %v2274
        %v2290 = vmul.f32 %v2288, %v2276
        %v2291 = vadd.f32 %v2289, 0.2548296
        %v2292 = vadd.f32 %v2290, 0.2548296
        %v2293 = vmul.f32 %v2291, %v2274
        %v2294 = vmul.f32 %v2292, %v2276
        %v2295 = vsub.f32 0.0, %v2267
        %v2296 = vsub.f32 0.0, %v2268
        %v2297 = vmul.f32 %v2295, %v2267
        %v2298 = vmul.f32 %v2296, %v2268
        %v2299 = vmul.f32 %v2297, 1.442695
        %v2300 = vpow.pop %v2299
        %v2301 = vmul.f32 %v2298, 1.442695
        %v2302 = vpow.pop %v2301
        %v2303 = vmul.f32 %v2293, %v2300
        %v2304 = vmul.f32 %v2294, %v2302
        %v2305 = vsub.f32 1.0, %v2303
        %v2306 = vsub.f32 1.0, %v2304
        %vm2307 = vcmp.ge.f32.partialorder %v2265, 0.0
        %vm2308 = vcmp.ge.f32.partialorder %v2266, 0.0
        %v2309 = vsub.f32 0.0, %v2305
        %v2310 = vsub.f32 0.0, %v2306
        %v2311 = vsel %vm2307, %v2305, %v2309
        %v2312 = vsel %vm2308, %v2306, %v2310
        %v2313 = vadd.f32 %v2311, 1.0
        %v2314 = vadd.f32 %v2312, 1.0
        %v2315 = vmul.f32 %v2263, %v2313
        %v2316 = vmul.f32 %v2264, %v2314
        %v2317 = vpack.c.bf16 %v2316, %v2315
        %2319 = vset.pattern.permute.xlu0 0
        %2320 = vperm.xlu0 %2319, %v1671
        %v2321 = vpop.permute.xlu0 %2320
        %2324 = vset.pattern.permute.xlu0 0
        %2325 = vperm.xlu0 %2324, %v1672
        %v2326 = vpop.permute.xlu0 %2325
        %v2330 = vunpack.c.l.b16 %v1669
        %v2331 = vunpack.c.l.b16 %v1670
        %v2332 = vpack.c.b16 %v2331, %v2330
        %vm2333 = vcmask 130048
        %v2335 = vsel %vm2333, %v2332, 0
        %2337 = vmatprep.subr.bf16.mxu0 0
        %2338 = vmatpush1.bf16.msra.mxu0 %v2317
        %2339 = vmatprep.subr.bf16.mxu0 0
        %2340 = vmatpush1.bf16.msra.mxu0 0
        %2341 = vmatprep.subr.bf16.mxu0 0
        %2342 = vmatpush1.bf16.msra.mxu0 0
        %2343 = vmatprep.subr.bf16.mxu0 0
        %2344 = vmatpush1.bf16.msra.mxu0 0
        %2345 = vmatprep.subr.bf16.mxu0 0
        %2346 = vmatpush1.bf16.msra.mxu0 0
        %2347 = vmatprep.subr.bf16.mxu0 0
        %2348 = vmatpush1.bf16.msra.mxu0 0
        %2349 = vmatprep.subr.bf16.mxu0 0
        %2350 = vmatpush1.bf16.msra.mxu0 0
        %2351 = vmatprep.subr.bf16.mxu0 0
        %2352 = vmatpush1.bf16.msra.mxu0 0
        %2353 = vmatprep.subr.bf16.mxu0 0
        %2354 = vmatpush1.bf16.msra.mxu0 0
        %2355 = vmatprep.subr.bf16.mxu0 0
        %2356 = vmatpush1.bf16.msra.mxu0 0
        %2357 = vmatprep.subr.bf16.mxu0 0
        %2358 = vmatpush1.bf16.msra.mxu0 0
        %2359 = vmatprep.subr.bf16.mxu0 0
        %2360 = vmatpush1.bf16.msra.mxu0 0
        %2361 = vmatprep.subr.bf16.mxu0 0
        %2362 = vmatpush1.bf16.msra.mxu0 0
        %2363 = vmatprep.subr.bf16.mxu0 0
        %2364 = vmatpush1.bf16.msra.mxu0 0
        %2365 = vmatprep.subr.bf16.mxu0 0
        %2366 = vmatpush1.bf16.msra.mxu0 0
        %2367 = vmatprep.subr.bf16.mxu0 0
        %2368 = vmatpush1.bf16.msra.mxu0 0
        %2369 = vmatprep.mubr.bf16.mxu0 0
        %2370 = vmatmul.mubr.bf16.gmra.mrb[0].mxu0 %v2335
        %v2371 = vpop.f32.mrb[0].mxu0
        %v2372 = vadd.f32 %v2321, %v2371
        %v2373 = vpop.f32.mrb[0].mxu0
        %v2374 = vpop.f32.mrb[0].mxu0
        %v2375 = vadd.f32 %v2326, %v2374
        %v2376 = vpop.f32.mrb[0].mxu0
        %2377 = vdwg.mxu0
        %v2378 = vsel %vm1711, %v2372, 0.0
        %v2379 = vsel %vm1711, %v2375, 0.0
        %v2380 = vadd.f32 %v2378, %v2379
        %v2381 = vrot.slane %v2380, 4
        %v2382 = vadd.f32 %v2380, %v2381
        %v2383 = vrot.slane %v2382, 2
        %v2384 = vadd.f32 %v2382, %v2383
        %v2385 = vrot.slane %v2384, 1
        %v2386 = vadd.f32 %v2384, %v2385
        %v2387 = vmul.f32 %v2386, %v2219
        %v2388 = vsub.f32 %v2372, %v2387
        %v2389 = vsub.f32 %v2375, %v2387
        %v2390 = vmul.f32 %v2388, %v2388
        %v2391 = vmul.f32 %v2389, %v2389
        %v2392 = vsel %vm1711, %v2390, 0.0
        %v2393 = vsel %vm1711, %v2391, 0.0
        %v2394 = vadd.f32 %v2392, %v2393
        %v2395 = vrot.slane %v2394, 4
        %v2396 = vadd.f32 %v2394, %v2395
        %v2397 = vrot.slane %v2396, 2
        %v2398 = vadd.f32 %v2396, %v2397
        %v2399 = vrot.slane %v2398, 1
        %v2400 = vadd.f32 %v2398, %v2399
        %v2401 = vmul.f32 %v2400, %v2219
        %v2402 = vadd.f32 %v2401, 1e-05
        %v2403 = vrsqrt.pop %v2402
        %v2404 = vmul.f32 %v2388, %v2403
        %v2405 = vmul.f32 %v2389, %v2403
        %2407 = vset.pattern.permute.xlu0 0
        %2408 = vperm.xlu0 %2407, %v1673
        %v2409 = vpop.permute.xlu0 %2408
        %2412 = vset.pattern.permute.xlu0 0
        %2413 = vperm.xlu0 %2412, %v1674
        %v2414 = vpop.permute.xlu0 %2413
        %v2416 = vmul.f32 %v2404, %v2409
        %v2417 = vmul.f32 %v2405, %v2414
        %2419 = vset.pattern.permute.xlu0 0
        %2420 = vperm.xlu0 %2419, %v1675
        %v2421 = vpop.permute.xlu0 %2420
        %2424 = vset.pattern.permute.xlu0 0
        %2425 = vperm.xlu0 %2424, %v1676
        %v2426 = vpop.permute.xlu0 %2425
        %v2428 = vadd.f32 %v2416, %v2421
        %v2429 = vadd.f32 %v2417, %v2426
        %v2430 = vmul.f32 %v2428, 0.5
        %v2431 = vmul.f32 %v2429, 0.5
        %v2432 = vmul.f32 %v2428, 0.70710677
        %v2433 = vmul.f32 %v2429, 0.70710677
        %v2434 = vand.u32 2147483647, %v2432
        %v2435 = vand.u32 2147483647, %v2433
        %v2436 = vmul.f32 %v2434, 0.3275911
        %v2437 = vmul.f32 %v2435, 0.3275911
        %v2438 = vadd.f32 %v2436, 1.0
        %v2439 = vadd.f32 %v2437, 1.0
        %v2440 = vrcp.pop %v2438
        %v2441 = vmul.f32 1.0, %v2440
        %v2442 = vrcp.pop %v2439
        %v2443 = vmul.f32 1.0, %v2442
        %v2444 = vmul.f32 %v2441, 1.0614054
        %v2445 = vmul.f32 %v2443, 1.0614054
        %v2446 = vadd.f32 %v2444, -1.4531521
        %v2447 = vadd.f32 %v2445, -1.4531521
        %v2448 = vmul.f32 %v2446, %v2441
        %v2449 = vmul.f32 %v2447, %v2443
        %v2450 = vadd.f32 %v2448, 1.4214138
        %v2451 = vadd.f32 %v2449, 1.4214138
        %v2452 = vmul.f32 %v2450, %v2441
        %v2453 = vmul.f32 %v2451, %v2443
        %v2454 = vadd.f32 %v2452, -0.28449672
        %v2455 = vadd.f32 %v2453, -0.28449672
        %v2456 = vmul.f32 %v2454, %v2441
        %v2457 = vmul.f32 %v2455, %v2443
        %v2458 = vadd.f32 %v2456, 0.2548296
        %v2459 = vadd.f32 %v2457, 0.2548296
        %v2460 = vmul.f32 %v2458, %v2441
        %v2461 = vmul.f32 %v2459, %v2443
        %v2462 = vsub.f32 0.0, %v2434
        %v2463 = vsub.f32 0.0, %v2435
        %v2464 = vmul.f32 %v2462, %v2434
        %v2465 = vmul.f32 %v2463, %v2435
        %v2466 = vmul.f32 %v2464, 1.442695
        %v2467 = vpow.pop %v2466
        %v2468 = vmul.f32 %v2465, 1.442695
        %v2469 = vpow.pop %v2468
        %v2470 = vmul.f32 %v2460, %v2467
        %v2471 = vmul.f32 %v2461, %v2469
        %v2472 = vsub.f32 1.0, %v2470
        %v2473 = vsub.f32 1.0, %v2471
        %vm2474 = vcmp.ge.f32.partialorder %v2432, 0.0
        %vm2475 = vcmp.ge.f32.partialorder %v2433, 0.0
        %v2476 = vsub.f32 0.0, %v2472
        %v2477 = vsub.f32 0.0, %v2473
        %v2478 = vsel %vm2474, %v2472, %v2476
        %v2479 = vsel %vm2475, %v2473, %v2477
        %v2480 = vadd.f32 %v2478, 1.0
        %v2481 = vadd.f32 %v2479, 1.0
        %v2482 = vmul.f32 %v2430, %v2480
        %v2483 = vmul.f32 %v2431, %v2481
        %v2484 = vpack.c.bf16 %v2483, %v2482
        %2486 = vset.pattern.permute.xlu0 0
        %2487 = vperm.xlu0 %2486, %v1678
        %v2488 = vpop.permute.xlu0 %2487
        %v2491 = vsel %vm2333, %v1677, 0
        %2493 = vmatprep.subr.bf16.mxu0 0
        %2494 = vmatpush1.bf16.msra.mxu0 %v2484
        %2495 = vmatprep.subr.bf16.mxu0 0
        %2496 = vmatpush1.bf16.msra.mxu0 0
        %2497 = vmatprep.subr.bf16.mxu0 0
        %2498 = vmatpush1.bf16.msra.mxu0 0
        %2499 = vmatprep.subr.bf16.mxu0 0
        %2500 = vmatpush1.bf16.msra.mxu0 0
        %2501 = vmatprep.subr.bf16.mxu0 0
        %2502 = vmatpush1.bf16.msra.mxu0 0
        %2503 = vmatprep.subr.bf16.mxu0 0
        %2504 = vmatpush1.bf16.msra.mxu0 0
        %2505 = vmatprep.subr.bf16.mxu0 0
        %2506 = vmatpush1.bf16.msra.mxu0 0
        %2507 = vmatprep.subr.bf16.mxu0 0
        %2508 = vmatpush1.bf16.msra.mxu0 0
        %2509 = vmatprep.subr.bf16.mxu0 0
        %2510 = vmatpush1.bf16.msra.mxu0 0
        %2511 = vmatprep.subr.bf16.mxu0 0
        %2512 = vmatpush1.bf16.msra.mxu0 0
        %2513 = vmatprep.subr.bf16.mxu0 0
        %2514 = vmatpush1.bf16.msra.mxu0 0
        %2515 = vmatprep.subr.bf16.mxu0 0
        %2516 = vmatpush1.bf16.msra.mxu0 0
        %2517 = vmatprep.subr.bf16.mxu0 0
        %2518 = vmatpush1.bf16.msra.mxu0 0
        %2519 = vmatprep.subr.bf16.mxu0 0
        %2520 = vmatpush1.bf16.msra.mxu0 0
        %2521 = vmatprep.subr.bf16.mxu0 0
        %2522 = vmatpush1.bf16.msra.mxu0 0
        %2523 = vmatprep.subr.bf16.mxu0 0
        %2524 = vmatpush1.bf16.msra.mxu0 0
        %2525 = vmatprep.mubr.bf16.mxu0 0
        %2526 = vmatmul.mubr.bf16.gmra.mrb[0].mxu0 %v2491
        %v2527 = vpop.f32.mrb[0].mxu0
        %v2528 = vadd.f32 %v2488, %v2527
        %v2529 = vpop.f32.mrb[0].mxu0
        %v2530 = vpop.f32.mrb[0].mxu0
        %v2531 = vpop.f32.mrb[0].mxu0
        %2532 = vdwg.mxu0
        %v2533 = vsel %vm1711, %v2528, 0.0
        %v2534 = vrot.slane %v2533, 4
        %v2535 = vadd.f32 %v2533, %v2534
        %v2536 = vrot.slane %v2535, 2
        %v2537 = vadd.f32 %v2535, %v2536
        %v2538 = vrot.slane %v2537, 1
        %v2539 = vadd.f32 %v2537, %v2538
        %v2540 = vrcp.pop 8.0
        %v2541 = vmul.f32 %v2539, %v2540
        %v2542 = vsub.f32 %v2528, %v2541
        %v2543 = vmul.f32 %v2542, %v2542
        %v2544 = vsel %vm1711, %v2543, 0.0
        %v2545 = vrot.slane %v2544, 4
        %v2546 = vadd.f32 %v2544, %v2545
        %v2547 = vrot.slane %v2546, 2
        %v2548 = vadd.f32 %v2546, %v2547
        %v2549 = vrot.slane %v2548, 1
        %v2550 = vadd.f32 %v2548, %v2549
        %v2551 = vmul.f32 %v2550, %v2540
        %v2552 = vadd.f32 %v2551, 1e-05
        %v2553 = vrsqrt.pop %v2552
        %v2554 = vmul.f32 %v2542, %v2553
        %2556 = vset.pattern.permute.xlu0 0
        %2557 = vperm.xlu0 %2556, %v1679
        %v2558 = vpop.permute.xlu0 %2557
        %v2560 = vmul.f32 %v2554, %v2558
        %2562 = vset.pattern.permute.xlu0 0
        %2563 = vperm.xlu0 %2562, %v1680
        %v2564 = vpop.permute.xlu0 %2563
        %v2566 = vadd.f32 %v2560, %v2564
        %v2567 = vadd.f32 %v2566, %v2143
        %v2568 = vpack.c.bf16 %v2144, %v2144
        %v2570 = vsel %vm2165, %v2568, 0
        %2572 = vmatprep.subr.bf16.mxu0 0
        %2573 = vmatpush1.bf16.msra.mxu0 %v2570
        %2574 = vmatprep.subr.bf16.mxu0 0
        %2575 = vmatpush1.bf16.msra.mxu0 0
        %2576 = vmatprep.subr.bf16.mxu0 0
        %2577 = vmatpush1.bf16.msra.mxu0 0
        %2578 = vmatprep.subr.bf16.mxu0 0
        %2579 = vmatpush1.bf16.msra.mxu0 0
        %2580 = vmatprep.subr.bf16.mxu0 0
        %2581 = vmatpush1.bf16.msra.mxu0 0
        %2582 = vmatprep.subr.bf16.mxu0 0
        %2583 = vmatpush1.bf16.msra.mxu0 0
        %2584 = vmatprep.subr.bf16.mxu0 0
        %2585 = vmatpush1.bf16.msra.mxu0 0
        %2586 = vmatprep.subr.bf16.mxu0 0
        %2587 = vmatpush1.bf16.msra.mxu0 0
        %2588 = vmatprep.subr.bf16.mxu0 0
        %2589 = vmatpush1.bf16.msra.mxu0 0
        %2590 = vmatprep.subr.bf16.mxu0 0
        %2591 = vmatpush1.bf16.msra.mxu0 0
        %2592 = vmatprep.subr.bf16.mxu0 0
        %2593 = vmatpush1.bf16.msra.mxu0 0
        %2594 = vmatprep.subr.bf16.mxu0 0
        %2595 = vmatpush1.bf16.msra.mxu0 0
        %2596 = vmatprep.subr.bf16.mxu0 0
        %2597 = vmatpush1.bf16.msra.mxu0 0
        %2598 = vmatprep.subr.bf16.mxu0 0
        %2599 = vmatpush1.bf16.msra.mxu0 0
        %2600 = vmatprep.subr.bf16.mxu0 0
        %2601 = vmatpush1.bf16.msra.mxu0 0
        %2602 = vmatprep.subr.bf16.mxu0 0
        %2603 = vmatpush1.bf16.msra.mxu0 0
        %2604 = vmatprep.mubr.bf16.mxu0 0
        %2605 = vmatmul.mubr.bf16.gmra.mrb[0].mxu0 %v2163
        %v2606 = vpop.f32.mrb[0].mxu0
        %v2607 = vadd.f32 %v2149, %v2606
        %v2608 = vpop.f32.mrb[0].mxu0
        %v2609 = vpop.f32.mrb[0].mxu0
        %v2610 = vadd.f32 %v2154, %v2609
        %v2611 = vpop.f32.mrb[0].mxu0
        %2612 = vdwg.mxu0
        %v2613 = vsel %vm1711, %v2607, 0.0
        %v2614 = vsel %vm1711, %v2610, 0.0
        %v2615 = vadd.f32 %v2613, %v2614
        %v2616 = vrot.slane %v2615, 4
        %v2617 = vadd.f32 %v2615, %v2616
        %v2618 = vrot.slane %v2617, 2
        %v2619 = vadd.f32 %v2617, %v2618
        %v2620 = vrot.slane %v2619, 1
        %v2621 = vadd.f32 %v2619, %v2620
        %v2622 = vmul.f32 %v2621, %v2219
        %v2623 = vsub.f32 %v2607, %v2622
        %v2624 = vsub.f32 %v2610, %v2622
        %v2625 = vmul.f32 %v2623, %v2623
        %v2626 = vmul.f32 %v2624, %v2624
        %v2627 = vsel %vm1711, %v2625, 0.0
        %v2628 = vsel %vm1711, %v2626, 0.0
        %v2629 = vadd.f32 %v2627, %v2628
        %v2630 = vrot.slane %v2629, 4
        %v2631 = vadd.f32 %v2629, %v2630
        %v2632 = vrot.slane %v2631, 2
        %v2633 = vadd.f32 %v2631, %v2632
        %v2634 = vrot.slane %v2633, 1
        %v2635 = vadd.f32 %v2633, %v2634
        %v2636 = vmul.f32 %v2635, %v2219
        %v2637 = vadd.f32 %v2636, 1e-05
        %v2638 = vrsqrt.pop %v2637
        %v2639 = vmul.f32 %v2623, %v2638
        %v2640 = vmul.f32 %v2624, %v2638
        %v2641 = vmul.f32 %v2639, %v2242
        %v2642 = vmul.f32 %v2640, %v2247
        %v2643 = vadd.f32 %v2641, %v2254
        %v2644 = vadd.f32 %v2642, %v2259
        %v2645 = vmul.f32 %v2643, 0.5
        %v2646 = vmul.f32 %v2644, 0.5
        %v2647 = vmul.f32 %v2643, 0.70710677
        %v2648 = vmul.f32 %v2644, 0.70710677
        %v2649 = vand.u32 2147483647, %v2647
        %v2650 = vand.u32 2147483647, %v2648
        %v2651 = vmul.f32 %v2649, 0.3275911
        %v2652 = vmul.f32 %v2650, 0.3275911
        %v2653 = vadd.f32 %v2651, 1.0
        %v2654 = vadd.f32 %v2652, 1.0
        %v2655 = vrcp.pop %v2653
        %v2656 = vmul.f32 1.0, %v2655
        %v2657 = vrcp.pop %v2654
        %v2658 = vmul.f32 1.0, %v2657
        %v2659 = vmul.f32 %v2656, 1.0614054
        %v2660 = vmul.f32 %v2658, 1.0614054
        %v2661 = vadd.f32 %v2659, -1.4531521
        %v2662 = vadd.f32 %v2660, -1.4531521
        %v2663 = vmul.f32 %v2661, %v2656
        %v2664 = vmul.f32 %v2662, %v2658
        %v2665 = vadd.f32 %v2663, 1.4214138
        %v2666 = vadd.f32 %v2664, 1.4214138
        %v2667 = vmul.f32 %v2665, %v2656
        %v2668 = vmul.f32 %v2666, %v2658
        %v2669 = vadd.f32 %v2667, -0.28449672
        %v2670 = vadd.f32 %v2668, -0.28449672
        %v2671 = vmul.f32 %v2669, %v2656
        %v2672 = vmul.f32 %v2670, %v2658
        %v2673 = vadd.f32 %v2671, 0.2548296
        %v2674 = vadd.f32 %v2672, 0.2548296
        %v2675 = vmul.f32 %v2673, %v2656
        %v2676 = vmul.f32 %v2674, %v2658
        %v2677 = vsub.f32 0.0, %v2649
        %v2678 = vsub.f32 0.0, %v2650
        %v2679 = vmul.f32 %v2677, %v2649
        %v2680 = vmul.f32 %v2678, %v2650
        %v2681 = vmul.f32 %v2679, 1.442695
        %v2682 = vpow.pop %v2681
        %v2683 = vmul.f32 %v2680, 1.442695
        %v2684 = vpow.pop %v2683
        %v2685 = vmul.f32 %v2675, %v2682
        %v2686 = vmul.f32 %v2676, %v2684
        %v2687 = vsub.f32 1.0, %v2685
        %v2688 = vsub.f32 1.0, %v2686
        %vm2689 = vcmp.ge.f32.partialorder %v2647, 0.0
        %vm2690 = vcmp.ge.f32.partialorder %v2648, 0.0
        %v2691 = vsub.f32 0.0, %v2687
        %v2692 = vsub.f32 0.0, %v2688
        %v2693 = vsel %vm2689, %v2687, %v2691
        %v2694 = vsel %vm2690, %v2688, %v2692
        %v2695 = vadd.f32 %v2693, 1.0
        %v2696 = vadd.f32 %v2694, 1.0
        %v2697 = vmul.f32 %v2645, %v2695
        %v2698 = vmul.f32 %v2646, %v2696
        %v2699 = vpack.c.bf16 %v2698, %v2697
        %2700 = vmatprep.subr.bf16.mxu0 0
        %2701 = vmatpush1.bf16.msra.mxu0 %v2699
        %2702 = vmatprep.subr.bf16.mxu0 0
        %2703 = vmatpush1.bf16.msra.mxu0 0
        %2704 = vmatprep.subr.bf16.mxu0 0
        %2705 = vmatpush1.bf16.msra.mxu0 0
        %2706 = vmatprep.subr.bf16.mxu0 0
        %2707 = vmatpush1.bf16.msra.mxu0 0
        %2708 = vmatprep.subr.bf16.mxu0 0
        %2709 = vmatpush1.bf16.msra.mxu0 0
        %2710 = vmatprep.subr.bf16.mxu0 0
        %2711 = vmatpush1.bf16.msra.mxu0 0
        %2712 = vmatprep.subr.bf16.mxu0 0
        %2713 = vmatpush1.bf16.msra.mxu0 0
        %2714 = vmatprep.subr.bf16.mxu0 0
        %2715 = vmatpush1.bf16.msra.mxu0 0
        %2716 = vmatprep.subr.bf16.mxu0 0
        %2717 = vmatpush1.bf16.msra.mxu0 0
        %2718 = vmatprep.subr.bf16.mxu0 0
        %2719 = vmatpush1.bf16.msra.mxu0 0
        %2720 = vmatprep.subr.bf16.mxu0 0
        %2721 = vmatpush1.bf16.msra.mxu0 0
        %2722 = vmatprep.subr.bf16.mxu0 0
        %2723 = vmatpush1.bf16.msra.mxu0 0
        %2724 = vmatprep.subr.bf16.mxu0 0
        %2725 = vmatpush1.bf16.msra.mxu0 0
        %2726 = vmatprep.subr.bf16.mxu0 0
        %2727 = vmatpush1.bf16.msra.mxu0 0
        %2728 = vmatprep.subr.bf16.mxu0 0
        %2729 = vmatpush1.bf16.msra.mxu0 0
        %2730 = vmatprep.subr.bf16.mxu0 0
        %2731 = vmatpush1.bf16.msra.mxu0 0
        %2732 = vmatprep.mubr.bf16.mxu0 0
        %2733 = vmatmul.mubr.bf16.gmra.mrb[0].mxu0 %v2335
        %v2734 = vpop.f32.mrb[0].mxu0
        %v2735 = vadd.f32 %v2321, %v2734
        %v2736 = vpop.f32.mrb[0].mxu0
        %v2737 = vpop.f32.mrb[0].mxu0
        %v2738 = vadd.f32 %v2326, %v2737
        %v2739 = vpop.f32.mrb[0].mxu0
        %2740 = vdwg.mxu0
        %v2741 = vsel %vm1711, %v2735, 0.0
        %v2742 = vsel %vm1711, %v2738, 0.0
        %v2743 = vadd.f32 %v2741, %v2742
        %v2744 = vrot.slane %v2743, 4
        %v2745 = vadd.f32 %v2743, %v2744
        %v2746 = vrot.slane %v2745, 2
        %v2747 = vadd.f32 %v2745, %v2746
        %v2748 = vrot.slane %v2747, 1
        %v2749 = vadd.f32 %v2747, %v2748
        %v2750 = vmul.f32 %v2749, %v2219
        %v2751 = vsub.f32 %v2735, %v2750
        %v2752 = vsub.f32 %v2738, %v2750
        %v2753 = vmul.f32 %v2751, %v2751
        %v2754 = vmul.f32 %v2752, %v2752
        %v2755 = vsel %vm1711, %v2753, 0.0
        %v2756 = vsel %vm1711, %v2754, 0.0
        %v2757 = vadd.f32 %v2755, %v2756
        %v2758 = vrot.slane %v2757, 4
        %v2759 = vadd.f32 %v2757, %v2758
        %v2760 = vrot.slane %v2759, 2
        %v2761 = vadd.f32 %v2759, %v2760
        %v2762 = vrot.slane %v2761, 1
        %v2763 = vadd.f32 %v2761, %v2762
        %v2764 = vmul.f32 %v2763, %v2219
        %v2765 = vadd.f32 %v2764, 1e-05
        %v2766 = vrsqrt.pop %v2765
        %v2767 = vmul.f32 %v2751, %v2766
        %v2768 = vmul.f32 %v2752, %v2766
        %v2769 = vmul.f32 %v2767, %v2409
        %v2770 = vmul.f32 %v2768, %v2414
        %v2771 = vadd.f32 %v2769, %v2421
        %v2772 = vadd.f32 %v2770, %v2426
        %v2773 = vmul.f32 %v2771, 0.5
        %v2774 = vmul.f32 %v2772, 0.5
        %v2775 = vmul.f32 %v2771, 0.70710677
        %v2776 = vmul.f32 %v2772, 0.70710677
        %v2777 = vand.u32 2147483647, %v2775
        %v2778 = vand.u32 2147483647, %v2776
        %v2779 = vmul.f32 %v2777, 0.3275911
        %v2780 = vmul.f32 %v2778, 0.3275911
        %v2781 = vadd.f32 %v2779, 1.0
        %v2782 = vadd.f32 %v2780, 1.0
        %v2783 = vrcp.pop %v2781
        %v2784 = vmul.f32 1.0, %v2783
        %v2785 = vrcp.pop %v2782
        %v2786 = vmul.f32 1.0, %v2785
        %v2787 = vmul.f32 %v2784, 1.0614054
        %v2788 = vmul.f32 %v2786, 1.0614054
        %v2789 = vadd.f32 %v2787, -1.4531521
        %v2790 = vadd.f32 %v2788, -1.4531521
        %v2791 = vmul.f32 %v2789, %v2784
        %v2792 = vmul.f32 %v2790, %v2786
        %v2793 = vadd.f32 %v2791, 1.4214138
        %v2794 = vadd.f32 %v2792, 1.4214138
        %v2795 = vmul.f32 %v2793, %v2784
        %v2796 = vmul.f32 %v2794, %v2786
        %v2797 = vadd.f32 %v2795, -0.28449672
        %v2798 = vadd.f32 %v2796, -0.28449672
        %v2799 = vmul.f32 %v2797, %v2784
        %v2800 = vmul.f32 %v2798, %v2786
        %v2801 = vadd.f32 %v2799, 0.2548296
        %v2802 = vadd.f32 %v2800, 0.2548296
        %v2803 = vmul.f32 %v2801, %v2784
        %v2804 = vmul.f32 %v2802, %v2786
        %v2805 = vsub.f32 0.0, %v2777
        %v2806 = vsub.f32 0.0, %v2778
        %v2807 = vmul.f32 %v2805, %v2777
        %v2808 = vmul.f32 %v2806, %v2778
        %v2809 = vmul.f32 %v2807, 1.442695
        %v2810 = vpow.pop %v2809
        %v2811 = vmul.f32 %v2808, 1.442695
        %v2812 = vpow.pop %v2811
        %v2813 = vmul.f32 %v2803, %v2810
        %v2814 = vmul.f32 %v2804, %v2812
        %v2815 = vsub.f32 1.0, %v2813
        %v2816 = vsub.f32 1.0, %v2814
        %vm2817 = vcmp.ge.f32.partialorder %v2775, 0.0
        %vm2818 = vcmp.ge.f32.partialorder %v2776, 0.0
        %v2819 = vsub.f32 0.0, %v2815
        %v2820 = vsub.f32 0.0, %v2816
        %v2821 = vsel %vm2817, %v2815, %v2819
        %v2822 = vsel %vm2818, %v2816, %v2820
        %v2823 = vadd.f32 %v2821, 1.0
        %v2824 = vadd.f32 %v2822, 1.0
        %v2825 = vmul.f32 %v2773, %v2823
        %v2826 = vmul.f32 %v2774, %v2824
        %v2827 = vpack.c.bf16 %v2826, %v2825
        %2828 = vmatprep.subr.bf16.mxu0 0
        %2829 = vmatpush1.bf16.msra.mxu0 %v2827
        %2830 = vmatprep.subr.bf16.mxu0 0
        %2831 = vmatpush1.bf16.msra.mxu0 0
        %2832 = vmatprep.subr.bf16.mxu0 0
        %2833 = vmatpush1.bf16.msra.mxu0 0
        %2834 = vmatprep.subr.bf16.mxu0 0
        %2835 = vmatpush1.bf16.msra.mxu0 0
        %2836 = vmatprep.subr.bf16.mxu0 0
        %2837 = vmatpush1.bf16.msra.mxu0 0
        %2838 = vmatprep.subr.bf16.mxu0 0
        %2839 = vmatpush1.bf16.msra.mxu0 0
        %2840 = vmatprep.subr.bf16.mxu0 0
        %2841 = vmatpush1.bf16.msra.mxu0 0
        %2842 = vmatprep.subr.bf16.mxu0 0
        %2843 = vmatpush1.bf16.msra.mxu0 0
        %2844 = vmatprep.subr.bf16.mxu0 0
        %2845 = vmatpush1.bf16.msra.mxu0 0
        %2846 = vmatprep.subr.bf16.mxu0 0
        %2847 = vmatpush1.bf16.msra.mxu0 0
        %2848 = vmatprep.subr.bf16.mxu0 0
        %2849 = vmatpush1.bf16.msra.mxu0 0
        %2850 = vmatprep.subr.bf16.mxu0 0
        %2851 = vmatpush1.bf16.msra.mxu0 0
        %2852 = vmatprep.subr.bf16.mxu0 0
        %2853 = vmatpush1.bf16.msra.mxu0 0
        %2854 = vmatprep.subr.bf16.mxu0 0
        %2855 = vmatpush1.bf16.msra.mxu0 0
        %2856 = vmatprep.subr.bf16.mxu0 0
        %2857 = vmatpush1.bf16.msra.mxu0 0
        %2858 = vmatprep.subr.bf16.mxu0 0
        %2859 = vmatpush1.bf16.msra.mxu0 0
        %2860 = vmatprep.mubr.bf16.mxu0 0
        %2861 = vmatmul.mubr.bf16.gmra.mrb[0].mxu0 %v2491
        %v2862 = vpop.f32.mrb[0].mxu0
        %v2863 = vadd.f32 %v2488, %v2862
        %v2864 = vpop.f32.mrb[0].mxu0
        %v2865 = vpop.f32.mrb[0].mxu0
        %v2866 = vpop.f32.mrb[0].mxu0
        %2867 = vdwg.mxu0
        %v2868 = vsel %vm1711, %v2863, 0.0
        %v2869 = vrot.slane %v2868, 4
        %v2870 = vadd.f32 %v2868, %v2869
        %v2871 = vrot.slane %v2870, 2
        %v2872 = vadd.f32 %v2870, %v2871
        %v2873 = vrot.slane %v2872, 1
        %v2874 = vadd.f32 %v2872, %v2873
        %v2875 = vmul.f32 %v2874, %v2540
        %v2876 = vsub.f32 %v2863, %v2875
        %v2877 = vmul.f32 %v2876, %v2876
        %v2878 = vsel %vm1711, %v2877, 0.0
        %v2879 = vrot.slane %v2878, 4
        %v2880 = vadd.f32 %v2878, %v2879
        %v2881 = vrot.slane %v2880, 2
        %v2882 = vadd.f32 %v2880, %v2881
        %v2883 = vrot.slane %v2882, 1
        %v2884 = vadd.f32 %v2882, %v2883
        %v2885 = vmul.f32 %v2884, %v2540
        %v2886 = vadd.f32 %v2885, 1e-05
        %v2887 = vrsqrt.pop %v2886
        %v2888 = vmul.f32 %v2876, %v2887
        %v2889 = vmul.f32 %v2888, %v2558
        %v2890 = vadd.f32 %v2889, %v2564
        %v2891 = vadd.f32 %v2890, %v2144
        %v2892 = vadd.f32 %v2567, %v1690
        %v2893 = vadd.f32 %v2891, %v1691
        %v2894 = vmul.f32 %v2892, 0.5
        %v2895 = vmul.f32 %v2893, 0.5
        %v2896 = vmul.f32 %v2892, 0.70710677
        %v2897 = vmul.f32 %v2893, 0.70710677
        %v2898 = vand.u32 2147483647, %v2896
        %v2899 = vand.u32 2147483647, %v2897
        %v2900 = vmul.f32 %v2898, 0.3275911
        %v2901 = vmul.f32 %v2899, 0.3275911
        %v2902 = vadd.f32 %v2900, 1.0
        %v2903 = vadd.f32 %v2901, 1.0
        %v2904 = vrcp.pop %v2902
        %v2905 = vmul.f32 1.0, %v2904
        %v2906 = vrcp.pop %v2903
        %v2907 = vmul.f32 1.0, %v2906
        %v2908 = vmul.f32 %v2905, 1.0614054
        %v2909 = vmul.f32 %v2907, 1.0614054
        %v2910 = vadd.f32 %v2908, -1.4531521
        %v2911 = vadd.f32 %v2909, -1.4531521
        %v2912 = vmul.f32 %v2910, %v2905
        %v2913 = vmul.f32 %v2911, %v2907
        %v2914 = vadd.f32 %v2912, 1.4214138
        %v2915 = vadd.f32 %v2913, 1.4214138
        %v2916 = vmul.f32 %v2914, %v2905
        %v2917 = vmul.f32 %v2915, %v2907
        %v2918 = vadd.f32 %v2916, -0.28449672
        %v2919 = vadd.f32 %v2917, -0.28449672
        %v2920 = vmul.f32 %v2918, %v2905
        %v2921 = vmul.f32 %v2919, %v2907
        %v2922 = vadd.f32 %v2920, 0.2548296
        %v2923 = vadd.f32 %v2921, 0.2548296
        %v2924 = vmul.f32 %v2922, %v2905
        %v2925 = vmul.f32 %v2923, %v2907
        %v2926 = vsub.f32 0.0, %v2898
        %v2927 = vsub.f32 0.0, %v2899
        %v2928 = vmul.f32 %v2926, %v2898
        %v2929 = vmul.f32 %v2927, %v2899
        %v2930 = vmul.f32 %v2928, 1.442695
        %v2931 = vpow.pop %v2930
        %v2932 = vmul.f32 %v2929, 1.442695
        %v2933 = vpow.pop %v2932
        %v2934 = vmul.f32 %v2924, %v2931
        %v2935 = vmul.f32 %v2925, %v2933
        %v2936 = vsub.f32 1.0, %v2934
        %v2937 = vsub.f32 1.0, %v2935
        %vm2938 = vcmp.ge.f32.partialorder %v2896, 0.0
        %vm2939 = vcmp.ge.f32.partialorder %v2897, 0.0
        %v2940 = vsub.f32 0.0, %v2936
        %v2941 = vsub.f32 0.0, %v2937
        %v2942 = vsel %vm2938, %v2936, %v2940
        %v2943 = vsel %vm2939, %v2937, %v2941
        %v2944 = vadd.f32 %v2942, 1.0
        %v2945 = vadd.f32 %v2943, 1.0
        %v2946 = vmul.f32 %v2894, %v2944
        %v2947 = vmul.f32 %v2895, %v2945
        %2948 = vst.msk [vmem:[#allocation2] sm:$0xff] %vm1711, %v2946
        %2949 = vst.msk [vmem:[#allocation2 + $0x8] sm:$0xff] %vm1711, %v2947
        %p2950 = scmp.eq.s32.totalorder %s79, 4
        // Predicated region
        $region225: #{translator_noln_forward.2} parent=119 // pred_check
          %p2951 = pneg %p2950
        $region226: #{translator_noln_forward.2} parent=119 // pred_check_branch
          %2953 = sbr.rel (%p2951) target = $region228
        $region227: #{translator_noln_forward.2} parent=119 // pred_region
          %2954 = vst.msk [vmem:[#allocation42] sm:$0xff] %vm1711, %v2946
          %2955 = vst.msk [vmem:[#allocation42 + $0x8] sm:$0xff] %vm1711, %v2947
        $region228: #{translator_noln_forward.2} parent=119 // pred_fallthru
          _
        // Predicated region
        $region229: #{translator_noln_forward.2} parent=119 // pred_check
          %p2956 = pneg %p754
        $region230: #{translator_noln_forward.2} parent=119 // pred_check_branch
          %2958 = sbr.rel (%p2956) target = $region232
        $region231: #{translator_noln_forward.2} parent=119 // pred_region
          %s2959 = smul.u32 2, %s78
          %s2961 = ssub.s32 256, 256
          %2962 = vsyncadd [#allocation5], %s2961
          %s2963 = smul.addr %s2959, 128
          %s2964 = scalar_lea.hbm %s25, %s2963
          %s2965 = sshll.u32 [#allocation42], 4
          %s2966 = int_to_ptr.vmem [resolvable:$true] %s2965
          %2971 = dma.vmem_to_hbm [thread:$0]  %s2966, 256, %s2964, [#allocation5], 128, 128, 8
        $region232: #{translator_noln_forward.2} parent=119 // pred_fallthru
          _
        // Predicated region
        $region233: #{translator_noln_forward.2} parent=119 // pred_check
          %p2972 = pneg %p754
        $region234: #{translator_noln_forward.2} parent=119 // pred_check_branch
          %2974 = sbr.rel (%p2972) target = $region236
        $region235: #{translator_noln_forward.2} parent=119 // pred_region
          %2975 = dma.done [#allocation5], 256
        $region236: #{translator_noln_forward.2} parent=119 // pred_fallthru
          _
      $region120: #{translator_noln_forward.2} parent=5 // pred_fallthru
        _
      %p2976 = scmp.le.s32.totalorder 2, %s69
      // Predicated region
      $region237: #{translator_noln_forward.2} parent=5 // pred_check
        %p2977 = pneg %p2976
      $region238: #{translator_noln_forward.2} parent=5 // pred_check_branch
        %2979 = sbr.rel (%p2977) target = $region240
      $region239: #{translator_noln_forward.2} parent=5 // pred_region
        %s2980 = ssub.s32 %s69, 2
      $region240: #{translator_noln_forward.2} parent=5 // pred_fallthru
        _
    $region6: #{translator_noln_forward.2} parent=1 // loop_footer
      %s73 = sadd.s32 1, %s69
    $region7: #{translator_noln_forward.2} parent=1 // loop_footer_branch
      %68 = sbr.rel target = $region3
    $region8: #{translator_noln_forward.2} parent=1 // loop_exit
      _
    %2981 = vsyncpa [#allocation4], 1
    %s2982 = scalar_lea.sflag [#allocation4], 1
    %2983 = vsyncpa %s2982, 1
    %2984 = vsyncpa [#allocation7], 1
    %s2985 = scalar_lea.sflag [#allocation7], 1
    %2986 = vsyncpa %s2985, 1
    %2987 = vsyncpa [#allocation10], 1
    %s2988 = scalar_lea.sflag [#allocation10], 1
    %2989 = vsyncpa %s2988, 1
    %2990 = vsyncpa [#allocation13], 1
    %s2991 = scalar_lea.sflag [#allocation13], 1
    %2992 = vsyncpa %s2991, 1
    %2993 = vsyncpa [#allocation16], 1
    %s2994 = scalar_lea.sflag [#allocation16], 1
    %2995 = vsyncpa %s2994, 1
    %2996 = vsyncpa [#allocation19], 1
    %s2997 = scalar_lea.sflag [#allocation19], 1
    %2998 = vsyncpa %s2997, 1
    %2999 = vsyncpa [#allocation22], 1
    %s3000 = scalar_lea.sflag [#allocation22], 1
    %3001 = vsyncpa %s3000, 1
    %3002 = vsyncpa [#allocation25], 1
    %s3003 = scalar_lea.sflag [#allocation25], 1
    %3004 = vsyncpa %s3003, 1
    %3005 = vsyncpa [#allocation28], 1
    %s3006 = scalar_lea.sflag [#allocation28], 1
    %3007 = vsyncpa %s3006, 1
    %3008 = vsyncpa [#allocation31], 1
    %s3009 = scalar_lea.sflag [#allocation31], 1
    %3010 = vsyncpa %s3009, 1
    %3011 = vsyncpa [#allocation34], 1
    %s3012 = scalar_lea.sflag [#allocation34], 1
    %3013 = vsyncpa %s3012, 1
    %3014 = vsyncpa [#allocation37], 1
    %s3015 = scalar_lea.sflag [#allocation37], 1
    %3016 = vsyncpa %s3015, 1
    %3017 = vsyncpa [#allocation40], 1
    %s3018 = scalar_lea.sflag [#allocation40], 1
    %3019 = vsyncpa %s3018, 1
    %3020 = vsyncpa [#allocation5], 1
    %s3021 = scalar_lea.sflag [#allocation5], 1
    %3022 = vsyncpa %s3021, 1

</llo_original>
